<compile_context>
chip_gen: v6e
topology: v6e:2x2x1
jax: 0.10.0
libtpu: 0.0.40
codegen_flags: <defaults>
</compile_context>

<pallas_src>
import functools

import jax
import jax.numpy as jnp
from jax import lax
from jax.experimental import pallas as pl
from jax.experimental.pallas import tpu as pltpu

H1, H2, DIM_K = 32, 32, 32       # small synthetic PointNet widths (orig: 64/128/1024)
K_PAD = 128                      # lane-padded channel width (vreg lane count)
MAX_CLOUDS_PER_STEP = 16         # tb*n = 256 rows -> two full 128-wide MXU passes
BN_EPS = 1e-5                    # eval-mode BatchNorm1d (default running stats), folded
LK_MM_DTYPE = jnp.bfloat16       # MXU operand dtype inside the LK loop (f32 accumulate)


# --------------------------------------------------------------------------- Pallas kernel
def _make_pointnet_kernel(tb, n, mm_dtype):
    """Shared-MLP + max-pool over `tb` clouds of `n` points per grid step."""

    def kernel(x_ref, w1_ref, b23_ref, w2_ref, w3_ref, out_ref):
        # x_ref:   (tb, n, 3)      points (UNtransformed; rigid transform is in w1_ref)
        # w1_ref:  (tb, 4, K_PAD)  per-cloud rows 0..2 = Rᵀ@W1, row 3 = t@W1 + b1
        # b23_ref: (8, K_PAD)      row 0 = b2, row 1 = b3 (zero padded)
        # w2_ref / w3_ref: (K_PAD, K_PAD) in mm_dtype
        # out_ref: (tb, K_PAD)     per-cloud max-pooled feature (lane-dense store)
        x = x_ref[...]                                            # f32
        w1 = w1_ref[...]                                          # f32

        # layer 1 (+ fused rigid transform): 3 broadcast FMAs on the VPU.
        h = (x[:, :, 0:1] * w1[:, 0:1, :]
             + x[:, :, 1:2] * w1[:, 1:2, :]
             + x[:, :, 2:3] * w1[:, 2:3, :]
             + w1[:, 3:4, :])                                     # (tb, n, K_PAD)
        h = jnp.maximum(h, 0.0).reshape(tb * n, K_PAD)            # tile-aligned collapse

        # layers 2/3 on the MXU; bf16 operands on v6e/v7x, f32 accumulate;
        # bias add / ReLU stay in f32 (v5e VPU has no bf16).
        h = jnp.dot(h.astype(mm_dtype), w2_ref[...],
                    preferred_element_type=jnp.float32) + b23_ref[0:1, :]
        h = jnp.maximum(h, 0.0)
        h = jnp.dot(h.astype(mm_dtype), w3_ref[...],
                    preferred_element_type=jnp.float32) + b23_ref[1:2, :]
        h = jnp.maximum(h, 0.0)

        # per-cloud max pool: one reshape, one reduce, one dense (tb, 128) store.
        out_ref[...] = jnp.max(h.reshape(tb, n, K_PAD), axis=1)

    return kernel


def pointnet_features(pts, w1eff, params, *, mm_dtype=jnp.float32):
    """PointNet global feature via Pallas: (NC, N, 3) + per-cloud layer-1 weights
    (NC, 4, K_PAD) -> (NC, DIM_K)."""
    nc, n, _ = pts.shape
    assert n % 8 == 0, "N must be a multiple of 8 (sublane count)"
    x = pts.astype(jnp.float32)
    w1eff = w1eff.astype(jnp.float32)
    w2 = params["w2"].astype(mm_dtype)
    w3 = params["w3"].astype(mm_dtype)
    b23 = params["b23"]

    if nc <= MAX_CLOUDS_PER_STEP:
        # Single full-extent step: no dummy-cloud padding (full block shapes are
        # always legal), the whole batch fills one MXU M-pass.
        tb, steps = nc, 1
    else:
        tb = MAX_CLOUDS_PER_STEP
        nc_pad = pl.cdiv(nc, tb) * tb
        if nc_pad != nc:
            x = jnp.concatenate(
                [x, jnp.zeros((nc_pad - nc, n, 3), jnp.float32)], axis=0)
            w1eff = jnp.concatenate(
                [w1eff, jnp.zeros((nc_pad - nc, 4, K_PAD), jnp.float32)], axis=0)
        steps = nc_pad // tb

    # NOTE: b23/w2/w3 are grid-invariant; with steps==1 (the case exercised here)
    # double-buffering them is moot.  At scale-up mark them pl.Buffered(1) / scratch.
    out = pl.pallas_call(
        _make_pointnet_kernel(tb, n, mm_dtype),
        out_shape=jax.ShapeDtypeStruct((tb * steps, K_PAD), jnp.float32),
        grid_spec=pltpu.PrefetchScalarGridSpec(
            num_scalar_prefetch=0,
            grid=(steps,),
            in_specs=[
                pl.BlockSpec((tb, n, 3), lambda b: (b, 0, 0)),
                pl.BlockSpec((tb, 4, K_PAD), lambda b: (b, 0, 0)),
                pl.BlockSpec((8, K_PAD), lambda b: (0, 0)),
                pl.BlockSpec((K_PAD, K_PAD), lambda b: (0, 0)),
                pl.BlockSpec((K_PAD, K_PAD), lambda b: (0, 0)),
            ],
            out_specs=pl.BlockSpec((tb, K_PAD), lambda b: (b, 0)),
        ),
        compiler_params=pltpu.CompilerParams(dimension_semantics=("parallel",)),
    )(x, w1eff, b23, w2, w3)

    # padded channels are exactly 0 through bias+ReLU+max; slice back to true widths.
    return out[:nc, :DIM_K]


def rigid_to_w1eff(g, params):
    """Fold per-cloud rigid transforms g (nc,4,4) into layer-1 weights.
    conv1(R x + t) == x @ (Rᵀ W1) + (t W1 + b1)  (exact, by linearity)."""
    R = g[..., :3, :3]                                   # (nc, 3, 3)
    t = g[..., :3, 3]                                    # (nc, 3)
    w1p, b1p = params["w1"], params["b1"]                # (3, K_PAD), (K_PAD,)
    w_eff = jnp.einsum("nij,ik->njk", R, w1p)            # Rᵀ @ W1 -> (nc, 3, K_PAD)
    b_eff = b1p[None, :] + jnp.einsum("ni,ik->nk", t, w1p)
    return jnp.concatenate([w_eff, b_eff[:, None, :]], axis=1)   # (nc, 4, K_PAD)


# --------------------------------------------------------------------------- SE(3) glue (plain JAX)
def _sinc1(t):  # sin(t)/t
    t2 = t * t
    small = 1.0 - t2 / 6.0 * (1.0 - t2 / 20.0 * (1.0 - t2 / 42.0))
    ts = jnp.where(t < 1e-2, 1.0, t)
    return jnp.where(t < 1e-2, small, jnp.sin(ts) / ts)


def _sinc2(t):  # (1-cos(t))/t^2
    t2 = t * t
    small = 0.5 * (1.0 - t2 / 12.0 * (1.0 - t2 / 30.0 * (1.0 - t2 / 56.0)))
    ts = jnp.where(t < 1e-2, 1.0, t)
    return jnp.where(t < 1e-2, small, (1.0 - jnp.cos(ts)) / (ts * ts))


def _sinc3(t):  # (t-sin(t))/t^3
    t2 = t * t
    small = (1.0 / 6.0) * (1.0 - t2 / 20.0 * (1.0 - t2 / 42.0 * (1.0 - t2 / 72.0)))
    ts = jnp.where(t < 1e-2, 1.0, t)
    return jnp.where(t < 1e-2, small, (ts - jnp.sin(ts)) / (ts * ts * ts))


def so3_hat(w):
    w1, w2, w3 = w[..., 0], w[..., 1], w[..., 2]
    O = jnp.zeros_like(w1)
    return jnp.stack(
        [jnp.stack([O, -w3, w2], axis=-1),
         jnp.stack([w3, O, -w1], axis=-1),
         jnp.stack([-w2, w1, O], axis=-1)], axis=-2)


def se3_exp(x):
    """Twist (..., 6) -> SE(3) matrix (..., 4, 4). Matches ptlk.se3.Exp."""
    lead = x.shape[:-1]
    x_ = x.reshape(-1, 6)
    w, v = x_[:, 0:3], x_[:, 3:6]
    t = jnp.sqrt(jnp.sum(w * w, axis=1))
    W = so3_hat(w)
    S = jnp.matmul(W, W)
    I3 = jnp.eye(3, dtype=x.dtype)
    s1 = _sinc1(t)[:, None, None]
    s2 = _sinc2(t)[:, None, None]
    s3 = _sinc3(t)[:, None, None]
    R = I3 + s1 * W + s2 * S
    V = I3 + s2 * W + s3 * S
    p = jnp.matmul(V, v[:, :, None])                      # (M, 3, 1)
    top = jnp.concatenate([R, p], axis=2)                 # (M, 3, 4)
    bottom = jnp.broadcast_to(
        jnp.array([0.0, 0.0, 0.0, 1.0], dtype=x.dtype).reshape(1, 1, 4),
        (x_.shape[0], 1, 4))
    g = jnp.concatenate([top, bottom], axis=1)
    return g.reshape(*lead, 4, 4)


def se3_transform(g, a):
    """g: (..., 4, 4), a: (..., 3) points (broadcasts like ptlk.se3.transform)."""
    R = g[..., 0:3, 0:3]
    t = g[..., 0:3, 3]
    return jnp.matmul(R, a[..., None])[..., 0] + t


# --------------------------------------------------------------------------- PointLK forward
# TODO(synk): g_series bookkeeping, the training-mode feature pre-pass, the try/except
# singular-H fallback and the do_forward zero-mean wrapper are host-side bookkeeping
# not needed for the (r, g, itr) forward outputs and are omitted.
@functools.partial(jax.jit, static_argnames=("maxiter", "xtol"))
def pointlk_forward(params, dt_param, p0, p1, maxiter=10, xtol=1e-7):
    B, N, _ = p0.shape
    I4 = jnp.eye(4, dtype=jnp.float32)
    g0 = jnp.broadcast_to(I4, (B, 4, 4))

    # ---- f0 and the 6 finite-difference Jacobian features in ONE pallas_call
    # (B*7 clouds, f32 MXU operands).  The perturbation transforms Exp(-dt_i e_i) are
    # folded into per-cloud layer-1 weights, so the points input is just p0 replicated.
    dt = jnp.broadcast_to(dt_param.astype(jnp.float32), (B, 6))
    d = jax.vmap(jnp.diag)(dt)                                     # (B, 6, 6)
    D = se3_exp((-d).reshape(-1, 6)).reshape(B, 6, 4, 4)           # Exp(-dt_i * e_i)
    all_g = jnp.concatenate([jnp.broadcast_to(I4, (B, 1, 4, 4)), D], axis=1)  # (B,7,4,4)
    w1eff_j = rigid_to_w1eff(all_g.reshape(B * 7, 4, 4), params)
    all_p = jnp.broadcast_to(p0[:, None], (B, 7, N, 3)).reshape(B * 7, N, 3)
    feats = pointnet_features(all_p, w1eff_j, params, mm_dtype=jnp.float32)
    feats = feats.reshape(B, 7, DIM_K)
    f0 = feats[:, 0, :]                                            # (B, K)
    f = jnp.swapaxes(feats[:, 1:, :], 1, 2)                        # (B, K, 6)
    J = (f0[..., None] - f) / dt[:, None, :]                       # (B, K, 6)

    Jt = jnp.swapaxes(J, 1, 2)                                     # (B, 6, K)
    H = jnp.matmul(Jt, J)                                          # (B, 6, 6)
    Hinv = jnp.linalg.inv(H)                                       # InvMatrix.apply forward
    pinv = jnp.matmul(Hinv, Jt)                                    # (B, 6, K)

    # ---- device-side LK loop with xtol early exit (no per-iteration host sync).
    # g is folded into layer-1 weights each iteration -> no se3_transform dispatch and
    # no (B, N, 3) transformed-cloud HBM round trip per iteration.
    def cond_fn(carry):
        itr, _g, _r, done = carry
        return jnp.logical_and(itr < maxiter, jnp.logical_not(done))

    def body_fn(carry):
        itr, g, _r, _done = carry
        w1e = rigid_to_w1eff(g, params)
        fcur = pointnet_features(p1, w1e, params, mm_dtype=LK_MM_DTYPE)   # (B, K)
        r_new = fcur - f0
        dx = -jnp.matmul(pinv, r_new[..., None])[..., 0]           # (B, 6)
        check = jnp.max(jnp.sqrt(jnp.sum(dx * dx, axis=1)))
        done_new = check < xtol                                    # original: break before update
        g_new = jnp.where(done_new, g, jnp.matmul(se3_exp(dx), g))
        return itr + 1, g_new, r_new, done_new

    init = (jnp.int32(0), g0, jnp.zeros((B, DIM_K), jnp.float32), jnp.array(False))
    itr, g, r, _ = lax.while_loop(cond_fn, body_fn, init)
    return r, g, itr


# --------------------------------------------------------------------------- params
def init_params(key):
    ks = jax.random.split(key, 6)
    bn_scale = 1.0 / jnp.sqrt(1.0 + BN_EPS)   # folded eval-mode BatchNorm1d (default stats)

    def rnd(k, shape, scale):
        return jax.random.normal(k, shape, dtype=jnp.float32) * scale * bn_scale

    w1 = rnd(ks[0], (3, H1), 0.5)
    b1 = rnd(ks[1], (H1,), 0.1)
    w2 = rnd(ks[2], (H1, H2), 0.2)
    b2 = rnd(ks[3], (H2,), 0.1)
    w3 = rnd(ks[4], (H2, DIM_K), 0.2)
    b3 = rnd(ks[5], (DIM_K,), 0.1)

    # Lane-padded parameter tiles.  Padded lanes/rows MUST stay exactly 0 so padded
    # channels remain 0 through bias + ReLU + max (preserve this if loading a checkpoint).
    w1p = jnp.zeros((3, K_PAD), jnp.float32).at[:, 0:H1].set(w1)
    b1p = jnp.zeros((K_PAD,), jnp.float32).at[0:H1].set(b1)
    w2p = jnp.zeros((K_PAD, K_PAD), jnp.float32).at[0:H1, 0:H2].set(w2)
    w3p = jnp.zeros((K_PAD, K_PAD), jnp.float32).at[0:H2, 0:DIM_K].set(w3)
    b23 = jnp.zeros((8, K_PAD), jnp.float32).at[0, 0:H2].set(b2).at[1, 0:DIM_K].set(b3)
    return {"w1": w1p, "b1": b1p, "w2": w2p, "w3": w3p, "b23": b23}


# --------------------------------------------------------------------------- main
if __name__ == "__main__":
    key = jax.random.PRNGKey(0)
    kparam, kp0, ktwist = jax.random.split(key, 3)

    params = init_params(kparam)
    delta = 0.01
    dt_param = jnp.full((1, 6), delta, dtype=jnp.float32)    # self.dt parameter

    B, N = 2, 16
    p0 = jax.random.normal(kp0, (B, N, 3), dtype=jnp.float32)
    # p1 = p0 moved by a small ground-truth rigid transform
    gt_twist = 0.05 * jax.random.normal(ktwist, (B, 6), dtype=jnp.float32)
    gt_g = se3_exp(gt_twist)                                 # (B, 4, 4)
    p1 = se3_transform(gt_g[:, None, :, :], p0)              # (B, N, 3)

    r, g, itr = pointlk_forward(params, dt_param, p0, p1, maxiter=10, xtol=1e-7)
    jax.block_until_ready((r, g, itr))
    assert r.shape == (B, DIM_K) and g.shape == (B, 4, 4)
    print("KERNEL_OK")
</pallas_src>

<mosaic_0001>
module attributes {stable_mosaic.version = 11 : i64} {
  func.func @kernel(%arg0: i32, %arg1: memref<14x16x3xf32, #tpu.memory_space<vmem>>, %arg2: memref<14x4x128xf32, #tpu.memory_space<vmem>>, %arg3: memref<8x128xf32, #tpu.memory_space<vmem>>, %arg4: memref<128x128xf32, #tpu.memory_space<vmem>>, %arg5: memref<128x128xf32, #tpu.memory_space<vmem>>, %arg6: memref<14x128xf32, #tpu.memory_space<vmem>>) attributes {dimension_semantics = [#tpu.dimension_semantics<parallel>], iteration_bounds = array<i64: 1>, scalar_prefetch = 0 : i64, scratch_operands = 0 : i64, tpu.core_type = #tpu.core_type<tc>, window_params = [{transform_indices = @transform_0, window_bounds = array<i64: 14, 16, 3>}, {transform_indices = @transform_1, window_bounds = array<i64: 14, 4, 128>}, {pipeline_mode = #tpu.pipeline_mode<synchronous>, transform_indices = @transform_2, window_bounds = array<i64: 8, 128>}, {pipeline_mode = #tpu.pipeline_mode<synchronous>, transform_indices = @transform_3, window_bounds = array<i64: 128, 128>}, {pipeline_mode = #tpu.pipeline_mode<synchronous>, transform_indices = @transform_4, window_bounds = array<i64: 128, 128>}, {transform_indices = @transform_5, window_bounds = array<i64: 14, 128>}]} {
    %c0 = arith.constant 0 : index
    %c0_0 = arith.constant 0 : index
    %c0_1 = arith.constant 0 : index
    %0 = vector.load %arg1[%c0, %c0_0, %c0_1] : memref<14x16x3xf32, #tpu.memory_space<vmem>>, vector<14x16x3xf32>
    %c0_2 = arith.constant 0 : index
    %c0_3 = arith.constant 0 : index
    %c0_4 = arith.constant 0 : index
    %1 = vector.load %arg2[%c0_2, %c0_3, %c0_4] : memref<14x4x128xf32, #tpu.memory_space<vmem>>, vector<14x4x128xf32>
    %2 = vector.extract_strided_slice %0 {offsets = [0, 0, 0], sizes = [14, 16, 1], strides = [1, 1, 1]} : vector<14x16x3xf32> to vector<14x16x1xf32>
    %3 = vector.extract_strided_slice %1 {offsets = [0, 0, 0], sizes = [14, 1, 128], strides = [1, 1, 1]} : vector<14x4x128xf32> to vector<14x1x128xf32>
    %4 = vector.broadcast %2 : vector<14x16x1xf32> to vector<14x16x128xf32>
    %5 = vector.broadcast %3 : vector<14x1x128xf32> to vector<14x16x128xf32>
    %6 = arith.mulf %4, %5 : vector<14x16x128xf32>
    %7 = vector.extract_strided_slice %0 {offsets = [0, 0, 1], sizes = [14, 16, 1], strides = [1, 1, 1]} : vector<14x16x3xf32> to vector<14x16x1xf32>
    %8 = vector.extract_strided_slice %1 {offsets = [0, 1, 0], sizes = [14, 1, 128], strides = [1, 1, 1]} : vector<14x4x128xf32> to vector<14x1x128xf32>
    %9 = vector.broadcast %7 : vector<14x16x1xf32> to vector<14x16x128xf32>
    %10 = vector.broadcast %8 : vector<14x1x128xf32> to vector<14x16x128xf32>
    %11 = arith.mulf %9, %10 : vector<14x16x128xf32>
    %12 = arith.addf %6, %11 : vector<14x16x128xf32>
    %13 = vector.extract_strided_slice %0 {offsets = [0, 0, 2], sizes = [14, 16, 1], strides = [1, 1, 1]} : vector<14x16x3xf32> to vector<14x16x1xf32>
    %14 = vector.extract_strided_slice %1 {offsets = [0, 2, 0], sizes = [14, 1, 128], strides = [1, 1, 1]} : vector<14x4x128xf32> to vector<14x1x128xf32>
    %15 = vector.broadcast %13 : vector<14x16x1xf32> to vector<14x16x128xf32>
    %16 = vector.broadcast %14 : vector<14x1x128xf32> to vector<14x16x128xf32>
    %17 = arith.mulf %15, %16 : vector<14x16x128xf32>
    %18 = arith.addf %12, %17 : vector<14x16x128xf32>
    %19 = vector.extract_strided_slice %1 {offsets = [0, 3, 0], sizes = [14, 1, 128], strides = [1, 1, 1]} : vector<14x4x128xf32> to vector<14x1x128xf32>
    %20 = vector.broadcast %19 : vector<14x1x128xf32> to vector<14x16x128xf32>
    %21 = arith.addf %18, %20 : vector<14x16x128xf32>
    %cst = arith.constant 0.000000e+00 : f32
    %22 = vector.broadcast %cst : f32 to vector<14x16x128xf32>
    %23 = arith.maximumf %21, %22 : vector<14x16x128xf32>
    %24 = vector.shape_cast %23 : vector<14x16x128xf32> to vector<224x128xf32>
    %c0_5 = arith.constant 0 : index
    %c0_6 = arith.constant 0 : index
    %25 = vector.load %arg4[%c0_5, %c0_6] : memref<128x128xf32, #tpu.memory_space<vmem>>, vector<128x128xf32>
    %cst_7 = arith.constant dense<0.000000e+00> : vector<224x128xf32>
    %26 = tpu.matmul %24, %25, %cst_7 {dimension_numbers = #tpu.dot_dimension_numbers<[1], [0], [0], [1], [0, 0, 1, 1], [], []>} : vector<224x128xf32>, vector<128x128xf32>, vector<224x128xf32> -> vector<224x128xf32>
    %c0_8 = arith.constant 0 : index
    %c0_9 = arith.constant 0 : index
    %27 = vector.load %arg3[%c0_8, %c0_9] : memref<8x128xf32, #tpu.memory_space<vmem>>, vector<1x128xf32>
    %28 = vector.broadcast %27 : vector<1x128xf32> to vector<224x128xf32>
    %29 = arith.addf %26, %28 : vector<224x128xf32>
    %cst_10 = arith.constant 0.000000e+00 : f32
    %30 = vector.broadcast %cst_10 : f32 to vector<224x128xf32>
    %31 = arith.maximumf %29, %30 : vector<224x128xf32>
    %c0_11 = arith.constant 0 : index
    %c0_12 = arith.constant 0 : index
    %32 = vector.load %arg5[%c0_11, %c0_12] : memref<128x128xf32, #tpu.memory_space<vmem>>, vector<128x128xf32>
    %cst_13 = arith.constant dense<0.000000e+00> : vector<224x128xf32>
    %33 = tpu.matmul %31, %32, %cst_13 {dimension_numbers = #tpu.dot_dimension_numbers<[1], [0], [0], [1], [0, 0, 1, 1], [], []>} : vector<224x128xf32>, vector<128x128xf32>, vector<224x128xf32> -> vector<224x128xf32>
    %c1 = arith.constant 1 : index
    %c0_14 = arith.constant 0 : index
    %34 = vector.load %arg3[%c1, %c0_14] : memref<8x128xf32, #tpu.memory_space<vmem>>, vector<1x128xf32>
    %35 = vector.broadcast %34 : vector<1x128xf32> to vector<224x128xf32>
    %36 = arith.addf %33, %35 : vector<224x128xf32>
    %cst_15 = arith.constant 0.000000e+00 : f32
    %37 = vector.broadcast %cst_15 : f32 to vector<224x128xf32>
    %38 = arith.maximumf %36, %37 : vector<224x128xf32>
    %39 = vector.shape_cast %38 : vector<224x128xf32> to vector<14x16x128xf32>
    %cst_16 = arith.constant dense<0xFF800000> : vector<14x128xf32>
    %40 = vector.multi_reduction <maximumf>, %39, %cst_16 [1] : vector<14x16x128xf32> to vector<14x128xf32>
    %c0_17 = arith.constant 0 : index
    %c0_18 = arith.constant 0 : index
    %41 = vector.load %arg6[%c0_17, %c0_18] : memref<14x128xf32, #tpu.memory_space<vmem>>, vector<14x128xf32>
    tpu.vector_store %arg6[%c0_17, %c0_18], %40 {strides = array<i32>} : memref<14x128xf32, #tpu.memory_space<vmem>>, vector<14x128xf32>,
    return
  }
  func.func @transform_0(%arg0: i32) -> (i32, i32, i32) {
    %c0_i32 = arith.constant 0 : i32
    %c0_i32_0 = arith.constant 0 : i32
    %c0_i32_1 = arith.constant 0 : i32
    return %arg0, %c0_i32, %c0_i32_0 : i32, i32, i32
  }
  func.func @transform_1(%arg0: i32) -> (i32, i32, i32) {
    %c0_i32 = arith.constant 0 : i32
    %c0_i32_0 = arith.constant 0 : i32
    %c0_i32_1 = arith.constant 0 : i32
    return %arg0, %c0_i32, %c0_i32_0 : i32, i32, i32
  }
  func.func @transform_2(%arg0: i32) -> (i32, i32) {
    %c0_i32 = arith.constant 0 : i32
    %c0_i32_0 = arith.constant 0 : i32
    %c0_i32_1 = arith.constant 0 : i32
    return %c0_i32, %c0_i32_0 : i32, i32
  }
  func.func @transform_3(%arg0: i32) -> (i32, i32) {
    %c0_i32 = arith.constant 0 : i32
    %c0_i32_0 = arith.constant 0 : i32
    %c0_i32_1 = arith.constant 0 : i32
    return %c0_i32, %c0_i32_0 : i32, i32
  }
  func.func @transform_4(%arg0: i32) -> (i32, i32) {
    %c0_i32 = arith.constant 0 : i32
    %c0_i32_0 = arith.constant 0 : i32
    %c0_i32_1 = arith.constant 0 : i32
    return %c0_i32, %c0_i32_0 : i32, i32
  }
  func.func @transform_5(%arg0: i32) -> (i32, i32) {
    %c0_i32 = arith.constant 0 : i32
    %c0_i32_0 = arith.constant 0 : i32
    return %arg0, %c0_i32 : i32, i32
  }
}

module attributes {stable_mosaic.version = 11 : i64} {
  func.func @kernel(%arg0: i32, %arg1: memref<2x16x3xf32, #tpu.memory_space<vmem>>, %arg2: memref<2x4x128xf32, #tpu.memory_space<vmem>>, %arg3: memref<8x128xf32, #tpu.memory_space<vmem>>, %arg4: memref<128x128xbf16, #tpu.memory_space<vmem>>, %arg5: memref<128x128xbf16, #tpu.memory_space<vmem>>, %arg6: memref<2x128xf32, #tpu.memory_space<vmem>>) attributes {dimension_semantics = [#tpu.dimension_semantics<parallel>], iteration_bounds = array<i64: 1>, scalar_prefetch = 0 : i64, scratch_operands = 0 : i64, tpu.core_type = #tpu.core_type<tc>, window_params = [{transform_indices = @transform_0, window_bounds = array<i64: 2, 16, 3>}, {transform_indices = @transform_1, window_bounds = array<i64: 2, 4, 128>}, {pipeline_mode = #tpu.pipeline_mode<synchronous>, transform_indices = @transform_2, window_bounds = array<i64: 8, 128>}, {pipeline_mode = #tpu.pipeline_mode<synchronous>, transform_indices = @transform_3, window_bounds = array<i64: 128, 128>}, {pipeline_mode = #tpu.pipeline_mode<synchronous>, transform_indices = @transform_4, window_bounds = array<i64: 128, 128>}, {transform_indices = @transform_5, window_bounds = array<i64: 2, 128>}]} {
    %c0 = arith.constant 0 : index
    %c0_0 = arith.constant 0 : index
    %c0_1 = arith.constant 0 : index
    %0 = vector.load %arg1[%c0, %c0_0, %c0_1] : memref<2x16x3xf32, #tpu.memory_space<vmem>>, vector<2x16x3xf32>
    %c0_2 = arith.constant 0 : index
    %c0_3 = arith.constant 0 : index
    %c0_4 = arith.constant 0 : index
    %1 = vector.load %arg2[%c0_2, %c0_3, %c0_4] : memref<2x4x128xf32, #tpu.memory_space<vmem>>, vector<2x4x128xf32>
    %2 = vector.extract_strided_slice %0 {offsets = [0, 0, 0], sizes = [2, 16, 1], strides = [1, 1, 1]} : vector<2x16x3xf32> to vector<2x16x1xf32>
    %3 = vector.extract_strided_slice %1 {offsets = [0, 0, 0], sizes = [2, 1, 128], strides = [1, 1, 1]} : vector<2x4x128xf32> to vector<2x1x128xf32>
    %4 = vector.broadcast %2 : vector<2x16x1xf32> to vector<2x16x128xf32>
    %5 = vector.broadcast %3 : vector<2x1x128xf32> to vector<2x16x128xf32>
    %6 = arith.mulf %4, %5 : vector<2x16x128xf32>
    %7 = vector.extract_strided_slice %0 {offsets = [0, 0, 1], sizes = [2, 16, 1], strides = [1, 1, 1]} : vector<2x16x3xf32> to vector<2x16x1xf32>
    %8 = vector.extract_strided_slice %1 {offsets = [0, 1, 0], sizes = [2, 1, 128], strides = [1, 1, 1]} : vector<2x4x128xf32> to vector<2x1x128xf32>
    %9 = vector.broadcast %7 : vector<2x16x1xf32> to vector<2x16x128xf32>
    %10 = vector.broadcast %8 : vector<2x1x128xf32> to vector<2x16x128xf32>
    %11 = arith.mulf %9, %10 : vector<2x16x128xf32>
    %12 = arith.addf %6, %11 : vector<2x16x128xf32>
    %13 = vector.extract_strided_slice %0 {offsets = [0, 0, 2], sizes = [2, 16, 1], strides = [1, 1, 1]} : vector<2x16x3xf32> to vector<2x16x1xf32>
    %14 = vector.extract_strided_slice %1 {offsets = [0, 2, 0], sizes = [2, 1, 128], strides = [1, 1, 1]} : vector<2x4x128xf32> to vector<2x1x128xf32>
    %15 = vector.broadcast %13 : vector<2x16x1xf32> to vector<2x16x128xf32>
    %16 = vector.broadcast %14 : vector<2x1x128xf32> to vector<2x16x128xf32>
    %17 = arith.mulf %15, %16 : vector<2x16x128xf32>
    %18 = arith.addf %12, %17 : vector<2x16x128xf32>
    %19 = vector.extract_strided_slice %1 {offsets = [0, 3, 0], sizes = [2, 1, 128], strides = [1, 1, 1]} : vector<2x4x128xf32> to vector<2x1x128xf32>
    %20 = vector.broadcast %19 : vector<2x1x128xf32> to vector<2x16x128xf32>
    %21 = arith.addf %18, %20 : vector<2x16x128xf32>
    %cst = arith.constant 0.000000e+00 : f32
    %22 = vector.broadcast %cst : f32 to vector<2x16x128xf32>
    %23 = arith.maximumf %21, %22 : vector<2x16x128xf32>
    %24 = vector.shape_cast %23 : vector<2x16x128xf32> to vector<32x128xf32>
    %25 = arith.truncf %24 : vector<32x128xf32> to vector<32x128xbf16>
    %c0_5 = arith.constant 0 : index
    %c0_6 = arith.constant 0 : index
    %26 = vector.load %arg4[%c0_5, %c0_6] : memref<128x128xbf16, #tpu.memory_space<vmem>>, vector<128x128xbf16>
    %cst_7 = arith.constant dense<0.000000e+00> : vector<32x128xf32>
    %27 = tpu.matmul %25, %26, %cst_7 {dimension_numbers = #tpu.dot_dimension_numbers<[1], [0], [0], [1], [0, 0, 1, 1], [], []>} : vector<32x128xbf16>, vector<128x128xbf16>, vector<32x128xf32> -> vector<32x128xf32>
    %c0_8 = arith.constant 0 : index
    %c0_9 = arith.constant 0 : index
    %28 = vector.load %arg3[%c0_8, %c0_9] : memref<8x128xf32, #tpu.memory_space<vmem>>, vector<1x128xf32>
    %29 = vector.broadcast %28 : vector<1x128xf32> to vector<32x128xf32>
    %30 = arith.addf %27, %29 : vector<32x128xf32>
    %cst_10 = arith.constant 0.000000e+00 : f32
    %31 = vector.broadcast %cst_10 : f32 to vector<32x128xf32>
    %32 = arith.maximumf %30, %31 : vector<32x128xf32>
    %33 = arith.truncf %32 : vector<32x128xf32> to vector<32x128xbf16>
    %c0_11 = arith.constant 0 : index
    %c0_12 = arith.constant 0 : index
    %34 = vector.load %arg5[%c0_11, %c0_12] : memref<128x128xbf16, #tpu.memory_space<vmem>>, vector<128x128xbf16>
    %cst_13 = arith.constant dense<0.000000e+00> : vector<32x128xf32>
    %35 = tpu.matmul %33, %34, %cst_13 {dimension_numbers = #tpu.dot_dimension_numbers<[1], [0], [0], [1], [0, 0, 1, 1], [], []>} : vector<32x128xbf16>, vector<128x128xbf16>, vector<32x128xf32> -> vector<32x128xf32>
    %c1 = arith.constant 1 : index
    %c0_14 = arith.constant 0 : index
    %36 = vector.load %arg3[%c1, %c0_14] : memref<8x128xf32, #tpu.memory_space<vmem>>, vector<1x128xf32>
    %37 = vector.broadcast %36 : vector<1x128xf32> to vector<32x128xf32>
    %38 = arith.addf %35, %37 : vector<32x128xf32>
    %cst_15 = arith.constant 0.000000e+00 : f32
    %39 = vector.broadcast %cst_15 : f32 to vector<32x128xf32>
    %40 = arith.maximumf %38, %39 : vector<32x128xf32>
    %41 = vector.shape_cast %40 : vector<32x128xf32> to vector<2x16x128xf32>
    %cst_16 = arith.constant dense<0xFF800000> : vector<2x128xf32>
    %42 = vector.multi_reduction <maximumf>, %41, %cst_16 [1] : vector<2x16x128xf32> to vector<2x128xf32>
    %c0_17 = arith.constant 0 : index
    %c0_18 = arith.constant 0 : index
    %43 = vector.load %arg6[%c0_17, %c0_18] : memref<2x128xf32, #tpu.memory_space<vmem>>, vector<2x128xf32>
    tpu.vector_store %arg6[%c0_17, %c0_18], %42 {strides = array<i32>} : memref<2x128xf32, #tpu.memory_space<vmem>>, vector<2x128xf32>,
    return
  }
  func.func @transform_0(%arg0: i32) -> (i32, i32, i32) {
    %c0_i32 = arith.constant 0 : i32
    %c0_i32_0 = arith.constant 0 : i32
    %c0_i32_1 = arith.constant 0 : i32
    return %arg0, %c0_i32, %c0_i32_0 : i32, i32, i32
  }
  func.func @transform_1(%arg0: i32) -> (i32, i32, i32) {
    %c0_i32 = arith.constant 0 : i32
    %c0_i32_0 = arith.constant 0 : i32
    %c0_i32_1 = arith.constant 0 : i32
    return %arg0, %c0_i32, %c0_i32_0 : i32, i32, i32
  }
  func.func @transform_2(%arg0: i32) -> (i32, i32) {
    %c0_i32 = arith.constant 0 : i32
    %c0_i32_0 = arith.constant 0 : i32
    %c0_i32_1 = arith.constant 0 : i32
    return %c0_i32, %c0_i32_0 : i32, i32
  }
  func.func @transform_3(%arg0: i32) -> (i32, i32) {
    %c0_i32 = arith.constant 0 : i32
    %c0_i32_0 = arith.constant 0 : i32
    %c0_i32_1 = arith.constant 0 : i32
    return %c0_i32, %c0_i32_0 : i32, i32
  }
  func.func @transform_4(%arg0: i32) -> (i32, i32) {
    %c0_i32 = arith.constant 0 : i32
    %c0_i32_0 = arith.constant 0 : i32
    %c0_i32_1 = arith.constant 0 : i32
    return %c0_i32, %c0_i32_0 : i32, i32
  }
  func.func @transform_5(%arg0: i32) -> (i32, i32) {
    %c0_i32 = arith.constant 0 : i32
    %c0_i32_0 = arith.constant 0 : i32
    return %arg0, %c0_i32 : i32, i32
  }
}

</mosaic_0001>

<llo_original>
// kernel: custom-call.11
$region0: #{custom-call.11}
  %s0 = inlined_call_operand.vmem [shape: f32[2,6,6], index: 0, kind: input, shape index: {}]
  %s1 = inlined_call_operand.vmem [shape: f32[2,6,6], index: 1, kind: output, shape index: {0}]
  %s2 = inlined_call_operand.hbm [shape: s32[2,6], index: 2, kind: output, shape index: {1}]
  %s3 = inlined_call_operand.vmem [shape: s32[2,6], index: 3, kind: output, shape index: {2}]
  %4 = xla_tuple %s1, %s2, %s3
  $region1: #{custom-call.11} parent=0
    #allocation0 [shape = 'u8[8192]{0}', space=vmem, size = 0x2000, scoped, tag = 'operand span for operand 0']
    #allocation1 [shape = 'u8[8192]{0}', space=vmem, size = 0x2000, scoped, tag = 'operand span for operand 1']
    #allocation2 [shape = 'u8[4096]{0}', space=vmem, size = 0x1000, scoped, tag = 'operand span for operand 2']
    #allocation3 [shape = 'u8[2048]{0}', space=vmem, size = 0x800, scoped, tag = 'packed  for operand 2']
    #allocation4 [shape = 's32[2]{0}', space=sflag, size = 0x8, scoped, tag = 'scoped memory for custom-call.11']
    #allocation5 [shape = 'u8[4096]{0}', space=vmem, size = 0x1000, scoped, tag = 'operand span for operand 3']
    #allocation6 [shape = 'u8[2048]{0}', space=vmem, size = 0x800, scoped, tag = 'packed  for operand 3']
    %5 = vsyncpa [#allocation4], 0
    %s6 = scalar_lea.sflag [#allocation4], 1
    %7 = vsyncpa %s6, 0
    loop: start=0, step=1, limit=4
    $region2: #{custom-call.11} parent=1 // loop_pre_header
      _
    $region3: #{custom-call.11} parent=1 // loop_header
      %s9 = sphi 0, %s13
      %p10 = scmp.ge.s32.totalorder %s9, 4
      %s21 = sphi 0, %s23
      %s24 = sphi 0, %s21
      %s25 = sphi 0, %s24
      %s41 = sphi 0, %s25
      %s49 = sphi 0, %s51
      %s52 = sphi 0, %s49
      %s53 = sphi 0, %s52
      %s69 = sphi 0, %s53
    $region4: #{custom-call.11} parent=1 // loop_header_branch
      %12 = sbr.rel (%p10) target = $region8
    $region5: #{custom-call.11} parent=1 // loop_body
      %s14 = ssub.s32 %s9, 1
      %s15 = ssub.s32 %s9, 2
      %s16 = sadd.s32 %s9, 1
      %s17 = sshrl.u32 %s9, 3
      %s18 = sshrl.u32 %s16, 3
      %s19 = ssub.s32 %s17, %s18
      %p20 = scmp.eq.s32.totalorder %s19, 0
      %s22 = sadd.s32 %s21, 1
      %s23 = scalar_select %p20, %s21, %s22
      %p26 = pneg %p20
      %p27 = scmp.eq.s32.totalorder %s9, 1
      %p28 = por %p26, %p27
      %p29 = scmp.ne.s32.totalorder %s21, %s24
      %p30 = scmp.eq.s32.totalorder %s9, 0
      %p31 = por %p29, %p30
      %p32 = scmp.ne.s32.totalorder %s21, %s24
      %p33 = scmp.eq.s32.totalorder %s14, 1
      %p34 = por %p32, %p33
      %p35 = scmp.ne.s32.totalorder %s24, %s25
      %p36 = scmp.eq.s32.totalorder %s14, 0
      %p37 = por %p35, %p36
      %p38 = scmp.ne.s32.totalorder %s24, %s25
      %p39 = scmp.eq.s32.totalorder %s15, 1
      %p40 = por %p38, %p39
      %p42 = scmp.ne.s32.totalorder %s25, %s41
      %p43 = scmp.eq.s32.totalorder %s15, 0
      %p44 = por %p42, %p43
      %s45 = sshrl.u32 %s9, 3
      %s46 = sshrl.u32 %s16, 3
      %s47 = ssub.s32 %s45, %s46
      %p48 = scmp.eq.s32.totalorder %s47, 0
      %s50 = sadd.s32 %s49, 1
      %s51 = scalar_select %p48, %s49, %s50
      %p54 = pneg %p48
      %p55 = scmp.eq.s32.totalorder %s9, 1
      %p56 = por %p54, %p55
      %p57 = scmp.ne.s32.totalorder %s49, %s52
      %p58 = scmp.eq.s32.totalorder %s9, 0
      %p59 = por %p57, %p58
      %p60 = scmp.ne.s32.totalorder %s49, %s52
      %p61 = scmp.eq.s32.totalorder %s14, 1
      %p62 = por %p60, %p61
      %p63 = scmp.ne.s32.totalorder %s52, %s53
      %p64 = scmp.eq.s32.totalorder %s14, 0
      %p65 = por %p63, %p64
      %p66 = scmp.ne.s32.totalorder %s52, %s53
      %p67 = scmp.eq.s32.totalorder %s15, 1
      %p68 = por %p66, %p67
      %p70 = scmp.ne.s32.totalorder %s53, %s69
      %p71 = scmp.eq.s32.totalorder %s15, 0
      %p72 = por %p70, %p71
      %p73 = scmp.le.s32.totalorder 1, %s9
      %p74 = scmp.lt.s32.totalorder %s9, 3
      %p75 = pnand %p73, %p74
      %p76 = pneg %p75
      // Predicated region
      $region9: #{custom-call.11} parent=5 // pred_check
        _
      $region10: #{custom-call.11} parent=5 // pred_check_branch
        %78 = sbr.rel (%p75) target = $region12
      $region11: #{custom-call.11} parent=5 // pred_region
        %s79 = ssub.s32 %s9, 1
      $region12: #{custom-call.11} parent=5 // pred_fallthru
        _
      %p80 = scmp.lt.s32.totalorder %s9, 2
      // Predicated region
      $region13: #{custom-call.11} parent=5 // pred_check
        %p81 = pneg %p80
      $region14: #{custom-call.11} parent=5 // pred_check_branch
        %83 = sbr.rel (%p81) target = $region16
      $region15: #{custom-call.11} parent=5 // pred_region
        %s84 = sand.u32 %s9, 1
        %s85 = sand.u32 %s9, 1
        %s86 = smul.addr %s85, 8
        %s87 = scalar_lea.vmem [#allocation0], %s86
        %s88 = smul.addr %s9, 8
        %s89 = scalar_lea.vmem %s0, %s88
        // Predicated region
        $region17: #{custom-call.11} parent=15 // pred_check
          _
        $region18: #{custom-call.11} parent=15 // pred_check_branch
          %91 = sbr.rel (0) target = $region20
        $region19: #{custom-call.11} parent=15 // pred_region
          // Predicated region
          $region21: #{custom-call.11} parent=19 // pred_check
            _
          $region22: #{custom-call.11} parent=19 // pred_check_branch
            %93 = sbr.rel (0) target = $region24
          $region23: #{custom-call.11} parent=19 // pred_region
            // Predicated region
            $region36: #{custom-call.11} parent=23 // pred_check
              _
            $region37: #{custom-call.11} parent=23 // pred_check_branch
              %109 = sbr.rel (0) target = $region39
            $region38: #{custom-call.11} parent=23 // pred_region
              loop: start=0, step=1, limit=1
              $region40: #{custom-call.11} parent=38 // loop_pre_header
                _
              $region41: #{custom-call.11} parent=38 // loop_header
                %s111 = sphi 0, %s115
                %p112 = scmp.ge.s32.totalorder %s111, 1
                %s116 = sphi %s89, %s89
                %s117 = sphi %s87, %s87
              $region42: #{custom-call.11} parent=38 // loop_header_branch
                %114 = sbr.rel (%p112) target = $region46
              $region43: #{custom-call.11} parent=38 // loop_body
                %v118 = vld [vmem:[%s116] sm:$0xff]
                %119 = vst [vmem:[%s117] sm:$0xff] %v118
              $region44: #{custom-call.11} parent=38 // loop_footer
                %s115 = sadd.s32 1, %s111
              $region45: #{custom-call.11} parent=38 // loop_footer_branch
                %110 = sbr.rel target = $region41
              $region46: #{custom-call.11} parent=38 // loop_exit
                _
            $region39: #{custom-call.11} parent=23 // pred_fallthru
              _
            // Predicated region
            $region47: #{custom-call.11} parent=23 // pred_check
              _
            $region48: #{custom-call.11} parent=23 // pred_check_branch
              %121 = sbr.rel target = $region50
            $region49: #{custom-call.11} parent=23 // pred_region
              _
            $region50: #{custom-call.11} parent=23 // pred_fallthru
              _
          $region24: #{custom-call.11} parent=19 // pred_fallthru
            _
          // Predicated region
          $region25: #{custom-call.11} parent=19 // pred_check
            _
          $region26: #{custom-call.11} parent=19 // pred_check_branch
            %95 = sbr.rel target = $region28
          $region27: #{custom-call.11} parent=19 // pred_region
            %s97 = ssub.s32 256, 1
            loop: start=0, step=1, limit=1
            $region29: #{custom-call.11} parent=27 // loop_pre_header
              _
            $region30: #{custom-call.11} parent=27 // loop_header
              %s99 = sphi 0, %s103
              %p100 = scmp.ge.s32.totalorder %s99, 1
              %s104 = sphi %s89, %s89
              %s105 = sphi %s87, %s87
            $region31: #{custom-call.11} parent=27 // loop_header_branch
              %102 = sbr.rel (%p100) target = $region35
            $region32: #{custom-call.11} parent=27 // loop_body
              %v106 = vld [vmem:[%s104] sm:%s97]
              %107 = vst [vmem:[%s105] sm:%s97] %v106
            $region33: #{custom-call.11} parent=27 // loop_footer
              %s103 = sadd.s32 1, %s99
            $region34: #{custom-call.11} parent=27 // loop_footer_branch
              %98 = sbr.rel target = $region30
            $region35: #{custom-call.11} parent=27 // loop_exit
              _
          $region28: #{custom-call.11} parent=19 // pred_fallthru
            _
        $region20: #{custom-call.11} parent=15 // pred_fallthru
          _
        %122 = vnop
      $region16: #{custom-call.11} parent=5 // pred_fallthru
        _
      %p123 = scmp.le.s32.totalorder 1, %s9
      %p124 = scmp.lt.s32.totalorder %s9, 3
      %p125 = pnand %p123, %p124
      %p126 = pneg %p125
      // Predicated region
      $region51: #{custom-call.11} parent=5 // pred_check
        _
      $region52: #{custom-call.11} parent=5 // pred_check_branch
        %128 = sbr.rel (%p125) target = $region54
      $region53: #{custom-call.11} parent=5 // pred_region
        #allocation7 [shape = 's32[6,128]{1,0}', space=vmem, size = 0x1000, scoped, tag = 'scratch for permutations']
        %s129 = ssub.s32 %s9, 1
        %s130 = sand.u32 %s14, 1
        %s131 = sand.u32 %s14, 1
        %s132 = smul.addr %s131, 8
        %s133 = scalar_lea.vmem [#allocation0], %s132
        %s134 = sand.u32 %s14, 1
        %s135 = sand.u32 %s14, 1
        %s136 = smul.addr %s135, 8
        %s137 = scalar_lea.vmem [#allocation0], %s136
        %s138 = sand.u32 %s14, 1
        %s139 = sand.u32 %s14, 1
        %s140 = smul.addr %s139, 8
        %s141 = scalar_lea.vmem [#allocation1], %s140
        %p142 = pneg %p37
        %p143 = pneg %p34
        %s144 = sand.u32 %s24, 1
        %s145 = scalar_lea.sflag [#allocation4], %s144
        %s146 = sand.u32 %s24, 1
        %s147 = smul.addr %s146, 2
        %s148 = scalar_lea.vmem [#allocation3], %s147
        %p149 = pneg %p65
        %p150 = pneg %p62
        %s151 = sand.u32 %s52, 1
        %s152 = sand.u32 %s52, 1
        %s153 = smul.addr %s152, 2
        %s154 = scalar_lea.vmem [#allocation6], %s153
        %s155 = sshrl.u32 %s14, 3
        %s156 = sshrl.u32 %s14, 3
        %v157 = vld [vmem:[%s133] sm:$0xff]
        %158 = vst [vmem:[%s141] sm:$0xff] %v157
        %s159 = sand.u32 %s14, 7
        %s160 = scalar_lea.vmem [#allocation2], %s159
        %s161 = sand.u32 %s14, 7
        %s162 = scalar_lea.vmem [#allocation5], %s161
        %163 = vst [vmem:[%s160] sm:$0x1] 0
        %v164 = vlaneseq
        %v165 = vshrl.u32 %v164, 7
        %v166 = vmov %v165
        %168 = vst [vmem:[#allocation7] sm:$0xff] %v166
        loop: start=0, step=1, limit=6
        $region56: #{custom-call.11} parent=53 // loop_pre_header
          _
        $region57: #{custom-call.11} parent=53 // loop_header
          %s170 = sphi 0, %s174
          %p171 = scmp.ge.s32.totalorder %s170, 6
        $region58: #{custom-call.11} parent=53 // loop_header_branch
          %173 = sbr.rel (%p171) target = $region62
        $region59: #{custom-call.11} parent=53 // loop_body
          %v175 = vstv %s170
          %v176 = vlaneseq
          %v177 = vshrl.u32 %v176, 7
          %v178 = vmov %v177
          %v179 = vld [vmem:[%s141] sm:$0xff]
          %v180 = vand.u32 2147483647, %v179
          %v182 = vstv %s170
          %vm183 = vcmp.ge.s32.totalorder %v178, %v182
          %vm184 = vcmp.lt.s32.totalorder %v178, 6
          %vm185 = vmand %vm183, %vm184
          %vm186 = vcmp.lt.f32.partialorder -inf, %v180
          %vm187 = vmand %vm185, %vm186
          %v188 = vsel %vm187, %v178, %v175
          %v189 = vsel %vm187, %v180, -inf
          %v190 = vrot.slane %v189, 1
          %v191 = vrot.slane %v188, 1
          %vm192 = vcmp.ge.f32.partialorder %v190, %v189
          %v193 = vsel %vm192, %v190, %v189
          %v194 = vsel %vm192, %v191, %v188
          %v195 = vrot.slane %v190, 1
          %v196 = vrot.slane %v191, 1
          %vm197 = vcmp.ge.f32.partialorder %v195, %v193
          %v198 = vsel %vm197, %v195, %v193
          %v199 = vsel %vm197, %v196, %v194
          %v200 = vrot.slane %v195, 1
          %v201 = vrot.slane %v196, 1
          %vm202 = vcmp.ge.f32.partialorder %v200, %v198
          %v203 = vsel %vm202, %v200, %v198
          %v204 = vsel %vm202, %v201, %v199
          %v205 = vrot.slane %v200, 1
          %v206 = vrot.slane %v201, 1
          %vm207 = vcmp.ge.f32.partialorder %v205, %v203
          %v208 = vsel %vm207, %v205, %v203
          %v209 = vsel %vm207, %v206, %v204
          %v210 = vrot.slane %v205, 1
          %v211 = vrot.slane %v206, 1
          %vm212 = vcmp.ge.f32.partialorder %v210, %v208
          %v213 = vsel %vm212, %v210, %v208
          %v214 = vsel %vm212, %v211, %v209
          %v215 = vrot.slane %v210, 1
          %v216 = vrot.slane %v211, 1
          %vm217 = vcmp.ge.f32.partialorder %v215, %v213
          %v218 = vsel %vm217, %v215, %v213
          %v219 = vsel %vm217, %v216, %v214
          %v220 = vrot.slane %v215, 1
          %v221 = vrot.slane %v216, 1
          %vm222 = vcmp.ge.f32.partialorder %v220, %v218
          %v223 = vsel %vm222, %v220, %v218
          %v224 = vsel %vm222, %v221, %v219
          %s225 = ssub.s32 128, %s170
          %226 = vrot.lane.b32.xlu0 %v224, %s225
          %v227 = vpop.permute.xlu0 %226
          %s228 = vtos %v227
          %v229 = vstv %s170
          %v230 = vlaneseq
          %v231 = vand.u32 %v230, 127
          %vm232 = vcmp.eq.s32.totalorder %v231, %v229
          %v233 = vstv %s228
          %v234 = vld [vmem:[%s160] ss:$0 sm:$0xff]
          %v235 = vsel %vm232, %v233, %v234
          %236 = vst [vmem:[%s160] sm:$0x1] %v235
          %s237 = scalar_lea.vmem %s141, %s170 [#allocation1]
          %s238 = scalar_lea.vmem %s141, %s228 [#allocation1]
          %v239 = vld [vmem:[%s237] ss:$0 sm:$0xff]
          %v240 = vld [vmem:[%s238] ss:$0 sm:$0xff]
          %241 = vst [vmem:[%s238] sm:$0x1] %v239
          %242 = vst [vmem:[%s237] sm:$0x1] %v240
          %s243 = scalar_lea.vmem [#allocation7], %s170
          %s244 = scalar_lea.vmem [#allocation7], %s228
          %v245 = vld [vmem:[%s243] ss:$0 sm:$0xff]
          %v246 = vld [vmem:[%s244] ss:$0 sm:$0xff]
          %247 = vst [vmem:[%s244] sm:$0x1] %v245
          %248 = vst [vmem:[%s243] sm:$0x1] %v246
          %vm249 = vcmp.ne.f32.partialorder %v240, 0.0
          %vm250 = vmand %vm232, %vm249
          %v251 = vsel %vm250, %v240, 1.0
          %v252 = vlaneseq
          %v253 = vand.u32 %v252, 127
          %v254 = vstv %s170
          %vm255 = vcmp.gt.s32.totalorder %v253, %v254
          %v256 = vsel %vm255, %v240, 0.0
          %v257 = vlaneseq
          %v258 = vshrl.u32 %v257, 7
          %v259 = vmov %v258
          %v260 = vld [vmem:[%s141] sm:$0xff]
          %v262 = vstv %s170
          %vm263 = vcmp.gt.s32.totalorder %v259, %v262
          %v264 = vsel %vm263, %v251, 1.0
          %v265 = vrcp.pop %v264
          %v266 = vmul.f32 %v260, %v265
          %vm267 = vmand %vm263, %vm232
          %v268 = vsel %vm267, %v266, 0.0
          %269 = vadd.xlane.f32.xlu0 %v268
          %v270 = vpop.xlane.xlu0 %269
          %v271 = vmul.f32 %v270, %v256
          %v272 = vsub.f32 %v266, %v271
          %273 = vst [vmem:[%s141] sm:$0xff] %v272
        $region60: #{custom-call.11} parent=53 // loop_footer
          %s174 = sadd.s32 1, %s170
        $region61: #{custom-call.11} parent=53 // loop_footer_branch
          %169 = sbr.rel target = $region57
        $region62: #{custom-call.11} parent=53 // loop_exit
          _
        %v274 = vld [vmem:[#allocation7] sm:$0xff]
        %s275 = scalar_lea.vmem [#allocation7], 8
        %s276 = scalar_lea.vmem [#allocation7], 16
        %s277 = scalar_lea.vmem [#allocation7], 24
        %s278 = scalar_lea.vmem [#allocation7], 32
        %s279 = scalar_lea.vmem [#allocation7], 40
        %s280 = scalar_lea.vmem [#allocation7], 48
        %s281 = scalar_lea.vmem [#allocation7], 56
        %s282 = scalar_lea.vmem [#allocation7], 64
        %s283 = scalar_lea.vmem [#allocation7], 72
        %s284 = scalar_lea.vmem [#allocation7], 80
        %s285 = scalar_lea.vmem [#allocation7], 88
        %s286 = scalar_lea.vmem [#allocation7], 96
        %s287 = scalar_lea.vmem [#allocation7], 104
        %s288 = scalar_lea.vmem [#allocation7], 112
        %s289 = scalar_lea.vmem [#allocation7], 120
        %290 = vxpose.xlu0.b32.start [1/16] %v274, 128
        %291 = vxpose.xlu0.b32.cont [2/16] 0, 128
        %292 = vxpose.xlu0.b32.cont [3/16] 0, 128
        %293 = vxpose.xlu0.b32.cont [4/16] 0, 128
        %294 = vxpose.xlu0.b32.cont [5/16] 0, 128
        %295 = vxpose.xlu0.b32.cont [6/16] 0, 128
        %296 = vxpose.xlu0.b32.cont [7/16] 0, 128
        %297 = vxpose.xlu0.b32.cont [8/16] 0, 128
        %298 = vxpose.xlu0.b32.cont [9/16] 0, 128
        %299 = vxpose.xlu0.b32.cont [10/16] 0, 128
        %300 = vxpose.xlu0.b32.cont [11/16] 0, 128
        %301 = vxpose.xlu0.b32.cont [12/16] 0, 128
        %302 = vxpose.xlu0.b32.cont [13/16] 0, 128
        %303 = vxpose.xlu0.b32.cont [14/16] 0, 128
        %304 = vxpose.xlu0.b32.cont [15/16] 0, 128
        %305 = vxpose.xlu0.b32.end [16/16] 0, 128
        %v306 = vpop.trf.xlu0
        %v307 = vpop.trf.xlu0
        %v308 = vpop.trf.xlu0
        %v309 = vpop.trf.xlu0
        %v310 = vpop.trf.xlu0
        %v311 = vpop.trf.xlu0
        %v312 = vpop.trf.xlu0
        %v313 = vpop.trf.xlu0
        %v314 = vpop.trf.xlu0
        %v315 = vpop.trf.xlu0
        %v316 = vpop.trf.xlu0
        %v317 = vpop.trf.xlu0
        %v318 = vpop.trf.xlu0
        %v319 = vpop.trf.xlu0
        %v320 = vpop.trf.xlu0
        %v321 = vpop.trf.xlu0
        %322 = vst [vmem:[%s162] sm:$0x1] %v306
        %s324 = sshll.u32 1, 2
        %s325 = ssub.s32 %s324, 1
        %v327 = vld [vmem:[#allocation2] sm:%s325]
        %s328 = sshll.u32 1, 2
        %s329 = ssub.s32 %s328, 1
        %330 = vst [vmem:[%s148] sm:%s329] %v327
        %s332 = sshll.u32 1, 2
        %s333 = ssub.s32 %s332, 1
        %v335 = vld [vmem:[#allocation5] sm:%s333]
        %s336 = sshll.u32 1, 2
        %s337 = ssub.s32 %s336, 1
        %338 = vst [vmem:[%s154] sm:%s337] %v335
        %s339 = sand.u32 %s14, 1
        %s340 = sand.u32 %s14, 1
        %s341 = smul.addr %s340, 8
        %s342 = scalar_lea.vmem [#allocation1], %s341
        %s343 = sand.u32 %s24, 1
        %s344 = scalar_lea.sflag [#allocation4], %s343
        %s345 = sand.u32 %s24, 1
        %s346 = smul.addr %s345, 2
        %s347 = scalar_lea.vmem [#allocation3], %s346
        %s348 = sand.u32 %s52, 1
        %s349 = sand.u32 %s52, 1
        %s350 = smul.addr %s349, 2
        %s351 = scalar_lea.vmem [#allocation6], %s350
        %s352 = smul.addr %s14, 8
        %s353 = scalar_lea.vmem %s1, %s352
        // Predicated region
        $region63: #{custom-call.11} parent=53 // pred_check
          _
        $region64: #{custom-call.11} parent=53 // pred_check_branch
          %355 = sbr.rel (0) target = $region66
        $region65: #{custom-call.11} parent=53 // pred_region
          // Predicated region
          $region67: #{custom-call.11} parent=65 // pred_check
            _
          $region68: #{custom-call.11} parent=65 // pred_check_branch
            %357 = sbr.rel (0) target = $region70
          $region69: #{custom-call.11} parent=65 // pred_region
            // Predicated region
            $region82: #{custom-call.11} parent=69 // pred_check
              _
            $region83: #{custom-call.11} parent=69 // pred_check_branch
              %373 = sbr.rel (0) target = $region85
            $region84: #{custom-call.11} parent=69 // pred_region
              loop: start=0, step=1, limit=1
              $region86: #{custom-call.11} parent=84 // loop_pre_header
                _
              $region87: #{custom-call.11} parent=84 // loop_header
                %s375 = sphi 0, %s379
                %p376 = scmp.ge.s32.totalorder %s375, 1
                %s380 = sphi %s342, %s342
                %s381 = sphi %s353, %s353
              $region88: #{custom-call.11} parent=84 // loop_header_branch
                %378 = sbr.rel (%p376) target = $region92
              $region89: #{custom-call.11} parent=84 // loop_body
                %v382 = vld [vmem:[%s380] sm:$0xff]
                %383 = vst [vmem:[%s381] sm:$0xff] %v382
              $region90: #{custom-call.11} parent=84 // loop_footer
                %s379 = sadd.s32 1, %s375
              $region91: #{custom-call.11} parent=84 // loop_footer_branch
                %374 = sbr.rel target = $region87
              $region92: #{custom-call.11} parent=84 // loop_exit
                _
            $region85: #{custom-call.11} parent=69 // pred_fallthru
              _
            // Predicated region
            $region93: #{custom-call.11} parent=69 // pred_check
              _
            $region94: #{custom-call.11} parent=69 // pred_check_branch
              %385 = sbr.rel target = $region96
            $region95: #{custom-call.11} parent=69 // pred_region
              _
            $region96: #{custom-call.11} parent=69 // pred_fallthru
              _
          $region70: #{custom-call.11} parent=65 // pred_fallthru
            _
          // Predicated region
          $region71: #{custom-call.11} parent=65 // pred_check
            _
          $region72: #{custom-call.11} parent=65 // pred_check_branch
            %359 = sbr.rel target = $region74
          $region73: #{custom-call.11} parent=65 // pred_region
            %s361 = ssub.s32 256, 1
            loop: start=0, step=1, limit=1
            $region75: #{custom-call.11} parent=73 // loop_pre_header
              _
            $region76: #{custom-call.11} parent=73 // loop_header
              %s363 = sphi 0, %s367
              %p364 = scmp.ge.s32.totalorder %s363, 1
              %s368 = sphi %s342, %s342
              %s369 = sphi %s353, %s353
            $region77: #{custom-call.11} parent=73 // loop_header_branch
              %366 = sbr.rel (%p364) target = $region81
            $region78: #{custom-call.11} parent=73 // loop_body
              %v370 = vld [vmem:[%s368] sm:%s361]
              %371 = vst [vmem:[%s369] sm:%s361] %v370
            $region79: #{custom-call.11} parent=73 // loop_footer
              %s367 = sadd.s32 1, %s363
            $region80: #{custom-call.11} parent=73 // loop_footer_branch
              %362 = sbr.rel target = $region76
            $region81: #{custom-call.11} parent=73 // loop_exit
              _
          $region74: #{custom-call.11} parent=65 // pred_fallthru
            _
        $region66: #{custom-call.11} parent=53 // pred_fallthru
          _
        %386 = vnop
        // Predicated region
        $region97: #{custom-call.11} parent=53 // pred_check
          %p387 = pneg %p34
        $region98: #{custom-call.11} parent=53 // pred_check_branch
          %389 = sbr.rel (%p387) target = $region100
        $region99: #{custom-call.11} parent=53 // pred_region
          %s390 = sshrl.u32 %s14, 3
          %s392 = ssub.s32 32, 32
          %393 = vsyncadd %s344, %s392
          %s394 = smul.addr %s390, 32
          %s395 = scalar_lea.hbm %s2, %s394
          %s397 = sshll.u32 %s347, 4
          %s398 = int_to_ptr.vmem [resolvable:$true] %s397
          %400 = dma.vmem_to_hbm [thread:$0]  %s398, 32, %s395, %s344
        $region100: #{custom-call.11} parent=53 // pred_fallthru
          _
        // Predicated region
        $region101: #{custom-call.11} parent=53 // pred_check
          %p401 = pneg %p62
        $region102: #{custom-call.11} parent=53 // pred_check_branch
          %403 = sbr.rel (%p401) target = $region104
        $region103: #{custom-call.11} parent=53 // pred_region
          %s404 = sshrl.u32 %s14, 3
          %s405 = smul.addr %s404, 2
          %s406 = scalar_lea.vmem %s3, %s405
          // Predicated region
          $region105: #{custom-call.11} parent=103 // pred_check
            _
          $region106: #{custom-call.11} parent=103 // pred_check_branch
            %408 = sbr.rel (0) target = $region108
          $region107: #{custom-call.11} parent=103 // pred_region
            // Predicated region
            $region109: #{custom-call.11} parent=107 // pred_check
              _
            $region110: #{custom-call.11} parent=107 // pred_check_branch
              %410 = sbr.rel target = $region112
            $region111: #{custom-call.11} parent=107 // pred_region
              // Predicated region
              $region124: #{custom-call.11} parent=111 // pred_check
                _
              $region125: #{custom-call.11} parent=111 // pred_check_branch
                %426 = sbr.rel (0) target = $region127
              $region126: #{custom-call.11} parent=111 // pred_region
                %s428 = ssub.s32 4, 1
                loop: start=0, step=1, limit=1
                $region128: #{custom-call.11} parent=126 // loop_pre_header
                  _
                $region129: #{custom-call.11} parent=126 // loop_header
                  %s430 = sphi 0, %s434
                  %p431 = scmp.ge.s32.totalorder %s430, 1
                  %s435 = sphi %s351, %s351
                  %s436 = sphi %s406, %s406
                $region130: #{custom-call.11} parent=126 // loop_header_branch
                  %433 = sbr.rel (%p431) target = $region134
                $region131: #{custom-call.11} parent=126 // loop_body
                  %v437 = vld [vmem:[%s435] sm:%s428]
                  %438 = vst [vmem:[%s436] sm:%s428] %v437
                $region132: #{custom-call.11} parent=126 // loop_footer
                  %s434 = sadd.s32 1, %s430
                $region133: #{custom-call.11} parent=126 // loop_footer_branch
                  %429 = sbr.rel target = $region129
                $region134: #{custom-call.11} parent=126 // loop_exit
                  _
              $region127: #{custom-call.11} parent=111 // pred_fallthru
                _
            $region112: #{custom-call.11} parent=107 // pred_fallthru
              _
            // Predicated region
            $region113: #{custom-call.11} parent=107 // pred_check
              _
            $region114: #{custom-call.11} parent=107 // pred_check_branch
              %412 = sbr.rel (0) target = $region116
            $region115: #{custom-call.11} parent=107 // pred_region
              %s414 = ssub.s32 4, 1
              loop: start=0, step=1, limit=1
              $region117: #{custom-call.11} parent=115 // loop_pre_header
                _
              $region118: #{custom-call.11} parent=115 // loop_header
                %s416 = sphi 0, %s420
                %p417 = scmp.ge.s32.totalorder %s416, 1
                %s421 = sphi %s351, %s351
                %s422 = sphi %s406, %s406
              $region119: #{custom-call.11} parent=115 // loop_header_branch
                %419 = sbr.rel (%p417) target = $region123
              $region120: #{custom-call.11} parent=115 // loop_body
                %v423 = vld [vmem:[%s421] sm:%s414]
                %424 = vst [vmem:[%s422] sm:%s414] %v423
              $region121: #{custom-call.11} parent=115 // loop_footer
                %s420 = sadd.s32 1, %s416
              $region122: #{custom-call.11} parent=115 // loop_footer_branch
                %415 = sbr.rel target = $region118
              $region123: #{custom-call.11} parent=115 // loop_exit
                _
            $region116: #{custom-call.11} parent=107 // pred_fallthru
              _
          $region108: #{custom-call.11} parent=103 // pred_fallthru
            _
          %439 = vnop
        $region104: #{custom-call.11} parent=53 // pred_fallthru
          _
      $region54: #{custom-call.11} parent=5 // pred_fallthru
        _
      %p440 = scmp.le.s32.totalorder 2, %s9
      // Predicated region
      $region135: #{custom-call.11} parent=5 // pred_check
        %p441 = pneg %p440
      $region136: #{custom-call.11} parent=5 // pred_check_branch
        %443 = sbr.rel (%p441) target = $region138
      $region137: #{custom-call.11} parent=5 // pred_region
        %s444 = ssub.s32 %s9, 2
        %s445 = sand.u32 %s15, 1
        %s446 = sand.u32 %s15, 1
        %s447 = smul.addr %s446, 8
        %s448 = scalar_lea.vmem [#allocation1], %s447
        // Predicated region
        $region139: #{custom-call.11} parent=137 // pred_check
          %p449 = pneg %p40
        $region140: #{custom-call.11} parent=137 // pred_check_branch
          %451 = sbr.rel (%p449) target = $region142
        $region141: #{custom-call.11} parent=137 // pred_region
          %s452 = sand.u32 %s25, 1
          %s453 = scalar_lea.sflag [#allocation4], %s452
          %s454 = sand.u32 %s25, 1
          %s455 = smul.addr %s454, 2
          %s456 = scalar_lea.vmem [#allocation3], %s455
          %457 = dma.done %s453, 32
        $region142: #{custom-call.11} parent=137 // pred_fallthru
          _
        // Predicated region
        $region143: #{custom-call.11} parent=137 // pred_check
          %p458 = pneg %p68
        $region144: #{custom-call.11} parent=137 // pred_check_branch
          %460 = sbr.rel (%p458) target = $region146
        $region145: #{custom-call.11} parent=137 // pred_region
          %s461 = sand.u32 %s53, 1
          %s462 = sand.u32 %s53, 1
          %s463 = smul.addr %s462, 2
          %s464 = scalar_lea.vmem [#allocation6], %s463
        $region146: #{custom-call.11} parent=137 // pred_fallthru
          _
      $region138: #{custom-call.11} parent=5 // pred_fallthru
        _
    $region6: #{custom-call.11} parent=1 // loop_footer
      %s13 = sadd.s32 1, %s9
    $region7: #{custom-call.11} parent=1 // loop_footer_branch
      %8 = sbr.rel target = $region3
    $region8: #{custom-call.11} parent=1 // loop_exit
      _
    %465 = vsyncpa [#allocation4], 1
    %s466 = scalar_lea.sflag [#allocation4], 1
    %467 = vsyncpa %s466, 1

// kernel: custom-call.13
$region0: #{custom-call.13}
  %s0 = inlined_call_operand.vmem [shape: f32[2,1,6,6], index: 0, kind: input, shape index: {}]
  %s1 = inlined_call_operand.vmem [shape: f32[2,1,6,6], index: 1, kind: output, shape index: {}]
  $region1: #{custom-call.13} parent=0
    #allocation0 [shape = 'u8[8192]{0}', space=vmem, size = 0x2000, scoped, tag = 'operand span for operand 0']
    #allocation1 [shape = 'u8[8192]{0}', space=vmem, size = 0x2000, scoped, tag = 'operand span for operand 1']
    loop: start=0, step=1, limit=4
    $region2: #{custom-call.13} parent=1 // loop_pre_header
      _
    $region3: #{custom-call.13} parent=1 // loop_header
      %s3 = sphi 0, %s7
      %p4 = scmp.ge.s32.totalorder %s3, 4
      %s10 = sphi 0, %s36
      %s11 = sphi 0, %s32
      %s12 = sphi 0, %s28
      %s13 = sphi 0, %s24
      %s14 = sphi 0, %s10
      %s15 = sphi 0, %s11
      %s16 = sphi 0, %s12
      %s17 = sphi 0, %s13
      %s18 = sphi 0, %s14
      %s19 = sphi 0, %s15
      %s20 = sphi 0, %s16
      %s21 = sphi 0, %s17
    $region4: #{custom-call.13} parent=1 // loop_header_branch
      %6 = sbr.rel (%p4) target = $region8
    $region5: #{custom-call.13} parent=1 // loop_body
      %s8 = ssub.s32 %s3, 1
      %s9 = ssub.s32 %s3, 2
      %s22 = sadd.s32 1, %s13
      %p23 = scmp.ge.s32.totalorder %s22, 1
      %s24 = scalar_select %p23, 0, %s22
      %s25 = sadd.s32 1, %s12
      %s26 = scalar_select %p23, %s25, %s12
      %p27 = scmp.ge.s32.totalorder %s26, 1
      %s28 = scalar_select %p27, 0, %s26
      %s29 = sadd.s32 1, %s11
      %s30 = scalar_select %p27, %s29, %s11
      %p31 = scmp.ge.s32.totalorder %s30, 1
      %s32 = scalar_select %p31, 0, %s30
      %s33 = sadd.s32 1, %s10
      %s34 = scalar_select %p31, %s33, %s10
      %p35 = scmp.ge.s32.totalorder %s34, 2
      %s36 = scalar_select %p35, 0, %s34
      %p37 = scmp.le.s32.totalorder 1, %s3
      %p38 = scmp.lt.s32.totalorder %s3, 3
      %p39 = pnand %p37, %p38
      %p40 = pneg %p39
      // Predicated region
      $region9: #{custom-call.13} parent=5 // pred_check
        _
      $region10: #{custom-call.13} parent=5 // pred_check_branch
        %42 = sbr.rel (%p39) target = $region12
      $region11: #{custom-call.13} parent=5 // pred_region
        %s43 = ssub.s32 %s3, 1
      $region12: #{custom-call.13} parent=5 // pred_fallthru
        _
      %p44 = scmp.lt.s32.totalorder %s3, 2
      // Predicated region
      $region13: #{custom-call.13} parent=5 // pred_check
        %p45 = pneg %p44
      $region14: #{custom-call.13} parent=5 // pred_check_branch
        %47 = sbr.rel (%p45) target = $region16
      $region15: #{custom-call.13} parent=5 // pred_region
        %s48 = sand.u32 %s3, 1
        %s49 = sand.u32 %s3, 1
        %s50 = smul.addr %s49, 8
        %s51 = scalar_lea.vmem [#allocation0], %s50
        %s52 = sadd.s32 %s13, %s12
        %s53 = sadd.s32 %s52, %s11
        %s54 = sadd.s32 %s53, %s10
        %s55 = smul.addr %s54, 8
        %s56 = scalar_lea.vmem %s0, %s55
        // Predicated region
        $region17: #{custom-call.13} parent=15 // pred_check
          _
        $region18: #{custom-call.13} parent=15 // pred_check_branch
          %58 = sbr.rel (0) target = $region20
        $region19: #{custom-call.13} parent=15 // pred_region
          // Predicated region
          $region21: #{custom-call.13} parent=19 // pred_check
            _
          $region22: #{custom-call.13} parent=19 // pred_check_branch
            %60 = sbr.rel (0) target = $region24
          $region23: #{custom-call.13} parent=19 // pred_region
            // Predicated region
            $region36: #{custom-call.13} parent=23 // pred_check
              _
            $region37: #{custom-call.13} parent=23 // pred_check_branch
              %76 = sbr.rel (0) target = $region39
            $region38: #{custom-call.13} parent=23 // pred_region
              loop: start=0, step=1, limit=1
              $region40: #{custom-call.13} parent=38 // loop_pre_header
                _
              $region41: #{custom-call.13} parent=38 // loop_header
                %s78 = sphi 0, %s82
                %p79 = scmp.ge.s32.totalorder %s78, 1
                %s83 = sphi %s56, %s56
                %s84 = sphi %s51, %s51
              $region42: #{custom-call.13} parent=38 // loop_header_branch
                %81 = sbr.rel (%p79) target = $region46
              $region43: #{custom-call.13} parent=38 // loop_body
                %v85 = vld [vmem:[%s83] sm:$0xff]
                %86 = vst [vmem:[%s84] sm:$0xff] %v85
              $region44: #{custom-call.13} parent=38 // loop_footer
                %s82 = sadd.s32 1, %s78
              $region45: #{custom-call.13} parent=38 // loop_footer_branch
                %77 = sbr.rel target = $region41
              $region46: #{custom-call.13} parent=38 // loop_exit
                _
            $region39: #{custom-call.13} parent=23 // pred_fallthru
              _
            // Predicated region
            $region47: #{custom-call.13} parent=23 // pred_check
              _
            $region48: #{custom-call.13} parent=23 // pred_check_branch
              %88 = sbr.rel target = $region50
            $region49: #{custom-call.13} parent=23 // pred_region
              _
            $region50: #{custom-call.13} parent=23 // pred_fallthru
              _
          $region24: #{custom-call.13} parent=19 // pred_fallthru
            _
          // Predicated region
          $region25: #{custom-call.13} parent=19 // pred_check
            _
          $region26: #{custom-call.13} parent=19 // pred_check_branch
            %62 = sbr.rel target = $region28
          $region27: #{custom-call.13} parent=19 // pred_region
            %s64 = ssub.s32 256, 1
            loop: start=0, step=1, limit=1
            $region29: #{custom-call.13} parent=27 // loop_pre_header
              _
            $region30: #{custom-call.13} parent=27 // loop_header
              %s66 = sphi 0, %s70
              %p67 = scmp.ge.s32.totalorder %s66, 1
              %s71 = sphi %s56, %s56
              %s72 = sphi %s51, %s51
            $region31: #{custom-call.13} parent=27 // loop_header_branch
              %69 = sbr.rel (%p67) target = $region35
            $region32: #{custom-call.13} parent=27 // loop_body
              %v73 = vld [vmem:[%s71] sm:%s64]
              %74 = vst [vmem:[%s72] sm:%s64] %v73
            $region33: #{custom-call.13} parent=27 // loop_footer
              %s70 = sadd.s32 1, %s66
            $region34: #{custom-call.13} parent=27 // loop_footer_branch
              %65 = sbr.rel target = $region30
            $region35: #{custom-call.13} parent=27 // loop_exit
              _
          $region28: #{custom-call.13} parent=19 // pred_fallthru
            _
        $region20: #{custom-call.13} parent=15 // pred_fallthru
          _
        %89 = vnop
      $region16: #{custom-call.13} parent=5 // pred_fallthru
        _
      %p90 = scmp.le.s32.totalorder 1, %s3
      %p91 = scmp.lt.s32.totalorder %s3, 3
      %p92 = pnand %p90, %p91
      %p93 = pneg %p92
      // Predicated region
      $region51: #{custom-call.13} parent=5 // pred_check
        _
      $region52: #{custom-call.13} parent=5 // pred_check_branch
        %95 = sbr.rel (%p92) target = $region54
      $region53: #{custom-call.13} parent=5 // pred_region
        #allocation2 [shape = 'f32[6,6]{1,0}', space=vmem, size = 0x1000, scoped, tag = 'rescaled input a']
        %s96 = ssub.s32 %s3, 1
        %s97 = sand.u32 %s8, 1
        %s98 = sand.u32 %s8, 1
        %s99 = smul.addr %s98, 8
        %s100 = scalar_lea.vmem [#allocation0], %s99
        %s101 = sand.u32 %s8, 1
        %s102 = sand.u32 %s8, 1
        %s103 = smul.addr %s102, 8
        %s104 = scalar_lea.vmem [#allocation0], %s103
        %s105 = sand.u32 %s8, 1
        %s106 = sand.u32 %s8, 1
        %s107 = smul.addr %s106, 8
        %s108 = scalar_lea.vmem [#allocation1], %s107
        %v109 = vlaneseq
        %v110 = vand.u32 %v109, 127
        %vm111 = vcmp.lt.s32.totalorder %v110, 6
        %v112 = vlaneseq
        %v113 = vshrl.u32 %v112, 7
        %vm115 = vcmp.eq.s32.totalorder %v113, %v110
        %v116 = vld [vmem:[%s100] sm:$0xff]
        %v117 = vsel %vm115, %v116, 0.0
        %118 = vadd.xlane.f32.xlu0 %v117
        %v119 = vpop.xlane.xlu0 %118
        %vm120 = vcmp.ge.s32.totalorder %v113, %v110
        %vm121 = vmand %vm120, %vm111
        %v122 = vsel %vm121, %v116, 0.0
        %v123 = vrcp.pop %v119
        %v124 = vmul.f32 %v122, %v123
        %125 = vst [vmem:[#allocation2] sm:$0xff] %v124
        %v126 = vlaneseq
        %v127 = vand.u32 %v126, 127
        %v128 = vlaneseq
        %v129 = vshrl.u32 %v128, 7
        %vm131 = vcmp.eq.s32.totalorder %v127, %v129
        %v132 = vlaneseq
        %v133 = vand.u32 %v132, 127
        %vm134 = vcmp.eq.s32.totalorder %v133, 0
        %v135 = vsel %vm134, 1.0, -1.0
        %v136 = vsel %vm131, %v135, 0.0
        %s137 = scalar_lea.vmem [#allocation2], 1
        %v138 = vld [vmem:[%s137] ss:$0 sm:$0xff]
        %v139 = vxor.u32 %v138, 2147483648
        %v140 = vlaneseq
        %v141 = vand.u32 %v140, 127
        %vm142 = vcmp.eq.s32.totalorder %v141, 1
        %v143 = vmul.f32 %v139, %v136
        %144 = vadd.xlane.f32.xlu0 %v143
        %v145 = vpop.xlane.xlu0 %144
        %v146 = vsel %vm142, %v145, %v136
        %s147 = scalar_lea.vmem [#allocation2], 2
        %v148 = vld [vmem:[%s147] ss:$0 sm:$0xff]
        %v149 = vxor.u32 %v148, 2147483648
        %v150 = vlaneseq
        %v151 = vand.u32 %v150, 127
        %vm152 = vcmp.eq.s32.totalorder %v151, 2
        %v153 = vmul.f32 %v149, %v146
        %154 = vadd.xlane.f32.xlu0 %v153
        %v155 = vpop.xlane.xlu0 %154
        %v156 = vsel %vm152, %v155, %v146
        %s157 = scalar_lea.vmem [#allocation2], 3
        %v158 = vld [vmem:[%s157] ss:$0 sm:$0xff]
        %v159 = vxor.u32 %v158, 2147483648
        %v160 = vlaneseq
        %v161 = vand.u32 %v160, 127
        %vm162 = vcmp.eq.s32.totalorder %v161, 3
        %v163 = vmul.f32 %v159, %v156
        %164 = vadd.xlane.f32.xlu0 %v163
        %v165 = vpop.xlane.xlu0 %164
        %v166 = vsel %vm162, %v165, %v156
        %s167 = scalar_lea.vmem [#allocation2], 4
        %v168 = vld [vmem:[%s167] ss:$0 sm:$0xff]
        %v169 = vxor.u32 %v168, 2147483648
        %v170 = vlaneseq
        %v171 = vand.u32 %v170, 127
        %vm172 = vcmp.eq.s32.totalorder %v171, 4
        %v173 = vmul.f32 %v169, %v166
        %174 = vadd.xlane.f32.xlu0 %v173
        %v175 = vpop.xlane.xlu0 %174
        %v176 = vsel %vm172, %v175, %v166
        %s177 = scalar_lea.vmem [#allocation2], 5
        %v178 = vld [vmem:[%s177] ss:$0 sm:$0xff]
        %v179 = vxor.u32 %v178, 2147483648
        %v180 = vlaneseq
        %v181 = vand.u32 %v180, 127
        %vm182 = vcmp.eq.s32.totalorder %v181, 5
        %v183 = vmul.f32 %v179, %v176
        %184 = vadd.xlane.f32.xlu0 %v183
        %v185 = vpop.xlane.xlu0 %184
        %v186 = vsel %vm182, %v185, %v176
        %v187 = vrcp.pop %v119
        %v188 = vmul.f32 %v186, %v187
        %vm189 = vweird.f32 %v119
        %v190 = vsel %vm189, %v186, %v188
        %191 = vst [vmem:[%s108] sm:$0xff] %v190
        %s192 = sand.u32 %s8, 1
        %s193 = sand.u32 %s8, 1
        %s194 = smul.addr %s193, 8
        %s195 = scalar_lea.vmem [#allocation1], %s194
        %s196 = sadd.s32 %s17, %s16
        %s197 = sadd.s32 %s196, %s15
        %s198 = sadd.s32 %s197, %s14
        %s199 = smul.addr %s198, 8
        %s200 = scalar_lea.vmem %s1, %s199
        // Predicated region
        $region55: #{custom-call.13} parent=53 // pred_check
          _
        $region56: #{custom-call.13} parent=53 // pred_check_branch
          %202 = sbr.rel (0) target = $region58
        $region57: #{custom-call.13} parent=53 // pred_region
          // Predicated region
          $region59: #{custom-call.13} parent=57 // pred_check
            _
          $region60: #{custom-call.13} parent=57 // pred_check_branch
            %204 = sbr.rel (0) target = $region62
          $region61: #{custom-call.13} parent=57 // pred_region
            // Predicated region
            $region74: #{custom-call.13} parent=61 // pred_check
              _
            $region75: #{custom-call.13} parent=61 // pred_check_branch
              %220 = sbr.rel (0) target = $region77
            $region76: #{custom-call.13} parent=61 // pred_region
              loop: start=0, step=1, limit=1
              $region78: #{custom-call.13} parent=76 // loop_pre_header
                _
              $region79: #{custom-call.13} parent=76 // loop_header
                %s222 = sphi 0, %s226
                %p223 = scmp.ge.s32.totalorder %s222, 1
                %s227 = sphi %s195, %s195
                %s228 = sphi %s200, %s200
              $region80: #{custom-call.13} parent=76 // loop_header_branch
                %225 = sbr.rel (%p223) target = $region84
              $region81: #{custom-call.13} parent=76 // loop_body
                %v229 = vld [vmem:[%s227] sm:$0xff]
                %230 = vst [vmem:[%s228] sm:$0xff] %v229
              $region82: #{custom-call.13} parent=76 // loop_footer
                %s226 = sadd.s32 1, %s222
              $region83: #{custom-call.13} parent=76 // loop_footer_branch
                %221 = sbr.rel target = $region79
              $region84: #{custom-call.13} parent=76 // loop_exit
                _
            $region77: #{custom-call.13} parent=61 // pred_fallthru
              _
            // Predicated region
            $region85: #{custom-call.13} parent=61 // pred_check
              _
            $region86: #{custom-call.13} parent=61 // pred_check_branch
              %232 = sbr.rel target = $region88
            $region87: #{custom-call.13} parent=61 // pred_region
              _
            $region88: #{custom-call.13} parent=61 // pred_fallthru
              _
          $region62: #{custom-call.13} parent=57 // pred_fallthru
            _
          // Predicated region
          $region63: #{custom-call.13} parent=57 // pred_check
            _
          $region64: #{custom-call.13} parent=57 // pred_check_branch
            %206 = sbr.rel target = $region66
          $region65: #{custom-call.13} parent=57 // pred_region
            %s208 = ssub.s32 256, 1
            loop: start=0, step=1, limit=1
            $region67: #{custom-call.13} parent=65 // loop_pre_header
              _
            $region68: #{custom-call.13} parent=65 // loop_header
              %s210 = sphi 0, %s214
              %p211 = scmp.ge.s32.totalorder %s210, 1
              %s215 = sphi %s195, %s195
              %s216 = sphi %s200, %s200
            $region69: #{custom-call.13} parent=65 // loop_header_branch
              %213 = sbr.rel (%p211) target = $region73
            $region70: #{custom-call.13} parent=65 // loop_body
              %v217 = vld [vmem:[%s215] sm:%s208]
              %218 = vst [vmem:[%s216] sm:%s208] %v217
            $region71: #{custom-call.13} parent=65 // loop_footer
              %s214 = sadd.s32 1, %s210
            $region72: #{custom-call.13} parent=65 // loop_footer_branch
              %209 = sbr.rel target = $region68
            $region73: #{custom-call.13} parent=65 // loop_exit
              _
          $region66: #{custom-call.13} parent=57 // pred_fallthru
            _
        $region58: #{custom-call.13} parent=53 // pred_fallthru
          _
        %233 = vnop
      $region54: #{custom-call.13} parent=5 // pred_fallthru
        _
      %p234 = scmp.le.s32.totalorder 2, %s3
      // Predicated region
      $region89: #{custom-call.13} parent=5 // pred_check
        %p235 = pneg %p234
      $region90: #{custom-call.13} parent=5 // pred_check_branch
        %237 = sbr.rel (%p235) target = $region92
      $region91: #{custom-call.13} parent=5 // pred_region
        %s238 = ssub.s32 %s3, 2
        %s239 = sand.u32 %s9, 1
        %s240 = sand.u32 %s9, 1
        %s241 = smul.addr %s240, 8
        %s242 = scalar_lea.vmem [#allocation1], %s241
      $region92: #{custom-call.13} parent=5 // pred_fallthru
        _
    $region6: #{custom-call.13} parent=1 // loop_footer
      %s7 = sadd.s32 1, %s3
    $region7: #{custom-call.13} parent=1 // loop_footer_branch
      %2 = sbr.rel target = $region3
    $region8: #{custom-call.13} parent=1 // loop_exit
      _

// kernel: custom-call.12
$region0: #{custom-call.12}
  %s0 = inlined_call_operand.vmem [shape: f32[2,1,6,6], index: 0, kind: input, shape index: {}]
  %s1 = inlined_call_operand.vmem [shape: f32[2,1,6,6], index: 1, kind: output, shape index: {}]
  $region1: #{custom-call.12} parent=0
    #allocation0 [shape = 'u8[8192]{0}', space=vmem, size = 0x2000, scoped, tag = 'operand span for operand 0']
    #allocation1 [shape = 'u8[8192]{0}', space=vmem, size = 0x2000, scoped, tag = 'operand span for operand 1']
    loop: start=0, step=1, limit=4
    $region2: #{custom-call.12} parent=1 // loop_pre_header
      _
    $region3: #{custom-call.12} parent=1 // loop_header
      %s3 = sphi 0, %s7
      %p4 = scmp.ge.s32.totalorder %s3, 4
      %s10 = sphi 0, %s36
      %s11 = sphi 0, %s32
      %s12 = sphi 0, %s28
      %s13 = sphi 0, %s24
      %s14 = sphi 0, %s10
      %s15 = sphi 0, %s11
      %s16 = sphi 0, %s12
      %s17 = sphi 0, %s13
      %s18 = sphi 0, %s14
      %s19 = sphi 0, %s15
      %s20 = sphi 0, %s16
      %s21 = sphi 0, %s17
    $region4: #{custom-call.12} parent=1 // loop_header_branch
      %6 = sbr.rel (%p4) target = $region8
    $region5: #{custom-call.12} parent=1 // loop_body
      %s8 = ssub.s32 %s3, 1
      %s9 = ssub.s32 %s3, 2
      %s22 = sadd.s32 1, %s13
      %p23 = scmp.ge.s32.totalorder %s22, 1
      %s24 = scalar_select %p23, 0, %s22
      %s25 = sadd.s32 1, %s12
      %s26 = scalar_select %p23, %s25, %s12
      %p27 = scmp.ge.s32.totalorder %s26, 1
      %s28 = scalar_select %p27, 0, %s26
      %s29 = sadd.s32 1, %s11
      %s30 = scalar_select %p27, %s29, %s11
      %p31 = scmp.ge.s32.totalorder %s30, 1
      %s32 = scalar_select %p31, 0, %s30
      %s33 = sadd.s32 1, %s10
      %s34 = scalar_select %p31, %s33, %s10
      %p35 = scmp.ge.s32.totalorder %s34, 2
      %s36 = scalar_select %p35, 0, %s34
      %p37 = scmp.le.s32.totalorder 1, %s3
      %p38 = scmp.lt.s32.totalorder %s3, 3
      %p39 = pnand %p37, %p38
      %p40 = pneg %p39
      // Predicated region
      $region9: #{custom-call.12} parent=5 // pred_check
        _
      $region10: #{custom-call.12} parent=5 // pred_check_branch
        %42 = sbr.rel (%p39) target = $region12
      $region11: #{custom-call.12} parent=5 // pred_region
        %s43 = ssub.s32 %s3, 1
      $region12: #{custom-call.12} parent=5 // pred_fallthru
        _
      %p44 = scmp.lt.s32.totalorder %s3, 2
      // Predicated region
      $region13: #{custom-call.12} parent=5 // pred_check
        %p45 = pneg %p44
      $region14: #{custom-call.12} parent=5 // pred_check_branch
        %47 = sbr.rel (%p45) target = $region16
      $region15: #{custom-call.12} parent=5 // pred_region
        %s48 = sand.u32 %s3, 1
        %s49 = sand.u32 %s3, 1
        %s50 = smul.addr %s49, 8
        %s51 = scalar_lea.vmem [#allocation0], %s50
        %s52 = sadd.s32 %s13, %s12
        %s53 = sadd.s32 %s52, %s11
        %s54 = sadd.s32 %s53, %s10
        %s55 = smul.addr %s54, 8
        %s56 = scalar_lea.vmem %s0, %s55
        // Predicated region
        $region17: #{custom-call.12} parent=15 // pred_check
          _
        $region18: #{custom-call.12} parent=15 // pred_check_branch
          %58 = sbr.rel (0) target = $region20
        $region19: #{custom-call.12} parent=15 // pred_region
          // Predicated region
          $region21: #{custom-call.12} parent=19 // pred_check
            _
          $region22: #{custom-call.12} parent=19 // pred_check_branch
            %60 = sbr.rel (0) target = $region24
          $region23: #{custom-call.12} parent=19 // pred_region
            // Predicated region
            $region36: #{custom-call.12} parent=23 // pred_check
              _
            $region37: #{custom-call.12} parent=23 // pred_check_branch
              %76 = sbr.rel (0) target = $region39
            $region38: #{custom-call.12} parent=23 // pred_region
              loop: start=0, step=1, limit=1
              $region40: #{custom-call.12} parent=38 // loop_pre_header
                _
              $region41: #{custom-call.12} parent=38 // loop_header
                %s78 = sphi 0, %s82
                %p79 = scmp.ge.s32.totalorder %s78, 1
                %s83 = sphi %s56, %s56
                %s84 = sphi %s51, %s51
              $region42: #{custom-call.12} parent=38 // loop_header_branch
                %81 = sbr.rel (%p79) target = $region46
              $region43: #{custom-call.12} parent=38 // loop_body
                %v85 = vld [vmem:[%s83] sm:$0xff]
                %86 = vst [vmem:[%s84] sm:$0xff] %v85
              $region44: #{custom-call.12} parent=38 // loop_footer
                %s82 = sadd.s32 1, %s78
              $region45: #{custom-call.12} parent=38 // loop_footer_branch
                %77 = sbr.rel target = $region41
              $region46: #{custom-call.12} parent=38 // loop_exit
                _
            $region39: #{custom-call.12} parent=23 // pred_fallthru
              _
            // Predicated region
            $region47: #{custom-call.12} parent=23 // pred_check
              _
            $region48: #{custom-call.12} parent=23 // pred_check_branch
              %88 = sbr.rel target = $region50
            $region49: #{custom-call.12} parent=23 // pred_region
              _
            $region50: #{custom-call.12} parent=23 // pred_fallthru
              _
          $region24: #{custom-call.12} parent=19 // pred_fallthru
            _
          // Predicated region
          $region25: #{custom-call.12} parent=19 // pred_check
            _
          $region26: #{custom-call.12} parent=19 // pred_check_branch
            %62 = sbr.rel target = $region28
          $region27: #{custom-call.12} parent=19 // pred_region
            %s64 = ssub.s32 256, 1
            loop: start=0, step=1, limit=1
            $region29: #{custom-call.12} parent=27 // loop_pre_header
              _
            $region30: #{custom-call.12} parent=27 // loop_header
              %s66 = sphi 0, %s70
              %p67 = scmp.ge.s32.totalorder %s66, 1
              %s71 = sphi %s56, %s56
              %s72 = sphi %s51, %s51
            $region31: #{custom-call.12} parent=27 // loop_header_branch
              %69 = sbr.rel (%p67) target = $region35
            $region32: #{custom-call.12} parent=27 // loop_body
              %v73 = vld [vmem:[%s71] sm:%s64]
              %74 = vst [vmem:[%s72] sm:%s64] %v73
            $region33: #{custom-call.12} parent=27 // loop_footer
              %s70 = sadd.s32 1, %s66
            $region34: #{custom-call.12} parent=27 // loop_footer_branch
              %65 = sbr.rel target = $region30
            $region35: #{custom-call.12} parent=27 // loop_exit
              _
          $region28: #{custom-call.12} parent=19 // pred_fallthru
            _
        $region20: #{custom-call.12} parent=15 // pred_fallthru
          _
        %89 = vnop
      $region16: #{custom-call.12} parent=5 // pred_fallthru
        _
      %p90 = scmp.le.s32.totalorder 1, %s3
      %p91 = scmp.lt.s32.totalorder %s3, 3
      %p92 = pnand %p90, %p91
      %p93 = pneg %p92
      // Predicated region
      $region51: #{custom-call.12} parent=5 // pred_check
        _
      $region52: #{custom-call.12} parent=5 // pred_check_branch
        %95 = sbr.rel (%p92) target = $region54
      $region53: #{custom-call.12} parent=5 // pred_region
        #allocation2 [shape = 'f32[6,6]{1,0}', space=vmem, size = 0x1000, scoped, tag = 'rescaled input a']
        %s96 = ssub.s32 %s3, 1
        %s97 = sand.u32 %s8, 1
        %s98 = sand.u32 %s8, 1
        %s99 = smul.addr %s98, 8
        %s100 = scalar_lea.vmem [#allocation0], %s99
        %s101 = sand.u32 %s8, 1
        %s102 = sand.u32 %s8, 1
        %s103 = smul.addr %s102, 8
        %s104 = scalar_lea.vmem [#allocation0], %s103
        %s105 = sand.u32 %s8, 1
        %s106 = sand.u32 %s8, 1
        %s107 = smul.addr %s106, 8
        %s108 = scalar_lea.vmem [#allocation1], %s107
        %v109 = vlaneseq
        %v110 = vand.u32 %v109, 127
        %vm111 = vcmp.lt.s32.totalorder %v110, 6
        %v112 = vlaneseq
        %v113 = vshrl.u32 %v112, 7
        %vm115 = vcmp.eq.s32.totalorder %v113, %v110
        %v116 = vld [vmem:[%s100] sm:$0xff]
        %v117 = vsel %vm115, %v116, 0.0
        %118 = vadd.xlane.f32.xlu0 %v117
        %v119 = vpop.xlane.xlu0 %118
        %vm120 = vcmp.le.s32.totalorder %v113, %v110
        %vm121 = vmand %vm120, %vm111
        %v122 = vsel %vm121, %v116, 0.0
        %v123 = vrcp.pop %v119
        %v124 = vmul.f32 %v122, %v123
        %125 = vst [vmem:[#allocation2] sm:$0xff] %v124
        %v126 = vlaneseq
        %v127 = vand.u32 %v126, 127
        %v128 = vlaneseq
        %v129 = vshrl.u32 %v128, 7
        %vm131 = vcmp.eq.s32.totalorder %v127, %v129
        %v132 = vlaneseq
        %v133 = vand.u32 %v132, 127
        %vm134 = vcmp.eq.s32.totalorder %v133, 5
        %v135 = vsel %vm134, 1.0, -1.0
        %v136 = vsel %vm131, %v135, 0.0
        %s137 = scalar_lea.vmem [#allocation2], 4
        %v138 = vld [vmem:[%s137] ss:$0 sm:$0xff]
        %v139 = vxor.u32 %v138, 2147483648
        %v140 = vlaneseq
        %v141 = vand.u32 %v140, 127
        %vm142 = vcmp.eq.s32.totalorder %v141, 4
        %v143 = vmul.f32 %v139, %v136
        %144 = vadd.xlane.f32.xlu0 %v143
        %v145 = vpop.xlane.xlu0 %144
        %v146 = vsel %vm142, %v145, %v136
        %s147 = scalar_lea.vmem [#allocation2], 3
        %v148 = vld [vmem:[%s147] ss:$0 sm:$0xff]
        %v149 = vxor.u32 %v148, 2147483648
        %v150 = vlaneseq
        %v151 = vand.u32 %v150, 127
        %vm152 = vcmp.eq.s32.totalorder %v151, 3
        %v153 = vmul.f32 %v149, %v146
        %154 = vadd.xlane.f32.xlu0 %v153
        %v155 = vpop.xlane.xlu0 %154
        %v156 = vsel %vm152, %v155, %v146
        %s157 = scalar_lea.vmem [#allocation2], 2
        %v158 = vld [vmem:[%s157] ss:$0 sm:$0xff]
        %v159 = vxor.u32 %v158, 2147483648
        %v160 = vlaneseq
        %v161 = vand.u32 %v160, 127
        %vm162 = vcmp.eq.s32.totalorder %v161, 2
        %v163 = vmul.f32 %v159, %v156
        %164 = vadd.xlane.f32.xlu0 %v163
        %v165 = vpop.xlane.xlu0 %164
        %v166 = vsel %vm162, %v165, %v156
        %s167 = scalar_lea.vmem [#allocation2], 1
        %v168 = vld [vmem:[%s167] ss:$0 sm:$0xff]
        %v169 = vxor.u32 %v168, 2147483648
        %v170 = vlaneseq
        %v171 = vand.u32 %v170, 127
        %vm172 = vcmp.eq.s32.totalorder %v171, 1
        %v173 = vmul.f32 %v169, %v166
        %174 = vadd.xlane.f32.xlu0 %v173
        %v175 = vpop.xlane.xlu0 %174
        %v176 = vsel %vm172, %v175, %v166
        %v177 = vld [vmem:[#allocation2] ss:$0 sm:$0xff]
        %v178 = vxor.u32 %v177, 2147483648
        %v179 = vlaneseq
        %v180 = vand.u32 %v179, 127
        %vm181 = vcmp.eq.s32.totalorder %v180, 0
        %v182 = vmul.f32 %v178, %v176
        %183 = vadd.xlane.f32.xlu0 %v182
        %v184 = vpop.xlane.xlu0 %183
        %v185 = vsel %vm181, %v184, %v176
        %v186 = vrcp.pop %v119
        %v187 = vmul.f32 %v185, %v186
        %vm188 = vweird.f32 %v119
        %v189 = vsel %vm188, %v185, %v187
        %190 = vst [vmem:[%s108] sm:$0xff] %v189
        %s191 = sand.u32 %s8, 1
        %s192 = sand.u32 %s8, 1
        %s193 = smul.addr %s192, 8
        %s194 = scalar_lea.vmem [#allocation1], %s193
        %s195 = sadd.s32 %s17, %s16
        %s196 = sadd.s32 %s195, %s15
        %s197 = sadd.s32 %s196, %s14
        %s198 = smul.addr %s197, 8
        %s199 = scalar_lea.vmem %s1, %s198
        // Predicated region
        $region55: #{custom-call.12} parent=53 // pred_check
          _
        $region56: #{custom-call.12} parent=53 // pred_check_branch
          %201 = sbr.rel (0) target = $region58
        $region57: #{custom-call.12} parent=53 // pred_region
          // Predicated region
          $region59: #{custom-call.12} parent=57 // pred_check
            _
          $region60: #{custom-call.12} parent=57 // pred_check_branch
            %203 = sbr.rel (0) target = $region62
          $region61: #{custom-call.12} parent=57 // pred_region
            // Predicated region
            $region74: #{custom-call.12} parent=61 // pred_check
              _
            $region75: #{custom-call.12} parent=61 // pred_check_branch
              %219 = sbr.rel (0) target = $region77
            $region76: #{custom-call.12} parent=61 // pred_region
              loop: start=0, step=1, limit=1
              $region78: #{custom-call.12} parent=76 // loop_pre_header
                _
              $region79: #{custom-call.12} parent=76 // loop_header
                %s221 = sphi 0, %s225
                %p222 = scmp.ge.s32.totalorder %s221, 1
                %s226 = sphi %s194, %s194
                %s227 = sphi %s199, %s199
              $region80: #{custom-call.12} parent=76 // loop_header_branch
                %224 = sbr.rel (%p222) target = $region84
              $region81: #{custom-call.12} parent=76 // loop_body
                %v228 = vld [vmem:[%s226] sm:$0xff]
                %229 = vst [vmem:[%s227] sm:$0xff] %v228
              $region82: #{custom-call.12} parent=76 // loop_footer
                %s225 = sadd.s32 1, %s221
              $region83: #{custom-call.12} parent=76 // loop_footer_branch
                %220 = sbr.rel target = $region79
              $region84: #{custom-call.12} parent=76 // loop_exit
                _
            $region77: #{custom-call.12} parent=61 // pred_fallthru
              _
            // Predicated region
            $region85: #{custom-call.12} parent=61 // pred_check
              _
            $region86: #{custom-call.12} parent=61 // pred_check_branch
              %231 = sbr.rel target = $region88
            $region87: #{custom-call.12} parent=61 // pred_region
              _
            $region88: #{custom-call.12} parent=61 // pred_fallthru
              _
          $region62: #{custom-call.12} parent=57 // pred_fallthru
            _
          // Predicated region
          $region63: #{custom-call.12} parent=57 // pred_check
            _
          $region64: #{custom-call.12} parent=57 // pred_check_branch
            %205 = sbr.rel target = $region66
          $region65: #{custom-call.12} parent=57 // pred_region
            %s207 = ssub.s32 256, 1
            loop: start=0, step=1, limit=1
            $region67: #{custom-call.12} parent=65 // loop_pre_header
              _
            $region68: #{custom-call.12} parent=65 // loop_header
              %s209 = sphi 0, %s213
              %p210 = scmp.ge.s32.totalorder %s209, 1
              %s214 = sphi %s194, %s194
              %s215 = sphi %s199, %s199
            $region69: #{custom-call.12} parent=65 // loop_header_branch
              %212 = sbr.rel (%p210) target = $region73
            $region70: #{custom-call.12} parent=65 // loop_body
              %v216 = vld [vmem:[%s214] sm:%s207]
              %217 = vst [vmem:[%s215] sm:%s207] %v216
            $region71: #{custom-call.12} parent=65 // loop_footer
              %s213 = sadd.s32 1, %s209
            $region72: #{custom-call.12} parent=65 // loop_footer_branch
              %208 = sbr.rel target = $region68
            $region73: #{custom-call.12} parent=65 // loop_exit
              _
          $region66: #{custom-call.12} parent=57 // pred_fallthru
            _
        $region58: #{custom-call.12} parent=53 // pred_fallthru
          _
        %232 = vnop
      $region54: #{custom-call.12} parent=5 // pred_fallthru
        _
      %p233 = scmp.le.s32.totalorder 2, %s3
      // Predicated region
      $region89: #{custom-call.12} parent=5 // pred_check
        %p234 = pneg %p233
      $region90: #{custom-call.12} parent=5 // pred_check_branch
        %236 = sbr.rel (%p234) target = $region92
      $region91: #{custom-call.12} parent=5 // pred_region
        %s237 = ssub.s32 %s3, 2
        %s238 = sand.u32 %s9, 1
        %s239 = sand.u32 %s9, 1
        %s240 = smul.addr %s239, 8
        %s241 = scalar_lea.vmem [#allocation1], %s240
      $region92: #{custom-call.12} parent=5 // pred_fallthru
        _
    $region6: #{custom-call.12} parent=1 // loop_footer
      %s7 = sadd.s32 1, %s3
    $region7: #{custom-call.12} parent=1 // loop_footer_branch
      %2 = sbr.rel target = $region3
    $region8: #{custom-call.12} parent=1 // loop_exit
      _

// kernel: pointlk_forward.1
$region0: #{pointlk_forward.1}
  #allocation0 [shape = 'u32[]', space=smem, size = 0x4, offset = 0x4, fixed_abs, tag = 'smem constant byte address 0x4 - core index']
  #allocation1 [shape = 'u32[144,128]{1,0:T(1,128)}', space=vmem, size = 0x12000, scoped, tag = 'internal scratch']
  %s0 = inlined_call_operand.vmem [shape: f32[14,16,3], index: 0, kind: input, shape index: {}]
  %s1 = inlined_call_operand.vmem [shape: f32[14,4,128], index: 1, kind: input, shape index: {}]
  %s2 = inlined_call_operand.vmem [shape: f32[8,128], index: 2, kind: input, shape index: {}]
  %s3 = inlined_call_operand.vmem [shape: f32[128,128], index: 3, kind: input, shape index: {}]
  %s4 = inlined_call_operand.vmem [shape: f32[128,128], index: 4, kind: input, shape index: {}]
  %s5 = inlined_call_operand.vmem [shape: f32[14,128], index: 5, kind: output, shape index: {}]
  %s6 = sld [smem:[#allocation0]]
  $region30: #{pointlk_forward.1} parent=0
    _
  %s8 = ssub.s32 1, %s6
  %s9 = scalar_select 0, %s8, %s6
  // Predicated region
  $region2: #{pointlk_forward.1} parent=0 // pred_check
    _
  $region3: #{pointlk_forward.1} parent=0 // pred_check_branch
    %11 = sbr.rel (0) target = $region5
  $region4: #{pointlk_forward.1} parent=0 // pred_region
    _
  $region5: #{pointlk_forward.1} parent=0 // pred_fallthru
    _
  // Predicated region
  $region6: #{pointlk_forward.1} parent=0 // pred_check
    _
  $region7: #{pointlk_forward.1} parent=0 // pred_check_branch
    %13 = sbr.rel (0) target = $region9
  $region8: #{pointlk_forward.1} parent=0 // pred_region
    _
  $region9: #{pointlk_forward.1} parent=0 // pred_fallthru
    _
  // Predicated region
  $region10: #{pointlk_forward.1} parent=0 // pred_check
    _
  $region11: #{pointlk_forward.1} parent=0 // pred_check_branch
    %15 = sbr.rel (0) target = $region13
  $region12: #{pointlk_forward.1} parent=0 // pred_region
    _
  $region13: #{pointlk_forward.1} parent=0 // pred_fallthru
    _
  // Predicated region
  $region14: #{pointlk_forward.1} parent=0 // pred_check
    _
  $region15: #{pointlk_forward.1} parent=0 // pred_check_branch
    %17 = sbr.rel (0) target = $region17
  $region16: #{pointlk_forward.1} parent=0 // pred_region
    _
  $region17: #{pointlk_forward.1} parent=0 // pred_fallthru
    _
  // Predicated region
  $region18: #{pointlk_forward.1} parent=0 // pred_check
    _
  $region19: #{pointlk_forward.1} parent=0 // pred_check_branch
    %19 = sbr.rel (0) target = $region21
  $region20: #{pointlk_forward.1} parent=0 // pred_region
    _
  $region21: #{pointlk_forward.1} parent=0 // pred_fallthru
    _
  %v20 = vld [vmem:[%s0] sm:$0xff]
  %v21 = vld [vmem:[%s0 + $0x8] sm:$0xff]
  %v22 = vld [vmem:[%s0 + $0x10] sm:$0xff]
  %v23 = vld [vmem:[%s0 + $0x18] sm:$0xff]
  %v24 = vld [vmem:[%s0 + $0x20] sm:$0xff]
  %v25 = vld [vmem:[%s0 + $0x28] sm:$0xff]
  %v26 = vld [vmem:[%s0 + $0x30] sm:$0xff]
  %v27 = vld [vmem:[%s0 + $0x38] sm:$0xff]
  %v28 = vld [vmem:[%s0 + $0x40] sm:$0xff]
  %v29 = vld [vmem:[%s0 + $0x48] sm:$0xff]
  %v30 = vld [vmem:[%s0 + $0x50] sm:$0xff]
  %v31 = vld [vmem:[%s0 + $0x58] sm:$0xff]
  %v32 = vld [vmem:[%s0 + $0x60] sm:$0xff]
  %v33 = vld [vmem:[%s0 + $0x68] sm:$0xff]
  %v34 = vld [vmem:[%s0 + $0x70] sm:$0xff]
  %v35 = vld [vmem:[%s0 + $0x78] sm:$0xff]
  %v36 = vld [vmem:[%s0 + $0x80] sm:$0xff]
  %v37 = vld [vmem:[%s0 + $0x88] sm:$0xff]
  %v38 = vld [vmem:[%s0 + $0x90] sm:$0xff]
  %v39 = vld [vmem:[%s0 + $0x98] sm:$0xff]
  %v40 = vld [vmem:[%s0 + $0xa0] sm:$0xff]
  %v41 = vld [vmem:[%s0 + $0xa8] sm:$0xff]
  %v42 = vld [vmem:[%s0 + $0xb0] sm:$0xff]
  %v43 = vld [vmem:[%s0 + $0xb8] sm:$0xff]
  %v44 = vld [vmem:[%s0 + $0xc0] sm:$0xff]
  %v45 = vld [vmem:[%s0 + $0xc8] sm:$0xff]
  %v46 = vld [vmem:[%s0 + $0xd0] sm:$0xff]
  %v47 = vld [vmem:[%s0 + $0xd8] sm:$0xff]
  %v48 = vld [vmem:[%s1] sm:$0xf]
  %v49 = vld [vmem:[%s1 + $0x4] sm:$0xf]
  %v50 = vld [vmem:[%s1 + $0x8] sm:$0xf]
  %v51 = vld [vmem:[%s1 + $0xc] sm:$0xf]
  %v52 = vld [vmem:[%s1 + $0x10] sm:$0xf]
  %v53 = vld [vmem:[%s1 + $0x14] sm:$0xf]
  %v54 = vld [vmem:[%s1 + $0x18] sm:$0xf]
  %v55 = vld [vmem:[%s1 + $0x1c] sm:$0xf]
  %v56 = vld [vmem:[%s1 + $0x20] sm:$0xf]
  %v57 = vld [vmem:[%s1 + $0x24] sm:$0xf]
  %v58 = vld [vmem:[%s1 + $0x28] sm:$0xf]
  %v59 = vld [vmem:[%s1 + $0x2c] sm:$0xf]
  %v60 = vld [vmem:[%s1 + $0x30] sm:$0xf]
  %v61 = vld [vmem:[%s1 + $0x34] sm:$0xf]
  %63 = vset.pattern.permute.xlu0 0
  %64 = vperm.xlu0 %63, %v20
  %v65 = vpop.permute.xlu0 %64
  %68 = vset.pattern.permute.xlu0 0
  %69 = vperm.xlu0 %68, %v21
  %v70 = vpop.permute.xlu0 %69
  %73 = vset.pattern.permute.xlu0 0
  %74 = vperm.xlu0 %73, %v22
  %v75 = vpop.permute.xlu0 %74
  %78 = vset.pattern.permute.xlu0 0
  %79 = vperm.xlu0 %78, %v23
  %v80 = vpop.permute.xlu0 %79
  %83 = vset.pattern.permute.xlu0 0
  %84 = vperm.xlu0 %83, %v24
  %v85 = vpop.permute.xlu0 %84
  %88 = vset.pattern.permute.xlu0 0
  %89 = vperm.xlu0 %88, %v25
  %v90 = vpop.permute.xlu0 %89
  %93 = vset.pattern.permute.xlu0 0
  %94 = vperm.xlu0 %93, %v26
  %v95 = vpop.permute.xlu0 %94
  %98 = vset.pattern.permute.xlu0 0
  %99 = vperm.xlu0 %98, %v27
  %v100 = vpop.permute.xlu0 %99
  %103 = vset.pattern.permute.xlu0 0
  %104 = vperm.xlu0 %103, %v28
  %v105 = vpop.permute.xlu0 %104
  %108 = vset.pattern.permute.xlu0 0
  %109 = vperm.xlu0 %108, %v29
  %v110 = vpop.permute.xlu0 %109
  %113 = vset.pattern.permute.xlu0 0
  %114 = vperm.xlu0 %113, %v30
  %v115 = vpop.permute.xlu0 %114
  %118 = vset.pattern.permute.xlu0 0
  %119 = vperm.xlu0 %118, %v31
  %v120 = vpop.permute.xlu0 %119
  %123 = vset.pattern.permute.xlu0 0
  %124 = vperm.xlu0 %123, %v32
  %v125 = vpop.permute.xlu0 %124
  %128 = vset.pattern.permute.xlu0 0
  %129 = vperm.xlu0 %128, %v33
  %v130 = vpop.permute.xlu0 %129
  %133 = vset.pattern.permute.xlu0 0
  %134 = vperm.xlu0 %133, %v34
  %v135 = vpop.permute.xlu0 %134
  %138 = vset.pattern.permute.xlu0 0
  %139 = vperm.xlu0 %138, %v35
  %v140 = vpop.permute.xlu0 %139
  %143 = vset.pattern.permute.xlu0 0
  %144 = vperm.xlu0 %143, %v36
  %v145 = vpop.permute.xlu0 %144
  %148 = vset.pattern.permute.xlu0 0
  %149 = vperm.xlu0 %148, %v37
  %v150 = vpop.permute.xlu0 %149
  %153 = vset.pattern.permute.xlu0 0
  %154 = vperm.xlu0 %153, %v38
  %v155 = vpop.permute.xlu0 %154
  %158 = vset.pattern.permute.xlu0 0
  %159 = vperm.xlu0 %158, %v39
  %v160 = vpop.permute.xlu0 %159
  %163 = vset.pattern.permute.xlu0 0
  %164 = vperm.xlu0 %163, %v40
  %v165 = vpop.permute.xlu0 %164
  %168 = vset.pattern.permute.xlu0 0
  %169 = vperm.xlu0 %168, %v41
  %v170 = vpop.permute.xlu0 %169
  %173 = vset.pattern.permute.xlu0 0
  %174 = vperm.xlu0 %173, %v42
  %v175 = vpop.permute.xlu0 %174
  %178 = vset.pattern.permute.xlu0 0
  %179 = vperm.xlu0 %178, %v43
  %v180 = vpop.permute.xlu0 %179
  %183 = vset.pattern.permute.xlu0 0
  %184 = vperm.xlu0 %183, %v44
  %v185 = vpop.permute.xlu0 %184
  %188 = vset.pattern.permute.xlu0 0
  %189 = vperm.xlu0 %188, %v45
  %v190 = vpop.permute.xlu0 %189
  %193 = vset.pattern.permute.xlu0 0
  %194 = vperm.xlu0 %193, %v46
  %v195 = vpop.permute.xlu0 %194
  %198 = vset.pattern.permute.xlu0 0
  %199 = vperm.xlu0 %198, %v47
  %v200 = vpop.permute.xlu0 %199
  %v202 = vlaneseq
  %v203 = vshrl.u32 %v202, 7
  %v204 = vsub.s32 0, %v203
  %v205 = vrot.slane %v48, %v204
  %v206 = vlaneseq
  %v207 = vshrl.u32 %v206, 7
  %v208 = vsub.s32 0, %v207
  %v209 = vrot.slane %v49, %v208
  %v210 = vlaneseq
  %v211 = vshrl.u32 %v210, 7
  %v212 = vsub.s32 0, %v211
  %v213 = vrot.slane %v50, %v212
  %v214 = vlaneseq
  %v215 = vshrl.u32 %v214, 7
  %v216 = vsub.s32 0, %v215
  %v217 = vrot.slane %v51, %v216
  %v218 = vlaneseq
  %v219 = vshrl.u32 %v218, 7
  %v220 = vsub.s32 0, %v219
  %v221 = vrot.slane %v52, %v220
  %v222 = vlaneseq
  %v223 = vshrl.u32 %v222, 7
  %v224 = vsub.s32 0, %v223
  %v225 = vrot.slane %v53, %v224
  %v226 = vlaneseq
  %v227 = vshrl.u32 %v226, 7
  %v228 = vsub.s32 0, %v227
  %v229 = vrot.slane %v54, %v228
  %v230 = vlaneseq
  %v231 = vshrl.u32 %v230, 7
  %v232 = vsub.s32 0, %v231
  %v233 = vrot.slane %v55, %v232
  %v234 = vlaneseq
  %v235 = vshrl.u32 %v234, 7
  %v236 = vsub.s32 0, %v235
  %v237 = vrot.slane %v56, %v236
  %v238 = vlaneseq
  %v239 = vshrl.u32 %v238, 7
  %v240 = vsub.s32 0, %v239
  %v241 = vrot.slane %v57, %v240
  %v242 = vlaneseq
  %v243 = vshrl.u32 %v242, 7
  %v244 = vsub.s32 0, %v243
  %v245 = vrot.slane %v58, %v244
  %v246 = vlaneseq
  %v247 = vshrl.u32 %v246, 7
  %v248 = vsub.s32 0, %v247
  %v249 = vrot.slane %v59, %v248
  %v250 = vlaneseq
  %v251 = vshrl.u32 %v250, 7
  %v252 = vsub.s32 0, %v251
  %v253 = vrot.slane %v60, %v252
  %v254 = vlaneseq
  %v255 = vshrl.u32 %v254, 7
  %v256 = vsub.s32 0, %v255
  %v257 = vrot.slane %v61, %v256
  %v258 = vmul.f32 %v65, %v205
  %v259 = vmul.f32 %v70, %v205
  %v260 = vmul.f32 %v75, %v209
  %v261 = vmul.f32 %v80, %v209
  %v262 = vmul.f32 %v85, %v213
  %v263 = vmul.f32 %v90, %v213
  %v264 = vmul.f32 %v95, %v217
  %v265 = vmul.f32 %v100, %v217
  %v266 = vmul.f32 %v105, %v221
  %v267 = vmul.f32 %v110, %v221
  %v268 = vmul.f32 %v115, %v225
  %v269 = vmul.f32 %v120, %v225
  %v270 = vmul.f32 %v125, %v229
  %v271 = vmul.f32 %v130, %v229
  %v272 = vmul.f32 %v135, %v233
  %v273 = vmul.f32 %v140, %v233
  %v274 = vmul.f32 %v145, %v237
  %v275 = vmul.f32 %v150, %v237
  %v276 = vmul.f32 %v155, %v241
  %v277 = vmul.f32 %v160, %v241
  %v278 = vmul.f32 %v165, %v245
  %v279 = vmul.f32 %v170, %v245
  %v280 = vmul.f32 %v175, %v249
  %v281 = vmul.f32 %v180, %v249
  %v282 = vmul.f32 %v185, %v253
  %v283 = vmul.f32 %v190, %v253
  %v284 = vmul.f32 %v195, %v257
  %v285 = vmul.f32 %v200, %v257
  %286 = vset.pattern.permute.xlu0 1
  %287 = vperm.xlu0 %286, %v20
  %v288 = vpop.permute.xlu0 %287
  %290 = vset.pattern.permute.xlu0 1
  %291 = vperm.xlu0 %290, %v21
  %v292 = vpop.permute.xlu0 %291
  %294 = vset.pattern.permute.xlu0 1
  %295 = vperm.xlu0 %294, %v22
  %v296 = vpop.permute.xlu0 %295
  %298 = vset.pattern.permute.xlu0 1
  %299 = vperm.xlu0 %298, %v23
  %v300 = vpop.permute.xlu0 %299
  %302 = vset.pattern.permute.xlu0 1
  %303 = vperm.xlu0 %302, %v24
  %v304 = vpop.permute.xlu0 %303
  %306 = vset.pattern.permute.xlu0 1
  %307 = vperm.xlu0 %306, %v25
  %v308 = vpop.permute.xlu0 %307
  %310 = vset.pattern.permute.xlu0 1
  %311 = vperm.xlu0 %310, %v26
  %v312 = vpop.permute.xlu0 %311
  %314 = vset.pattern.permute.xlu0 1
  %315 = vperm.xlu0 %314, %v27
  %v316 = vpop.permute.xlu0 %315
  %318 = vset.pattern.permute.xlu0 1
  %319 = vperm.xlu0 %318, %v28
  %v320 = vpop.permute.xlu0 %319
  %322 = vset.pattern.permute.xlu0 1
  %323 = vperm.xlu0 %322, %v29
  %v324 = vpop.permute.xlu0 %323
  %326 = vset.pattern.permute.xlu0 1
  %327 = vperm.xlu0 %326, %v30
  %v328 = vpop.permute.xlu0 %327
  %330 = vset.pattern.permute.xlu0 1
  %331 = vperm.xlu0 %330, %v31
  %v332 = vpop.permute.xlu0 %331
  %334 = vset.pattern.permute.xlu0 1
  %335 = vperm.xlu0 %334, %v32
  %v336 = vpop.permute.xlu0 %335
  %338 = vset.pattern.permute.xlu0 1
  %339 = vperm.xlu0 %338, %v33
  %v340 = vpop.permute.xlu0 %339
  %342 = vset.pattern.permute.xlu0 1
  %343 = vperm.xlu0 %342, %v34
  %v344 = vpop.permute.xlu0 %343
  %346 = vset.pattern.permute.xlu0 1
  %347 = vperm.xlu0 %346, %v35
  %v348 = vpop.permute.xlu0 %347
  %350 = vset.pattern.permute.xlu0 1
  %351 = vperm.xlu0 %350, %v36
  %v352 = vpop.permute.xlu0 %351
  %354 = vset.pattern.permute.xlu0 1
  %355 = vperm.xlu0 %354, %v37
  %v356 = vpop.permute.xlu0 %355
  %358 = vset.pattern.permute.xlu0 1
  %359 = vperm.xlu0 %358, %v38
  %v360 = vpop.permute.xlu0 %359
  %362 = vset.pattern.permute.xlu0 1
  %363 = vperm.xlu0 %362, %v39
  %v364 = vpop.permute.xlu0 %363
  %366 = vset.pattern.permute.xlu0 1
  %367 = vperm.xlu0 %366, %v40
  %v368 = vpop.permute.xlu0 %367
  %370 = vset.pattern.permute.xlu0 1
  %371 = vperm.xlu0 %370, %v41
  %v372 = vpop.permute.xlu0 %371
  %374 = vset.pattern.permute.xlu0 1
  %375 = vperm.xlu0 %374, %v42
  %v376 = vpop.permute.xlu0 %375
  %378 = vset.pattern.permute.xlu0 1
  %379 = vperm.xlu0 %378, %v43
  %v380 = vpop.permute.xlu0 %379
  %382 = vset.pattern.permute.xlu0 1
  %383 = vperm.xlu0 %382, %v44
  %v384 = vpop.permute.xlu0 %383
  %386 = vset.pattern.permute.xlu0 1
  %387 = vperm.xlu0 %386, %v45
  %v388 = vpop.permute.xlu0 %387
  %390 = vset.pattern.permute.xlu0 1
  %391 = vperm.xlu0 %390, %v46
  %v392 = vpop.permute.xlu0 %391
  %394 = vset.pattern.permute.xlu0 1
  %395 = vperm.xlu0 %394, %v47
  %v396 = vpop.permute.xlu0 %395
  %v398 = vlaneseq
  %v399 = vshrl.u32 %v398, 7
  %v400 = vsub.s32 1, %v399
  %v401 = vrot.slane %v48, %v400
  %v402 = vlaneseq
  %v403 = vshrl.u32 %v402, 7
  %v404 = vsub.s32 1, %v403
  %v405 = vrot.slane %v49, %v404
  %v406 = vlaneseq
  %v407 = vshrl.u32 %v406, 7
  %v408 = vsub.s32 1, %v407
  %v409 = vrot.slane %v50, %v408
  %v410 = vlaneseq
  %v411 = vshrl.u32 %v410, 7
  %v412 = vsub.s32 1, %v411
  %v413 = vrot.slane %v51, %v412
  %v414 = vlaneseq
  %v415 = vshrl.u32 %v414, 7
  %v416 = vsub.s32 1, %v415
  %v417 = vrot.slane %v52, %v416
  %v418 = vlaneseq
  %v419 = vshrl.u32 %v418, 7
  %v420 = vsub.s32 1, %v419
  %v421 = vrot.slane %v53, %v420
  %v422 = vlaneseq
  %v423 = vshrl.u32 %v422, 7
  %v424 = vsub.s32 1, %v423
  %v425 = vrot.slane %v54, %v424
  %v426 = vlaneseq
  %v427 = vshrl.u32 %v426, 7
  %v428 = vsub.s32 1, %v427
  %v429 = vrot.slane %v55, %v428
  %v430 = vlaneseq
  %v431 = vshrl.u32 %v430, 7
  %v432 = vsub.s32 1, %v431
  %v433 = vrot.slane %v56, %v432
  %v434 = vlaneseq
  %v435 = vshrl.u32 %v434, 7
  %v436 = vsub.s32 1, %v435
  %v437 = vrot.slane %v57, %v436
  %v438 = vlaneseq
  %v439 = vshrl.u32 %v438, 7
  %v440 = vsub.s32 1, %v439
  %v441 = vrot.slane %v58, %v440
  %v442 = vlaneseq
  %v443 = vshrl.u32 %v442, 7
  %v444 = vsub.s32 1, %v443
  %v445 = vrot.slane %v59, %v444
  %v446 = vlaneseq
  %v447 = vshrl.u32 %v446, 7
  %v448 = vsub.s32 1, %v447
  %v449 = vrot.slane %v60, %v448
  %v450 = vlaneseq
  %v451 = vshrl.u32 %v450, 7
  %v452 = vsub.s32 1, %v451
  %v453 = vrot.slane %v61, %v452
  %v454 = vmul.f32 %v288, %v401
  %v455 = vmul.f32 %v292, %v401
  %v456 = vmul.f32 %v296, %v405
  %v457 = vmul.f32 %v300, %v405
  %v458 = vmul.f32 %v304, %v409
  %v459 = vmul.f32 %v308, %v409
  %v460 = vmul.f32 %v312, %v413
  %v461 = vmul.f32 %v316, %v413
  %v462 = vmul.f32 %v320, %v417
  %v463 = vmul.f32 %v324, %v417
  %v464 = vmul.f32 %v328, %v421
  %v465 = vmul.f32 %v332, %v421
  %v466 = vmul.f32 %v336, %v425
  %v467 = vmul.f32 %v340, %v425
  %v468 = vmul.f32 %v344, %v429
  %v469 = vmul.f32 %v348, %v429
  %v470 = vmul.f32 %v352, %v433
  %v471 = vmul.f32 %v356, %v433
  %v472 = vmul.f32 %v360, %v437
  %v473 = vmul.f32 %v364, %v437
  %v474 = vmul.f32 %v368, %v441
  %v475 = vmul.f32 %v372, %v441
  %v476 = vmul.f32 %v376, %v445
  %v477 = vmul.f32 %v380, %v445
  %v478 = vmul.f32 %v384, %v449
  %v479 = vmul.f32 %v388, %v449
  %v480 = vmul.f32 %v392, %v453
  %v481 = vmul.f32 %v396, %v453
  %v482 = vadd.f32 %v258, %v454
  %v483 = vadd.f32 %v259, %v455
  %v484 = vadd.f32 %v260, %v456
  %v485 = vadd.f32 %v261, %v457
  %v486 = vadd.f32 %v262, %v458
  %v487 = vadd.f32 %v263, %v459
  %v488 = vadd.f32 %v264, %v460
  %v489 = vadd.f32 %v265, %v461
  %v490 = vadd.f32 %v266, %v462
  %v491 = vadd.f32 %v267, %v463
  %v492 = vadd.f32 %v268, %v464
  %v493 = vadd.f32 %v269, %v465
  %v494 = vadd.f32 %v270, %v466
  %v495 = vadd.f32 %v271, %v467
  %v496 = vadd.f32 %v272, %v468
  %v497 = vadd.f32 %v273, %v469
  %v498 = vadd.f32 %v274, %v470
  %v499 = vadd.f32 %v275, %v471
  %v500 = vadd.f32 %v276, %v472
  %v501 = vadd.f32 %v277, %v473
  %v502 = vadd.f32 %v278, %v474
  %v503 = vadd.f32 %v279, %v475
  %v504 = vadd.f32 %v280, %v476
  %v505 = vadd.f32 %v281, %v477
  %v506 = vadd.f32 %v282, %v478
  %v507 = vadd.f32 %v283, %v479
  %v508 = vadd.f32 %v284, %v480
  %v509 = vadd.f32 %v285, %v481
  %510 = vset.pattern.permute.xlu0 2
  %511 = vperm.xlu0 %510, %v20
  %v512 = vpop.permute.xlu0 %511
  %514 = vset.pattern.permute.xlu0 2
  %515 = vperm.xlu0 %514, %v21
  %v516 = vpop.permute.xlu0 %515
  %518 = vset.pattern.permute.xlu0 2
  %519 = vperm.xlu0 %518, %v22
  %v520 = vpop.permute.xlu0 %519
  %522 = vset.pattern.permute.xlu0 2
  %523 = vperm.xlu0 %522, %v23
  %v524 = vpop.permute.xlu0 %523
  %526 = vset.pattern.permute.xlu0 2
  %527 = vperm.xlu0 %526, %v24
  %v528 = vpop.permute.xlu0 %527
  %530 = vset.pattern.permute.xlu0 2
  %531 = vperm.xlu0 %530, %v25
  %v532 = vpop.permute.xlu0 %531
  %534 = vset.pattern.permute.xlu0 2
  %535 = vperm.xlu0 %534, %v26
  %v536 = vpop.permute.xlu0 %535
  %538 = vset.pattern.permute.xlu0 2
  %539 = vperm.xlu0 %538, %v27
  %v540 = vpop.permute.xlu0 %539
  %542 = vset.pattern.permute.xlu0 2
  %543 = vperm.xlu0 %542, %v28
  %v544 = vpop.permute.xlu0 %543
  %546 = vset.pattern.permute.xlu0 2
  %547 = vperm.xlu0 %546, %v29
  %v548 = vpop.permute.xlu0 %547
  %550 = vset.pattern.permute.xlu0 2
  %551 = vperm.xlu0 %550, %v30
  %v552 = vpop.permute.xlu0 %551
  %554 = vset.pattern.permute.xlu0 2
  %555 = vperm.xlu0 %554, %v31
  %v556 = vpop.permute.xlu0 %555
  %558 = vset.pattern.permute.xlu0 2
  %559 = vperm.xlu0 %558, %v32
  %v560 = vpop.permute.xlu0 %559
  %562 = vset.pattern.permute.xlu0 2
  %563 = vperm.xlu0 %562, %v33
  %v564 = vpop.permute.xlu0 %563
  %566 = vset.pattern.permute.xlu0 2
  %567 = vperm.xlu0 %566, %v34
  %v568 = vpop.permute.xlu0 %567
  %570 = vset.pattern.permute.xlu0 2
  %571 = vperm.xlu0 %570, %v35
  %v572 = vpop.permute.xlu0 %571
  %574 = vset.pattern.permute.xlu0 2
  %575 = vperm.xlu0 %574, %v36
  %v576 = vpop.permute.xlu0 %575
  %578 = vset.pattern.permute.xlu0 2
  %579 = vperm.xlu0 %578, %v37
  %v580 = vpop.permute.xlu0 %579
  %582 = vset.pattern.permute.xlu0 2
  %583 = vperm.xlu0 %582, %v38
  %v584 = vpop.permute.xlu0 %583
  %586 = vset.pattern.permute.xlu0 2
  %587 = vperm.xlu0 %586, %v39
  %v588 = vpop.permute.xlu0 %587
  %590 = vset.pattern.permute.xlu0 2
  %591 = vperm.xlu0 %590, %v40
  %v592 = vpop.permute.xlu0 %591
  %594 = vset.pattern.permute.xlu0 2
  %595 = vperm.xlu0 %594, %v41
  %v596 = vpop.permute.xlu0 %595
  %598 = vset.pattern.permute.xlu0 2
  %599 = vperm.xlu0 %598, %v42
  %v600 = vpop.permute.xlu0 %599
  %602 = vset.pattern.permute.xlu0 2
  %603 = vperm.xlu0 %602, %v43
  %v604 = vpop.permute.xlu0 %603
  %606 = vset.pattern.permute.xlu0 2
  %607 = vperm.xlu0 %606, %v44
  %v608 = vpop.permute.xlu0 %607
  %610 = vset.pattern.permute.xlu0 2
  %611 = vperm.xlu0 %610, %v45
  %v612 = vpop.permute.xlu0 %611
  %614 = vset.pattern.permute.xlu0 2
  %615 = vperm.xlu0 %614, %v46
  %v616 = vpop.permute.xlu0 %615
  %618 = vset.pattern.permute.xlu0 2
  %619 = vperm.xlu0 %618, %v47
  %v620 = vpop.permute.xlu0 %619
  %v622 = vlaneseq
  %v623 = vshrl.u32 %v622, 7
  %v624 = vsub.s32 2, %v623
  %v625 = vrot.slane %v48, %v624
  %v626 = vlaneseq
  %v627 = vshrl.u32 %v626, 7
  %v628 = vsub.s32 2, %v627
  %v629 = vrot.slane %v49, %v628
  %v630 = vlaneseq
  %v631 = vshrl.u32 %v630, 7
  %v632 = vsub.s32 2, %v631
  %v633 = vrot.slane %v50, %v632
  %v634 = vlaneseq
  %v635 = vshrl.u32 %v634, 7
  %v636 = vsub.s32 2, %v635
  %v637 = vrot.slane %v51, %v636
  %v638 = vlaneseq
  %v639 = vshrl.u32 %v638, 7
  %v640 = vsub.s32 2, %v639
  %v641 = vrot.slane %v52, %v640
  %v642 = vlaneseq
  %v643 = vshrl.u32 %v642, 7
  %v644 = vsub.s32 2, %v643
  %v645 = vrot.slane %v53, %v644
  %v646 = vlaneseq
  %v647 = vshrl.u32 %v646, 7
  %v648 = vsub.s32 2, %v647
  %v649 = vrot.slane %v54, %v648
  %v650 = vlaneseq
  %v651 = vshrl.u32 %v650, 7
  %v652 = vsub.s32 2, %v651
  %v653 = vrot.slane %v55, %v652
  %v654 = vlaneseq
  %v655 = vshrl.u32 %v654, 7
  %v656 = vsub.s32 2, %v655
  %v657 = vrot.slane %v56, %v656
  %v658 = vlaneseq
  %v659 = vshrl.u32 %v658, 7
  %v660 = vsub.s32 2, %v659
  %v661 = vrot.slane %v57, %v660
  %v662 = vlaneseq
  %v663 = vshrl.u32 %v662, 7
  %v664 = vsub.s32 2, %v663
  %v665 = vrot.slane %v58, %v664
  %v666 = vlaneseq
  %v667 = vshrl.u32 %v666, 7
  %v668 = vsub.s32 2, %v667
  %v669 = vrot.slane %v59, %v668
  %v670 = vlaneseq
  %v671 = vshrl.u32 %v670, 7
  %v672 = vsub.s32 2, %v671
  %v673 = vrot.slane %v60, %v672
  %v674 = vlaneseq
  %v675 = vshrl.u32 %v674, 7
  %v676 = vsub.s32 2, %v675
  %v677 = vrot.slane %v61, %v676
  %v678 = vmul.f32 %v512, %v625
  %v679 = vmul.f32 %v516, %v625
  %v680 = vmul.f32 %v520, %v629
  %v681 = vmul.f32 %v524, %v629
  %v682 = vmul.f32 %v528, %v633
  %v683 = vmul.f32 %v532, %v633
  %v684 = vmul.f32 %v536, %v637
  %v685 = vmul.f32 %v540, %v637
  %v686 = vmul.f32 %v544, %v641
  %v687 = vmul.f32 %v548, %v641
  %v688 = vmul.f32 %v552, %v645
  %v689 = vmul.f32 %v556, %v645
  %v690 = vmul.f32 %v560, %v649
  %v691 = vmul.f32 %v564, %v649
  %v692 = vmul.f32 %v568, %v653
  %v693 = vmul.f32 %v572, %v653
  %v694 = vmul.f32 %v576, %v657
  %v695 = vmul.f32 %v580, %v657
  %v696 = vmul.f32 %v584, %v661
  %v697 = vmul.f32 %v588, %v661
  %v698 = vmul.f32 %v592, %v665
  %v699 = vmul.f32 %v596, %v665
  %v700 = vmul.f32 %v600, %v669
  %v701 = vmul.f32 %v604, %v669
  %v702 = vmul.f32 %v608, %v673
  %v703 = vmul.f32 %v612, %v673
  %v704 = vmul.f32 %v616, %v677
  %v705 = vmul.f32 %v620, %v677
  %v706 = vadd.f32 %v482, %v678
  %v707 = vadd.f32 %v483, %v679
  %v708 = vadd.f32 %v484, %v680
  %v709 = vadd.f32 %v485, %v681
  %v710 = vadd.f32 %v486, %v682
  %v711 = vadd.f32 %v487, %v683
  %v712 = vadd.f32 %v488, %v684
  %v713 = vadd.f32 %v489, %v685
  %v714 = vadd.f32 %v490, %v686
  %v715 = vadd.f32 %v491, %v687
  %v716 = vadd.f32 %v492, %v688
  %v717 = vadd.f32 %v493, %v689
  %v718 = vadd.f32 %v494, %v690
  %v719 = vadd.f32 %v495, %v691
  %v720 = vadd.f32 %v496, %v692
  %v721 = vadd.f32 %v497, %v693
  %v722 = vadd.f32 %v498, %v694
  %v723 = vadd.f32 %v499, %v695
  %v724 = vadd.f32 %v500, %v696
  %v725 = vadd.f32 %v501, %v697
  %v726 = vadd.f32 %v502, %v698
  %v727 = vadd.f32 %v503, %v699
  %v728 = vadd.f32 %v504, %v700
  %v729 = vadd.f32 %v505, %v701
  %v730 = vadd.f32 %v506, %v702
  %v731 = vadd.f32 %v507, %v703
  %v732 = vadd.f32 %v508, %v704
  %v733 = vadd.f32 %v509, %v705
  %v734 = vlaneseq
  %v735 = vshrl.u32 %v734, 7
  %v736 = vsub.s32 3, %v735
  %v737 = vrot.slane %v48, %v736
  %v738 = vlaneseq
  %v739 = vshrl.u32 %v738, 7
  %v740 = vsub.s32 3, %v739
  %v741 = vrot.slane %v49, %v740
  %v742 = vlaneseq
  %v743 = vshrl.u32 %v742, 7
  %v744 = vsub.s32 3, %v743
  %v745 = vrot.slane %v50, %v744
  %v746 = vlaneseq
  %v747 = vshrl.u32 %v746, 7
  %v748 = vsub.s32 3, %v747
  %v749 = vrot.slane %v51, %v748
  %v750 = vlaneseq
  %v751 = vshrl.u32 %v750, 7
  %v752 = vsub.s32 3, %v751
  %v753 = vrot.slane %v52, %v752
  %v754 = vlaneseq
  %v755 = vshrl.u32 %v754, 7
  %v756 = vsub.s32 3, %v755
  %v757 = vrot.slane %v53, %v756
  %v758 = vlaneseq
  %v759 = vshrl.u32 %v758, 7
  %v760 = vsub.s32 3, %v759
  %v761 = vrot.slane %v54, %v760
  %v762 = vlaneseq
  %v763 = vshrl.u32 %v762, 7
  %v764 = vsub.s32 3, %v763
  %v765 = vrot.slane %v55, %v764
  %v766 = vlaneseq
  %v767 = vshrl.u32 %v766, 7
  %v768 = vsub.s32 3, %v767
  %v769 = vrot.slane %v56, %v768
  %v770 = vlaneseq
  %v771 = vshrl.u32 %v770, 7
  %v772 = vsub.s32 3, %v771
  %v773 = vrot.slane %v57, %v772
  %v774 = vlaneseq
  %v775 = vshrl.u32 %v774, 7
  %v776 = vsub.s32 3, %v775
  %v777 = vrot.slane %v58, %v776
  %v778 = vlaneseq
  %v779 = vshrl.u32 %v778, 7
  %v780 = vsub.s32 3, %v779
  %v781 = vrot.slane %v59, %v780
  %v782 = vlaneseq
  %v783 = vshrl.u32 %v782, 7
  %v784 = vsub.s32 3, %v783
  %v785 = vrot.slane %v60, %v784
  %v786 = vlaneseq
  %v787 = vshrl.u32 %v786, 7
  %v788 = vsub.s32 3, %v787
  %v789 = vrot.slane %v61, %v788
  %v790 = vadd.f32 %v706, %v737
  %v791 = vadd.f32 %v707, %v737
  %v792 = vadd.f32 %v708, %v741
  %v793 = vadd.f32 %v709, %v741
  %v794 = vadd.f32 %v710, %v745
  %v795 = vadd.f32 %v711, %v745
  %v796 = vadd.f32 %v712, %v749
  %v797 = vadd.f32 %v713, %v749
  %v798 = vadd.f32 %v714, %v753
  %v799 = vadd.f32 %v715, %v753
  %v800 = vadd.f32 %v716, %v757
  %v801 = vadd.f32 %v717, %v757
  %v802 = vadd.f32 %v718, %v761
  %v803 = vadd.f32 %v719, %v761
  %v804 = vadd.f32 %v720, %v765
  %v805 = vadd.f32 %v721, %v765
  %v806 = vadd.f32 %v722, %v769
  %v807 = vadd.f32 %v723, %v769
  %v808 = vadd.f32 %v724, %v773
  %v809 = vadd.f32 %v725, %v773
  %v810 = vadd.f32 %v726, %v777
  %v811 = vadd.f32 %v727, %v777
  %v812 = vadd.f32 %v728, %v781
  %v813 = vadd.f32 %v729, %v781
  %v814 = vadd.f32 %v730, %v785
  %v815 = vadd.f32 %v731, %v785
  %v816 = vadd.f32 %v732, %v789
  %v817 = vadd.f32 %v733, %v789
  %v818 = vmax.f32 %v790, 0.0
  %v819 = vmax.f32 %v791, 0.0
  %v820 = vmax.f32 %v792, 0.0
  %v821 = vmax.f32 %v793, 0.0
  %v822 = vmax.f32 %v794, 0.0
  %v823 = vmax.f32 %v795, 0.0
  %v824 = vmax.f32 %v796, 0.0
  %v825 = vmax.f32 %v797, 0.0
  %v826 = vmax.f32 %v798, 0.0
  %v827 = vmax.f32 %v799, 0.0
  %v828 = vmax.f32 %v800, 0.0
  %v829 = vmax.f32 %v801, 0.0
  %v830 = vmax.f32 %v802, 0.0
  %v831 = vmax.f32 %v803, 0.0
  %v832 = vmax.f32 %v804, 0.0
  %v833 = vmax.f32 %v805, 0.0
  %v834 = vmax.f32 %v806, 0.0
  %v835 = vmax.f32 %v807, 0.0
  %v836 = vmax.f32 %v808, 0.0
  %v837 = vmax.f32 %v809, 0.0
  %v838 = vmax.f32 %v810, 0.0
  %v839 = vmax.f32 %v811, 0.0
  %v840 = vmax.f32 %v812, 0.0
  %v841 = vmax.f32 %v813, 0.0
  %v842 = vmax.f32 %v814, 0.0
  %v843 = vmax.f32 %v815, 0.0
  %v844 = vmax.f32 %v816, 0.0
  %v845 = vmax.f32 %v817, 0.0
  %v846 = vld [vmem:[%s3] sm:$0xff]
  %v847 = vld [vmem:[%s3 + $0x8] sm:$0xff]
  %v848 = vld [vmem:[%s3 + $0x10] sm:$0xff]
  %v849 = vld [vmem:[%s3 + $0x18] sm:$0xff]
  %v850 = vld [vmem:[%s3 + $0x20] sm:$0xff]
  %v851 = vld [vmem:[%s3 + $0x28] sm:$0xff]
  %v852 = vld [vmem:[%s3 + $0x30] sm:$0xff]
  %v853 = vld [vmem:[%s3 + $0x38] sm:$0xff]
  %v854 = vld [vmem:[%s3 + $0x40] sm:$0xff]
  %v855 = vld [vmem:[%s3 + $0x48] sm:$0xff]
  %v856 = vld [vmem:[%s3 + $0x50] sm:$0xff]
  %v857 = vld [vmem:[%s3 + $0x58] sm:$0xff]
  %v858 = vld [vmem:[%s3 + $0x60] sm:$0xff]
  %v859 = vld [vmem:[%s3 + $0x68] sm:$0xff]
  %v860 = vld [vmem:[%s3 + $0x70] sm:$0xff]
  %v861 = vld [vmem:[%s3 + $0x78] sm:$0xff]
  %v862 = vld [vmem:[%s2] sm:$0x1]
  %v863 = vlaneseq
  %v864 = vshrl.u32 %v863, 7
  %v865 = vsub.s32 0, %v864
  %v866 = vrot.slane %v862, %v865
  %867 = vmatprep.subr.mxu0 0.0
  %868 = vmatpush1.msra.mxu0 %v861
  %869 = vmatprep.subr.mxu0 0.0
  %870 = vmatpush1.msra.mxu0 %v860
  %871 = vmatprep.subr.mxu0 0.0
  %872 = vmatpush1.msra.mxu0 %v859
  %873 = vmatprep.subr.mxu0 0.0
  %874 = vmatpush1.msra.mxu0 %v858
  %875 = vmatprep.subr.mxu0 0.0
  %876 = vmatpush1.msra.mxu0 %v857
  %877 = vmatprep.subr.mxu0 0.0
  %878 = vmatpush1.msra.mxu0 %v856
  %879 = vmatprep.subr.mxu0 0.0
  %880 = vmatpush1.msra.mxu0 %v855
  %881 = vmatprep.subr.mxu0 0.0
  %882 = vmatpush1.msra.mxu0 %v854
  %883 = vmatprep.subr.mxu0 0.0
  %884 = vmatpush1.msra.mxu0 %v853
  %885 = vmatprep.subr.mxu0 0.0
  %886 = vmatpush1.msra.mxu0 %v852
  %887 = vmatprep.subr.mxu0 0.0
  %888 = vmatpush1.msra.mxu0 %v851
  %889 = vmatprep.subr.mxu0 0.0
  %890 = vmatpush1.msra.mxu0 %v850
  %891 = vmatprep.subr.mxu0 0.0
  %892 = vmatpush1.msra.mxu0 %v849
  %893 = vmatprep.subr.mxu0 0.0
  %894 = vmatpush1.msra.mxu0 %v848
  %895 = vmatprep.subr.mxu0 0.0
  %896 = vmatpush1.msra.mxu0 %v847
  %897 = vmatprep.subr.mxu0 0.0
  %898 = vmatpush1.msra.mxu0 %v846
  %899 = vmatprep.subr.mxu0 0.0
  %900 = vmatpush2.msra.mxu0 0.0
  %901 = vmatprep.subr.mxu0 0.0
  %902 = vmatpush2.msra.mxu0 0.0
  %903 = vmatprep.subr.mxu0 0.0
  %904 = vmatpush2.msra.mxu0 0.0
  %905 = vmatprep.subr.mxu0 0.0
  %906 = vmatpush2.msra.mxu0 0.0
  %907 = vmatprep.subr.mxu0 0.0
  %908 = vmatpush2.msra.mxu0 0.0
  %909 = vmatprep.subr.mxu0 0.0
  %910 = vmatpush2.msra.mxu0 0.0
  %911 = vmatprep.subr.mxu0 0.0
  %912 = vmatpush2.msra.mxu0 0.0
  %913 = vmatprep.subr.mxu0 0.0
  %914 = vmatpush2.msra.mxu0 0.0
  %915 = vmatprep.subr.mxu0 0.0
  %916 = vmatpush2.msra.mxu0 0.0
  %917 = vmatprep.subr.mxu0 0.0
  %918 = vmatpush2.msra.mxu0 0.0
  %919 = vmatprep.subr.mxu0 0.0
  %920 = vmatpush2.msra.mxu0 0.0
  %921 = vmatprep.subr.mxu0 0.0
  %922 = vmatpush2.msra.mxu0 0.0
  %923 = vmatprep.subr.mxu0 0.0
  %924 = vmatpush2.msra.mxu0 0.0
  %925 = vmatprep.subr.mxu0 0.0
  %926 = vmatpush2.msra.mxu0 0.0
  %927 = vmatprep.subr.mxu0 0.0
  %928 = vmatpush2.msra.mxu0 0.0
  %929 = vmatprep.subr.mxu0 0.0
  %930 = vmatpush2.msra.mxu0 0.0
  %931 = vmatprep.mubr.f32.mxu0 0.0
  %932 = vmatmul.mubr.f32.gmra.mxu0 %v818
  %v933 = vpop.f32.mrf.mxu0
  %v934 = vadd.f32 %v866, %v933
  %v935 = vpop.f32.mrf.mxu0
  %936 = vmatprep.mubr.f32.mxu0 0.0
  %937 = vmatmul.mubr.f32.gmra.mxu0 %v819
  %v938 = vpop.f32.mrf.mxu0
  %v939 = vadd.f32 %v866, %v938
  %v940 = vpop.f32.mrf.mxu0
  %941 = vmatprep.mubr.f32.mxu0 0.0
  %942 = vmatmul.mubr.f32.gmra.mxu0 %v820
  %v943 = vpop.f32.mrf.mxu0
  %v944 = vadd.f32 %v866, %v943
  %v945 = vpop.f32.mrf.mxu0
  %946 = vmatprep.mubr.f32.mxu0 0.0
  %947 = vmatmul.mubr.f32.gmra.mxu0 %v821
  %v948 = vpop.f32.mrf.mxu0
  %v949 = vadd.f32 %v866, %v948
  %v950 = vpop.f32.mrf.mxu0
  %951 = vmatprep.mubr.f32.mxu0 0.0
  %952 = vmatmul.mubr.f32.gmra.mxu0 %v822
  %v953 = vpop.f32.mrf.mxu0
  %v954 = vadd.f32 %v866, %v953
  %v955 = vpop.f32.mrf.mxu0
  %956 = vmatprep.mubr.f32.mxu0 0.0
  %957 = vmatmul.mubr.f32.gmra.mxu0 %v823
  %v958 = vpop.f32.mrf.mxu0
  %v959 = vadd.f32 %v866, %v958
  %v960 = vpop.f32.mrf.mxu0
  %961 = vmatprep.mubr.f32.mxu0 0.0
  %962 = vmatmul.mubr.f32.gmra.mxu0 %v824
  %v963 = vpop.f32.mrf.mxu0
  %v964 = vadd.f32 %v866, %v963
  %v965 = vpop.f32.mrf.mxu0
  %966 = vmatprep.mubr.f32.mxu0 0.0
  %967 = vmatmul.mubr.f32.gmra.mxu0 %v825
  %v968 = vpop.f32.mrf.mxu0
  %v969 = vadd.f32 %v866, %v968
  %v970 = vpop.f32.mrf.mxu0
  %971 = vmatprep.mubr.f32.mxu0 0.0
  %972 = vmatmul.mubr.f32.gmra.mxu0 %v826
  %v973 = vpop.f32.mrf.mxu0
  %v974 = vadd.f32 %v866, %v973
  %v975 = vpop.f32.mrf.mxu0
  %976 = vmatprep.mubr.f32.mxu0 0.0
  %977 = vmatmul.mubr.f32.gmra.mxu0 %v827
  %v978 = vpop.f32.mrf.mxu0
  %v979 = vadd.f32 %v866, %v978
  %v980 = vpop.f32.mrf.mxu0
  %981 = vmatprep.mubr.f32.mxu0 0.0
  %982 = vmatmul.mubr.f32.gmra.mxu0 %v828
  %v983 = vpop.f32.mrf.mxu0
  %v984 = vadd.f32 %v866, %v983
  %v985 = vpop.f32.mrf.mxu0
  %986 = vmatprep.mubr.f32.mxu0 0.0
  %987 = vmatmul.mubr.f32.gmra.mxu0 %v829
  %v988 = vpop.f32.mrf.mxu0
  %v989 = vadd.f32 %v866, %v988
  %v990 = vpop.f32.mrf.mxu0
  %991 = vmatprep.mubr.f32.mxu0 0.0
  %992 = vmatmul.mubr.f32.gmra.mxu0 %v830
  %v993 = vpop.f32.mrf.mxu0
  %v994 = vadd.f32 %v866, %v993
  %v995 = vpop.f32.mrf.mxu0
  %996 = vmatprep.mubr.f32.mxu0 0.0
  %997 = vmatmul.mubr.f32.gmra.mxu0 %v831
  %v998 = vpop.f32.mrf.mxu0
  %v999 = vadd.f32 %v866, %v998
  %v1000 = vpop.f32.mrf.mxu0
  %1001 = vmatprep.mubr.f32.mxu0 0.0
  %1002 = vmatmul.mubr.f32.gmra.mxu0 %v832
  %v1003 = vpop.f32.mrf.mxu0
  %v1004 = vadd.f32 %v866, %v1003
  %v1005 = vpop.f32.mrf.mxu0
  %1006 = vmatprep.mubr.f32.mxu0 0.0
  %1007 = vmatmul.mubr.f32.gmra.mxu0 %v833
  %v1008 = vpop.f32.mrf.mxu0
  %v1009 = vadd.f32 %v866, %v1008
  %v1010 = vpop.f32.mrf.mxu0
  %1011 = vmatprep.mubr.f32.mxu0 0.0
  %1012 = vmatmul.mubr.f32.gmra.mxu0 %v834
  %v1013 = vpop.f32.mrf.mxu0
  %v1014 = vadd.f32 %v866, %v1013
  %v1015 = vpop.f32.mrf.mxu0
  %1016 = vmatprep.mubr.f32.mxu0 0.0
  %1017 = vmatmul.mubr.f32.gmra.mxu0 %v835
  %v1018 = vpop.f32.mrf.mxu0
  %v1019 = vadd.f32 %v866, %v1018
  %v1020 = vpop.f32.mrf.mxu0
  %1021 = vmatprep.mubr.f32.mxu0 0.0
  %1022 = vmatmul.mubr.f32.gmra.mxu0 %v836
  %v1023 = vpop.f32.mrf.mxu0
  %v1024 = vadd.f32 %v866, %v1023
  %v1025 = vpop.f32.mrf.mxu0
  %1026 = vmatprep.mubr.f32.mxu0 0.0
  %1027 = vmatmul.mubr.f32.gmra.mxu0 %v837
  %v1028 = vpop.f32.mrf.mxu0
  %v1029 = vadd.f32 %v866, %v1028
  %v1030 = vpop.f32.mrf.mxu0
  %1031 = vmatprep.mubr.f32.mxu0 0.0
  %1032 = vmatmul.mubr.f32.gmra.mxu0 %v838
  %v1033 = vpop.f32.mrf.mxu0
  %v1034 = vadd.f32 %v866, %v1033
  %v1035 = vpop.f32.mrf.mxu0
  %1036 = vmatprep.mubr.f32.mxu0 0.0
  %1037 = vmatmul.mubr.f32.gmra.mxu0 %v839
  %v1038 = vpop.f32.mrf.mxu0
  %v1039 = vadd.f32 %v866, %v1038
  %v1040 = vpop.f32.mrf.mxu0
  %1041 = vmatprep.mubr.f32.mxu0 0.0
  %1042 = vmatmul.mubr.f32.gmra.mxu0 %v840
  %v1043 = vpop.f32.mrf.mxu0
  %v1044 = vadd.f32 %v866, %v1043
  %v1045 = vpop.f32.mrf.mxu0
  %1046 = vmatprep.mubr.f32.mxu0 0.0
  %1047 = vmatmul.mubr.f32.gmra.mxu0 %v841
  %v1048 = vpop.f32.mrf.mxu0
  %v1049 = vadd.f32 %v866, %v1048
  %v1050 = vpop.f32.mrf.mxu0
  %1051 = vmatprep.mubr.f32.mxu0 0.0
  %1052 = vmatmul.mubr.f32.gmra.mxu0 %v842
  %v1053 = vpop.f32.mrf.mxu0
  %v1054 = vadd.f32 %v866, %v1053
  %v1055 = vpop.f32.mrf.mxu0
  %1056 = vmatprep.mubr.f32.mxu0 0.0
  %1057 = vmatmul.mubr.f32.gmra.mxu0 %v843
  %v1058 = vpop.f32.mrf.mxu0
  %v1059 = vadd.f32 %v866, %v1058
  %v1060 = vpop.f32.mrf.mxu0
  %1061 = vmatprep.mubr.f32.mxu0 0.0
  %1062 = vmatmul.mubr.f32.gmra.mxu0 %v844
  %v1063 = vpop.f32.mrf.mxu0
  %v1064 = vadd.f32 %v866, %v1063
  %v1065 = vpop.f32.mrf.mxu0
  %1066 = vmatprep.mubr.f32.mxu0 0.0
  %1067 = vmatmul.mubr.f32.gmra.mxu0 %v845
  %v1068 = vpop.f32.mrf.mxu0
  %v1069 = vadd.f32 %v866, %v1068
  %v1070 = vpop.f32.mrf.mxu0
  %1071 = vdwg.mxu0
  %v1072 = vmax.f32 %v934, 0.0
  %v1073 = vmax.f32 %v939, 0.0
  %v1074 = vmax.f32 %v944, 0.0
  %v1075 = vmax.f32 %v949, 0.0
  %v1076 = vmax.f32 %v954, 0.0
  %v1077 = vmax.f32 %v959, 0.0
  %v1078 = vmax.f32 %v964, 0.0
  %v1079 = vmax.f32 %v969, 0.0
  %v1080 = vmax.f32 %v974, 0.0
  %v1081 = vmax.f32 %v979, 0.0
  %v1082 = vmax.f32 %v984, 0.0
  %v1083 = vmax.f32 %v989, 0.0
  %v1084 = vmax.f32 %v994, 0.0
  %v1085 = vmax.f32 %v999, 0.0
  %v1086 = vmax.f32 %v1004, 0.0
  %v1087 = vmax.f32 %v1009, 0.0
  %v1088 = vmax.f32 %v1014, 0.0
  %v1089 = vmax.f32 %v1019, 0.0
  %v1090 = vmax.f32 %v1024, 0.0
  %v1091 = vmax.f32 %v1029, 0.0
  %v1092 = vmax.f32 %v1034, 0.0
  %v1093 = vmax.f32 %v1039, 0.0
  %v1094 = vmax.f32 %v1044, 0.0
  %v1095 = vmax.f32 %v1049, 0.0
  %v1096 = vmax.f32 %v1054, 0.0
  %v1097 = vmax.f32 %v1059, 0.0
  %v1098 = vmax.f32 %v1064, 0.0
  %v1099 = vmax.f32 %v1069, 0.0
  %v1100 = vld [vmem:[%s4] sm:$0xff]
  %v1101 = vld [vmem:[%s4 + $0x8] sm:$0xff]
  %v1102 = vld [vmem:[%s4 + $0x10] sm:$0xff]
  %v1103 = vld [vmem:[%s4 + $0x18] sm:$0xff]
  %v1104 = vld [vmem:[%s4 + $0x20] sm:$0xff]
  %v1105 = vld [vmem:[%s4 + $0x28] sm:$0xff]
  %v1106 = vld [vmem:[%s4 + $0x30] sm:$0xff]
  %v1107 = vld [vmem:[%s4 + $0x38] sm:$0xff]
  %v1108 = vld [vmem:[%s4 + $0x40] sm:$0xff]
  %v1109 = vld [vmem:[%s4 + $0x48] sm:$0xff]
  %v1110 = vld [vmem:[%s4 + $0x50] sm:$0xff]
  %v1111 = vld [vmem:[%s4 + $0x58] sm:$0xff]
  %v1112 = vld [vmem:[%s4 + $0x60] sm:$0xff]
  %v1113 = vld [vmem:[%s4 + $0x68] sm:$0xff]
  %v1114 = vld [vmem:[%s4 + $0x70] sm:$0xff]
  %v1115 = vld [vmem:[%s4 + $0x78] sm:$0xff]
  %v1116 = vld [vmem:[%s2 + $0x1] sm:$0x1]
  %v1117 = vlaneseq
  %v1118 = vshrl.u32 %v1117, 7
  %v1119 = vsub.s32 0, %v1118
  %v1120 = vrot.slane %v1116, %v1119
  %1121 = vmatprep.subr.mxu0 0.0
  %1122 = vmatpush1.msra.mxu0 %v1115
  %1123 = vmatprep.subr.mxu0 0.0
  %1124 = vmatpush1.msra.mxu0 %v1114
  %1125 = vmatprep.subr.mxu0 0.0
  %1126 = vmatpush1.msra.mxu0 %v1113
  %1127 = vmatprep.subr.mxu0 0.0
  %1128 = vmatpush1.msra.mxu0 %v1112
  %1129 = vmatprep.subr.mxu0 0.0
  %1130 = vmatpush1.msra.mxu0 %v1111
  %1131 = vmatprep.subr.mxu0 0.0
  %1132 = vmatpush1.msra.mxu0 %v1110
  %1133 = vmatprep.subr.mxu0 0.0
  %1134 = vmatpush1.msra.mxu0 %v1109
  %1135 = vmatprep.subr.mxu0 0.0
  %1136 = vmatpush1.msra.mxu0 %v1108
  %1137 = vmatprep.subr.mxu0 0.0
  %1138 = vmatpush1.msra.mxu0 %v1107
  %1139 = vmatprep.subr.mxu0 0.0
  %1140 = vmatpush1.msra.mxu0 %v1106
  %1141 = vmatprep.subr.mxu0 0.0
  %1142 = vmatpush1.msra.mxu0 %v1105
  %1143 = vmatprep.subr.mxu0 0.0
  %1144 = vmatpush1.msra.mxu0 %v1104
  %1145 = vmatprep.subr.mxu0 0.0
  %1146 = vmatpush1.msra.mxu0 %v1103
  %1147 = vmatprep.subr.mxu0 0.0
  %1148 = vmatpush1.msra.mxu0 %v1102
  %1149 = vmatprep.subr.mxu0 0.0
  %1150 = vmatpush1.msra.mxu0 %v1101
  %1151 = vmatprep.subr.mxu0 0.0
  %1152 = vmatpush1.msra.mxu0 %v1100
  %1153 = vmatprep.subr.mxu0 0.0
  %1154 = vmatpush2.msra.mxu0 0.0
  %1155 = vmatprep.subr.mxu0 0.0
  %1156 = vmatpush2.msra.mxu0 0.0
  %1157 = vmatprep.subr.mxu0 0.0
  %1158 = vmatpush2.msra.mxu0 0.0
  %1159 = vmatprep.subr.mxu0 0.0
  %1160 = vmatpush2.msra.mxu0 0.0
  %1161 = vmatprep.subr.mxu0 0.0
  %1162 = vmatpush2.msra.mxu0 0.0
  %1163 = vmatprep.subr.mxu0 0.0
  %1164 = vmatpush2.msra.mxu0 0.0
  %1165 = vmatprep.subr.mxu0 0.0
  %1166 = vmatpush2.msra.mxu0 0.0
  %1167 = vmatprep.subr.mxu0 0.0
  %1168 = vmatpush2.msra.mxu0 0.0
  %1169 = vmatprep.subr.mxu0 0.0
  %1170 = vmatpush2.msra.mxu0 0.0
  %1171 = vmatprep.subr.mxu0 0.0
  %1172 = vmatpush2.msra.mxu0 0.0
  %1173 = vmatprep.subr.mxu0 0.0
  %1174 = vmatpush2.msra.mxu0 0.0
  %1175 = vmatprep.subr.mxu0 0.0
  %1176 = vmatpush2.msra.mxu0 0.0
  %1177 = vmatprep.subr.mxu0 0.0
  %1178 = vmatpush2.msra.mxu0 0.0
  %1179 = vmatprep.subr.mxu0 0.0
  %1180 = vmatpush2.msra.mxu0 0.0
  %1181 = vmatprep.subr.mxu0 0.0
  %1182 = vmatpush2.msra.mxu0 0.0
  %1183 = vmatprep.subr.mxu0 0.0
  %1184 = vmatpush2.msra.mxu0 0.0
  %1185 = vmatprep.mubr.f32.mxu0 0.0
  %1186 = vmatmul.mubr.f32.gmra.mxu0 %v1072
  %v1187 = vpop.f32.mrf.mxu0
  %v1188 = vadd.f32 %v1120, %v1187
  %v1189 = vpop.f32.mrf.mxu0
  %1190 = vmatprep.mubr.f32.mxu0 0.0
  %1191 = vmatmul.mubr.f32.gmra.mxu0 %v1073
  %v1192 = vpop.f32.mrf.mxu0
  %v1193 = vadd.f32 %v1120, %v1192
  %v1194 = vpop.f32.mrf.mxu0
  %1195 = vmatprep.mubr.f32.mxu0 0.0
  %1196 = vmatmul.mubr.f32.gmra.mxu0 %v1074
  %v1197 = vpop.f32.mrf.mxu0
  %v1198 = vadd.f32 %v1120, %v1197
  %v1199 = vpop.f32.mrf.mxu0
  %1200 = vmatprep.mubr.f32.mxu0 0.0
  %1201 = vmatmul.mubr.f32.gmra.mxu0 %v1075
  %v1202 = vpop.f32.mrf.mxu0
  %v1203 = vadd.f32 %v1120, %v1202
  %v1204 = vpop.f32.mrf.mxu0
  %1205 = vmatprep.mubr.f32.mxu0 0.0
  %1206 = vmatmul.mubr.f32.gmra.mxu0 %v1076
  %v1207 = vpop.f32.mrf.mxu0
  %v1208 = vadd.f32 %v1120, %v1207
  %v1209 = vpop.f32.mrf.mxu0
  %1210 = vmatprep.mubr.f32.mxu0 0.0
  %1211 = vmatmul.mubr.f32.gmra.mxu0 %v1077
  %v1212 = vpop.f32.mrf.mxu0
  %v1213 = vadd.f32 %v1120, %v1212
  %v1214 = vpop.f32.mrf.mxu0
  %1215 = vmatprep.mubr.f32.mxu0 0.0
  %1216 = vmatmul.mubr.f32.gmra.mxu0 %v1078
  %v1217 = vpop.f32.mrf.mxu0
  %v1218 = vadd.f32 %v1120, %v1217
  %v1219 = vpop.f32.mrf.mxu0
  %1220 = vmatprep.mubr.f32.mxu0 0.0
  %1221 = vmatmul.mubr.f32.gmra.mxu0 %v1079
  %v1222 = vpop.f32.mrf.mxu0
  %v1223 = vadd.f32 %v1120, %v1222
  %v1224 = vpop.f32.mrf.mxu0
  %1225 = vmatprep.mubr.f32.mxu0 0.0
  %1226 = vmatmul.mubr.f32.gmra.mxu0 %v1080
  %v1227 = vpop.f32.mrf.mxu0
  %v1228 = vadd.f32 %v1120, %v1227
  %v1229 = vpop.f32.mrf.mxu0
  %1230 = vmatprep.mubr.f32.mxu0 0.0
  %1231 = vmatmul.mubr.f32.gmra.mxu0 %v1081
  %v1232 = vpop.f32.mrf.mxu0
  %v1233 = vadd.f32 %v1120, %v1232
  %v1234 = vpop.f32.mrf.mxu0
  %1235 = vmatprep.mubr.f32.mxu0 0.0
  %1236 = vmatmul.mubr.f32.gmra.mxu0 %v1082
  %v1237 = vpop.f32.mrf.mxu0
  %v1238 = vadd.f32 %v1120, %v1237
  %v1239 = vpop.f32.mrf.mxu0
  %1240 = vmatprep.mubr.f32.mxu0 0.0
  %1241 = vmatmul.mubr.f32.gmra.mxu0 %v1083
  %v1242 = vpop.f32.mrf.mxu0
  %v1243 = vadd.f32 %v1120, %v1242
  %v1244 = vpop.f32.mrf.mxu0
  %1245 = vmatprep.mubr.f32.mxu0 0.0
  %1246 = vmatmul.mubr.f32.gmra.mxu0 %v1084
  %v1247 = vpop.f32.mrf.mxu0
  %v1248 = vadd.f32 %v1120, %v1247
  %v1249 = vpop.f32.mrf.mxu0
  %1250 = vmatprep.mubr.f32.mxu0 0.0
  %1251 = vmatmul.mubr.f32.gmra.mxu0 %v1085
  %v1252 = vpop.f32.mrf.mxu0
  %v1253 = vadd.f32 %v1120, %v1252
  %v1254 = vpop.f32.mrf.mxu0
  %1255 = vmatprep.mubr.f32.mxu0 0.0
  %1256 = vmatmul.mubr.f32.gmra.mxu0 %v1086
  %v1257 = vpop.f32.mrf.mxu0
  %v1258 = vadd.f32 %v1120, %v1257
  %v1259 = vpop.f32.mrf.mxu0
  %1260 = vmatprep.mubr.f32.mxu0 0.0
  %1261 = vmatmul.mubr.f32.gmra.mxu0 %v1087
  %v1262 = vpop.f32.mrf.mxu0
  %v1263 = vadd.f32 %v1120, %v1262
  %v1264 = vpop.f32.mrf.mxu0
  %1265 = vmatprep.mubr.f32.mxu0 0.0
  %1266 = vmatmul.mubr.f32.gmra.mxu0 %v1088
  %v1267 = vpop.f32.mrf.mxu0
  %v1268 = vadd.f32 %v1120, %v1267
  %v1269 = vpop.f32.mrf.mxu0
  %1270 = vmatprep.mubr.f32.mxu0 0.0
  %1271 = vmatmul.mubr.f32.gmra.mxu0 %v1089
  %v1272 = vpop.f32.mrf.mxu0
  %v1273 = vadd.f32 %v1120, %v1272
  %v1274 = vpop.f32.mrf.mxu0
  %1275 = vmatprep.mubr.f32.mxu0 0.0
  %1276 = vmatmul.mubr.f32.gmra.mxu0 %v1090
  %v1277 = vpop.f32.mrf.mxu0
  %v1278 = vadd.f32 %v1120, %v1277
  %v1279 = vpop.f32.mrf.mxu0
  %1280 = vmatprep.mubr.f32.mxu0 0.0
  %1281 = vmatmul.mubr.f32.gmra.mxu0 %v1091
  %v1282 = vpop.f32.mrf.mxu0
  %v1283 = vadd.f32 %v1120, %v1282
  %v1284 = vpop.f32.mrf.mxu0
  %1285 = vmatprep.mubr.f32.mxu0 0.0
  %1286 = vmatmul.mubr.f32.gmra.mxu0 %v1092
  %v1287 = vpop.f32.mrf.mxu0
  %v1288 = vadd.f32 %v1120, %v1287
  %v1289 = vpop.f32.mrf.mxu0
  %1290 = vmatprep.mubr.f32.mxu0 0.0
  %1291 = vmatmul.mubr.f32.gmra.mxu0 %v1093
  %v1292 = vpop.f32.mrf.mxu0
  %v1293 = vadd.f32 %v1120, %v1292
  %v1294 = vpop.f32.mrf.mxu0
  %1295 = vmatprep.mubr.f32.mxu0 0.0
  %1296 = vmatmul.mubr.f32.gmra.mxu0 %v1094
  %v1297 = vpop.f32.mrf.mxu0
  %v1298 = vadd.f32 %v1120, %v1297
  %v1299 = vpop.f32.mrf.mxu0
  %1300 = vmatprep.mubr.f32.mxu0 0.0
  %1301 = vmatmul.mubr.f32.gmra.mxu0 %v1095
  %v1302 = vpop.f32.mrf.mxu0
  %v1303 = vadd.f32 %v1120, %v1302
  %v1304 = vpop.f32.mrf.mxu0
  %1305 = vmatprep.mubr.f32.mxu0 0.0
  %1306 = vmatmul.mubr.f32.gmra.mxu0 %v1096
  %v1307 = vpop.f32.mrf.mxu0
  %v1308 = vadd.f32 %v1120, %v1307
  %v1309 = vpop.f32.mrf.mxu0
  %1310 = vmatprep.mubr.f32.mxu0 0.0
  %1311 = vmatmul.mubr.f32.gmra.mxu0 %v1097
  %v1312 = vpop.f32.mrf.mxu0
  %v1313 = vadd.f32 %v1120, %v1312
  %v1314 = vpop.f32.mrf.mxu0
  %1315 = vmatprep.mubr.f32.mxu0 0.0
  %1316 = vmatmul.mubr.f32.gmra.mxu0 %v1098
  %v1317 = vpop.f32.mrf.mxu0
  %v1318 = vadd.f32 %v1120, %v1317
  %v1319 = vpop.f32.mrf.mxu0
  %1320 = vmatprep.mubr.f32.mxu0 0.0
  %1321 = vmatmul.mubr.f32.gmra.mxu0 %v1099
  %v1322 = vpop.f32.mrf.mxu0
  %v1323 = vadd.f32 %v1120, %v1322
  %v1324 = vpop.f32.mrf.mxu0
  %1325 = vdwg.mxu0
  %v1326 = vmax.f32 %v1188, 0.0
  %v1327 = vmax.f32 %v1193, 0.0
  %v1328 = vmax.f32 %v1198, 0.0
  %v1329 = vmax.f32 %v1203, 0.0
  %v1330 = vmax.f32 %v1208, 0.0
  %v1331 = vmax.f32 %v1213, 0.0
  %v1332 = vmax.f32 %v1218, 0.0
  %v1333 = vmax.f32 %v1223, 0.0
  %v1334 = vmax.f32 %v1228, 0.0
  %v1335 = vmax.f32 %v1233, 0.0
  %v1336 = vmax.f32 %v1238, 0.0
  %v1337 = vmax.f32 %v1243, 0.0
  %v1338 = vmax.f32 %v1248, 0.0
  %v1339 = vmax.f32 %v1253, 0.0
  %v1340 = vmax.f32 %v1258, 0.0
  %v1341 = vmax.f32 %v1263, 0.0
  %v1342 = vmax.f32 %v1268, 0.0
  %v1343 = vmax.f32 %v1273, 0.0
  %v1344 = vmax.f32 %v1278, 0.0
  %v1345 = vmax.f32 %v1283, 0.0
  %v1346 = vmax.f32 %v1288, 0.0
  %v1347 = vmax.f32 %v1293, 0.0
  %v1348 = vmax.f32 %v1298, 0.0
  %v1349 = vmax.f32 %v1303, 0.0
  %v1350 = vmax.f32 %v1308, 0.0
  %v1351 = vmax.f32 %v1313, 0.0
  %v1352 = vmax.f32 %v1318, 0.0
  %v1353 = vmax.f32 %v1323, 0.0
  %v1354 = vmax.f32 %v1326, %v1327
  %v1355 = vrot.slane %v1354, 4
  %v1356 = vmax.f32 %v1354, %v1355
  %v1357 = vrot.slane %v1356, 2
  %v1358 = vmax.f32 %v1356, %v1357
  %v1359 = vrot.slane %v1358, 1
  %v1360 = vmax.f32 %v1358, %v1359
  %v1361 = vmax.f32 %v1328, %v1329
  %v1362 = vrot.slane %v1361, 4
  %v1363 = vmax.f32 %v1361, %v1362
  %v1364 = vrot.slane %v1363, 2
  %v1365 = vmax.f32 %v1363, %v1364
  %v1366 = vrot.slane %v1365, 1
  %v1367 = vmax.f32 %v1365, %v1366
  %v1368 = vmax.f32 %v1330, %v1331
  %v1369 = vrot.slane %v1368, 4
  %v1370 = vmax.f32 %v1368, %v1369
  %v1371 = vrot.slane %v1370, 2
  %v1372 = vmax.f32 %v1370, %v1371
  %v1373 = vrot.slane %v1372, 1
  %v1374 = vmax.f32 %v1372, %v1373
  %v1375 = vmax.f32 %v1332, %v1333
  %v1376 = vrot.slane %v1375, 4
  %v1377 = vmax.f32 %v1375, %v1376
  %v1378 = vrot.slane %v1377, 2
  %v1379 = vmax.f32 %v1377, %v1378
  %v1380 = vrot.slane %v1379, 1
  %v1381 = vmax.f32 %v1379, %v1380
  %v1382 = vmax.f32 %v1334, %v1335
  %v1383 = vrot.slane %v1382, 4
  %v1384 = vmax.f32 %v1382, %v1383
  %v1385 = vrot.slane %v1384, 2
  %v1386 = vmax.f32 %v1384, %v1385
  %v1387 = vrot.slane %v1386, 1
  %v1388 = vmax.f32 %v1386, %v1387
  %v1389 = vmax.f32 %v1336, %v1337
  %v1390 = vrot.slane %v1389, 4
  %v1391 = vmax.f32 %v1389, %v1390
  %v1392 = vrot.slane %v1391, 2
  %v1393 = vmax.f32 %v1391, %v1392
  %v1394 = vrot.slane %v1393, 1
  %v1395 = vmax.f32 %v1393, %v1394
  %v1396 = vmax.f32 %v1338, %v1339
  %v1397 = vrot.slane %v1396, 4
  %v1398 = vmax.f32 %v1396, %v1397
  %v1399 = vrot.slane %v1398, 2
  %v1400 = vmax.f32 %v1398, %v1399
  %v1401 = vrot.slane %v1400, 1
  %v1402 = vmax.f32 %v1400, %v1401
  %v1403 = vmax.f32 %v1340, %v1341
  %v1404 = vrot.slane %v1403, 4
  %v1405 = vmax.f32 %v1403, %v1404
  %v1406 = vrot.slane %v1405, 2
  %v1407 = vmax.f32 %v1405, %v1406
  %v1408 = vrot.slane %v1407, 1
  %v1409 = vmax.f32 %v1407, %v1408
  %v1410 = vmax.f32 %v1342, %v1343
  %v1411 = vrot.slane %v1410, 4
  %v1412 = vmax.f32 %v1410, %v1411
  %v1413 = vrot.slane %v1412, 2
  %v1414 = vmax.f32 %v1412, %v1413
  %v1415 = vrot.slane %v1414, 1
  %v1416 = vmax.f32 %v1414, %v1415
  %v1417 = vmax.f32 %v1344, %v1345
  %v1418 = vrot.slane %v1417, 4
  %v1419 = vmax.f32 %v1417, %v1418
  %v1420 = vrot.slane %v1419, 2
  %v1421 = vmax.f32 %v1419, %v1420
  %v1422 = vrot.slane %v1421, 1
  %v1423 = vmax.f32 %v1421, %v1422
  %v1424 = vmax.f32 %v1346, %v1347
  %v1425 = vrot.slane %v1424, 4
  %v1426 = vmax.f32 %v1424, %v1425
  %v1427 = vrot.slane %v1426, 2
  %v1428 = vmax.f32 %v1426, %v1427
  %v1429 = vrot.slane %v1428, 1
  %v1430 = vmax.f32 %v1428, %v1429
  %v1431 = vmax.f32 %v1348, %v1349
  %v1432 = vrot.slane %v1431, 4
  %v1433 = vmax.f32 %v1431, %v1432
  %v1434 = vrot.slane %v1433, 2
  %v1435 = vmax.f32 %v1433, %v1434
  %v1436 = vrot.slane %v1435, 1
  %v1437 = vmax.f32 %v1435, %v1436
  %v1438 = vmax.f32 %v1350, %v1351
  %v1439 = vrot.slane %v1438, 4
  %v1440 = vmax.f32 %v1438, %v1439
  %v1441 = vrot.slane %v1440, 2
  %v1442 = vmax.f32 %v1440, %v1441
  %v1443 = vrot.slane %v1442, 1
  %v1444 = vmax.f32 %v1442, %v1443
  %v1445 = vmax.f32 %v1352, %v1353
  %v1446 = vrot.slane %v1445, 4
  %v1447 = vmax.f32 %v1445, %v1446
  %v1448 = vrot.slane %v1447, 2
  %v1449 = vmax.f32 %v1447, %v1448
  %v1450 = vrot.slane %v1449, 1
  %v1451 = vmax.f32 %v1449, %v1450
  %vm1466 = vcmask 1041409
  %v1467 = vsel %vm1466, %v1367, %v1360
  %vm1468 = vcmask 1042434
  %v1469 = vsel %vm1468, %v1374, %v1467
  %vm1470 = vcmask 1043459
  %v1471 = vsel %vm1470, %v1381, %v1469
  %vm1472 = vcmask 1044484
  %v1473 = vsel %vm1472, %v1388, %v1471
  %vm1474 = vcmask 1045509
  %v1475 = vsel %vm1474, %v1395, %v1473
  %vm1476 = vcmask 1046534
  %v1477 = vsel %vm1476, %v1402, %v1475
  %vm1478 = vcmask 1047559
  %v1479 = vsel %vm1478, %v1409, %v1477
  %v1480 = vsel %vm1466, %v1423, %v1416
  %v1481 = vsel %vm1468, %v1430, %v1480
  %v1482 = vsel %vm1470, %v1437, %v1481
  %v1483 = vsel %vm1472, %v1444, %v1482
  %v1484 = vsel %vm1474, %v1451, %v1483
  %1487 = vst [vmem:[%s5] sm:$0xff] %v1479
  %1488 = vst [vmem:[%s5 + $0x8] sm:$0x3f] %v1484
  // Predicated region
  $region22: #{pointlk_forward.1} parent=0 // pred_check
    _
  $region23: #{pointlk_forward.1} parent=0 // pred_check_branch
    %1490 = sbr.rel (0) target = $region25
  $region24: #{pointlk_forward.1} parent=0 // pred_region
    _
  $region25: #{pointlk_forward.1} parent=0 // pred_fallthru
    _
  // Predicated region
  $region26: #{pointlk_forward.1} parent=0 // pred_check
    _
  $region27: #{pointlk_forward.1} parent=0 // pred_check_branch
    %1492 = sbr.rel (0) target = $region29
  $region28: #{pointlk_forward.1} parent=0 // pred_region
    _
  $region29: #{pointlk_forward.1} parent=0 // pred_fallthru
    _

// kernel: body.5
$region0: #{body.5}
  #allocation0 [shape = 'u32[]', space=smem, size = 0x4, offset = 0x4, fixed_abs, tag = 'smem constant byte address 0x4 - core index']
  #allocation1 [shape = 'u32[144,128]{1,0:T(1,128)}', space=vmem, size = 0x12000, scoped, tag = 'internal scratch']
  %s0 = inlined_call_operand.vmem [shape: f32[2,16,3], index: 0, kind: input, shape index: {}]
  %s1 = inlined_call_operand.vmem [shape: f32[2,4,128], index: 1, kind: input, shape index: {}]
  %s2 = inlined_call_operand.vmem [shape: f32[8,128], index: 2, kind: input, shape index: {}]
  %s3 = inlined_call_operand.vmem [shape: bf16[128,128], index: 3, kind: input, shape index: {}]
  %s4 = inlined_call_operand.vmem [shape: bf16[128,128], index: 4, kind: input, shape index: {}]
  %s5 = inlined_call_operand.vmem [shape: f32[2,128], index: 5, kind: output, shape index: {}]
  %s6 = sld [smem:[#allocation0]]
  $region30: #{body.5} parent=0
    _
  %s8 = ssub.s32 1, %s6
  %s9 = scalar_select 0, %s8, %s6
  // Predicated region
  $region2: #{body.5} parent=0 // pred_check
    _
  $region3: #{body.5} parent=0 // pred_check_branch
    %11 = sbr.rel (0) target = $region5
  $region4: #{body.5} parent=0 // pred_region
    _
  $region5: #{body.5} parent=0 // pred_fallthru
    _
  // Predicated region
  $region6: #{body.5} parent=0 // pred_check
    _
  $region7: #{body.5} parent=0 // pred_check_branch
    %13 = sbr.rel (0) target = $region9
  $region8: #{body.5} parent=0 // pred_region
    _
  $region9: #{body.5} parent=0 // pred_fallthru
    _
  // Predicated region
  $region10: #{body.5} parent=0 // pred_check
    _
  $region11: #{body.5} parent=0 // pred_check_branch
    %15 = sbr.rel (0) target = $region13
  $region12: #{body.5} parent=0 // pred_region
    _
  $region13: #{body.5} parent=0 // pred_fallthru
    _
  // Predicated region
  $region14: #{body.5} parent=0 // pred_check
    _
  $region15: #{body.5} parent=0 // pred_check_branch
    %17 = sbr.rel (0) target = $region17
  $region16: #{body.5} parent=0 // pred_region
    _
  $region17: #{body.5} parent=0 // pred_fallthru
    _
  // Predicated region
  $region18: #{body.5} parent=0 // pred_check
    _
  $region19: #{body.5} parent=0 // pred_check_branch
    %19 = sbr.rel (0) target = $region21
  $region20: #{body.5} parent=0 // pred_region
    _
  $region21: #{body.5} parent=0 // pred_fallthru
    _
  %v21 = vld [vmem:[%s0] sm:$0xff]
  %v22 = vld [vmem:[%s0 + $0x8] sm:$0xff]
  %v23 = vld [vmem:[%s0 + $0x10] sm:$0xff]
  %v24 = vld [vmem:[%s0 + $0x18] sm:$0xff]
  %v25 = vld [vmem:[%s1] sm:$0xf]
  %v26 = vld [vmem:[%s1 + $0x4] sm:$0xf]
  %28 = vset.pattern.permute.xlu0 0
  %29 = vperm.xlu0 %28, %v21
  %v30 = vpop.permute.xlu0 %29
  %33 = vset.pattern.permute.xlu0 0
  %34 = vperm.xlu0 %33, %v22
  %v35 = vpop.permute.xlu0 %34
  %38 = vset.pattern.permute.xlu0 0
  %39 = vperm.xlu0 %38, %v23
  %v40 = vpop.permute.xlu0 %39
  %43 = vset.pattern.permute.xlu0 0
  %44 = vperm.xlu0 %43, %v24
  %v45 = vpop.permute.xlu0 %44
  %v47 = vlaneseq
  %v48 = vshrl.u32 %v47, 7
  %v49 = vsub.s32 0, %v48
  %v50 = vrot.slane %v25, %v49
  %v51 = vlaneseq
  %v52 = vshrl.u32 %v51, 7
  %v53 = vsub.s32 0, %v52
  %v54 = vrot.slane %v26, %v53
  %v55 = vmul.f32 %v30, %v50
  %v56 = vmul.f32 %v35, %v50
  %v57 = vmul.f32 %v40, %v54
  %v58 = vmul.f32 %v45, %v54
  %59 = vset.pattern.permute.xlu0 1
  %60 = vperm.xlu0 %59, %v21
  %v61 = vpop.permute.xlu0 %60
  %63 = vset.pattern.permute.xlu0 1
  %64 = vperm.xlu0 %63, %v22
  %v65 = vpop.permute.xlu0 %64
  %67 = vset.pattern.permute.xlu0 1
  %68 = vperm.xlu0 %67, %v23
  %v69 = vpop.permute.xlu0 %68
  %71 = vset.pattern.permute.xlu0 1
  %72 = vperm.xlu0 %71, %v24
  %v73 = vpop.permute.xlu0 %72
  %v75 = vlaneseq
  %v76 = vshrl.u32 %v75, 7
  %v77 = vsub.s32 1, %v76
  %v78 = vrot.slane %v25, %v77
  %v79 = vlaneseq
  %v80 = vshrl.u32 %v79, 7
  %v81 = vsub.s32 1, %v80
  %v82 = vrot.slane %v26, %v81
  %v83 = vmul.f32 %v61, %v78
  %v84 = vmul.f32 %v65, %v78
  %v85 = vmul.f32 %v69, %v82
  %v86 = vmul.f32 %v73, %v82
  %v87 = vadd.f32 %v55, %v83
  %v88 = vadd.f32 %v56, %v84
  %v89 = vadd.f32 %v57, %v85
  %v90 = vadd.f32 %v58, %v86
  %91 = vset.pattern.permute.xlu0 2
  %92 = vperm.xlu0 %91, %v21
  %v93 = vpop.permute.xlu0 %92
  %95 = vset.pattern.permute.xlu0 2
  %96 = vperm.xlu0 %95, %v22
  %v97 = vpop.permute.xlu0 %96
  %99 = vset.pattern.permute.xlu0 2
  %100 = vperm.xlu0 %99, %v23
  %v101 = vpop.permute.xlu0 %100
  %103 = vset.pattern.permute.xlu0 2
  %104 = vperm.xlu0 %103, %v24
  %v105 = vpop.permute.xlu0 %104
  %v107 = vlaneseq
  %v108 = vshrl.u32 %v107, 7
  %v109 = vsub.s32 2, %v108
  %v110 = vrot.slane %v25, %v109
  %v111 = vlaneseq
  %v112 = vshrl.u32 %v111, 7
  %v113 = vsub.s32 2, %v112
  %v114 = vrot.slane %v26, %v113
  %v115 = vmul.f32 %v93, %v110
  %v116 = vmul.f32 %v97, %v110
  %v117 = vmul.f32 %v101, %v114
  %v118 = vmul.f32 %v105, %v114
  %v119 = vadd.f32 %v87, %v115
  %v120 = vadd.f32 %v88, %v116
  %v121 = vadd.f32 %v89, %v117
  %v122 = vadd.f32 %v90, %v118
  %v123 = vlaneseq
  %v124 = vshrl.u32 %v123, 7
  %v125 = vsub.s32 3, %v124
  %v126 = vrot.slane %v25, %v125
  %v127 = vlaneseq
  %v128 = vshrl.u32 %v127, 7
  %v129 = vsub.s32 3, %v128
  %v130 = vrot.slane %v26, %v129
  %v131 = vadd.f32 %v119, %v126
  %v132 = vadd.f32 %v120, %v126
  %v133 = vadd.f32 %v121, %v130
  %v134 = vadd.f32 %v122, %v130
  %v135 = vmax.f32 %v131, 0.0
  %v136 = vmax.f32 %v132, 0.0
  %v137 = vmax.f32 %v133, 0.0
  %v138 = vmax.f32 %v134, 0.0
  %v139 = vpack.c.bf16 %v136, %v135
  %v140 = vpack.c.bf16 %v138, %v137
  %v141 = vld [vmem:[%s3] sm:$0xf]
  %v142 = vld [vmem:[%s3 + $0x4] sm:$0xf]
  %v143 = vld [vmem:[%s3 + $0x8] sm:$0xf]
  %v144 = vld [vmem:[%s3 + $0xc] sm:$0xf]
  %v145 = vld [vmem:[%s3 + $0x10] sm:$0xf]
  %v146 = vld [vmem:[%s3 + $0x14] sm:$0xf]
  %v147 = vld [vmem:[%s3 + $0x18] sm:$0xf]
  %v148 = vld [vmem:[%s3 + $0x1c] sm:$0xf]
  %v149 = vld [vmem:[%s3 + $0x20] sm:$0xf]
  %v150 = vld [vmem:[%s3 + $0x24] sm:$0xf]
  %v151 = vld [vmem:[%s3 + $0x28] sm:$0xf]
  %v152 = vld [vmem:[%s3 + $0x2c] sm:$0xf]
  %v153 = vld [vmem:[%s3 + $0x30] sm:$0xf]
  %v154 = vld [vmem:[%s3 + $0x34] sm:$0xf]
  %v155 = vld [vmem:[%s3 + $0x38] sm:$0xf]
  %v156 = vld [vmem:[%s3 + $0x3c] sm:$0xf]
  %v157 = vld [vmem:[%s2] sm:$0x1]
  %v158 = vlaneseq
  %v159 = vshrl.u32 %v158, 7
  %v160 = vsub.s32 0, %v159
  %v161 = vrot.slane %v157, %v160
  %v178 = vunpack.c.l.b16 %v141
  %v179 = vunpack.c.l.b16 %v142
  %v180 = vunpack.c.l.b16 %v143
  %v181 = vunpack.c.l.b16 %v144
  %v182 = vunpack.c.l.b16 %v145
  %v183 = vunpack.c.l.b16 %v146
  %v184 = vunpack.c.l.b16 %v147
  %v185 = vunpack.c.l.b16 %v148
  %v186 = vunpack.c.l.b16 %v149
  %v187 = vunpack.c.l.b16 %v150
  %v188 = vunpack.c.l.b16 %v151
  %v189 = vunpack.c.l.b16 %v152
  %v190 = vunpack.c.l.b16 %v153
  %v191 = vunpack.c.l.b16 %v154
  %v192 = vunpack.c.l.b16 %v155
  %v193 = vunpack.c.l.b16 %v156
  %v194 = vpack.c.b16 %v179, %v178
  %v195 = vpack.c.b16 %v181, %v180
  %v196 = vpack.c.b16 %v183, %v182
  %v197 = vpack.c.b16 %v185, %v184
  %v198 = vpack.c.b16 %v187, %v186
  %v199 = vpack.c.b16 %v189, %v188
  %v200 = vpack.c.b16 %v191, %v190
  %v201 = vpack.c.b16 %v193, %v192
  %210 = vmatprep.subr.bf16.mxu0 0
  %211 = vmatpush1.bf16.msra.mxu0 %v201
  %212 = vmatprep.subr.bf16.mxu0 0
  %213 = vmatpush1.bf16.msra.mxu0 %v200
  %214 = vmatprep.subr.bf16.mxu0 0
  %215 = vmatpush1.bf16.msra.mxu0 %v199
  %216 = vmatprep.subr.bf16.mxu0 0
  %217 = vmatpush1.bf16.msra.mxu0 %v198
  %218 = vmatprep.subr.bf16.mxu0 0
  %219 = vmatpush1.bf16.msra.mxu0 %v197
  %220 = vmatprep.subr.bf16.mxu0 0
  %221 = vmatpush1.bf16.msra.mxu0 %v196
  %222 = vmatprep.subr.bf16.mxu0 0
  %223 = vmatpush1.bf16.msra.mxu0 %v195
  %224 = vmatprep.subr.bf16.mxu0 0
  %225 = vmatpush1.bf16.msra.mxu0 %v194
  %226 = vmatprep.subr.bf16.mxu0 0
  %227 = vmatpush2.bf16.msra.mxu0 0
  %228 = vmatprep.subr.bf16.mxu0 0
  %229 = vmatpush2.bf16.msra.mxu0 0
  %230 = vmatprep.subr.bf16.mxu0 0
  %231 = vmatpush2.bf16.msra.mxu0 0
  %232 = vmatprep.subr.bf16.mxu0 0
  %233 = vmatpush2.bf16.msra.mxu0 0
  %234 = vmatprep.subr.bf16.mxu0 0
  %235 = vmatpush2.bf16.msra.mxu0 0
  %236 = vmatprep.subr.bf16.mxu0 0
  %237 = vmatpush2.bf16.msra.mxu0 0
  %238 = vmatprep.subr.bf16.mxu0 0
  %239 = vmatpush2.bf16.msra.mxu0 0
  %240 = vmatprep.subr.bf16.mxu0 0
  %241 = vmatpush2.bf16.msra.mxu0 0
  %242 = vmatprep.mubr.bf16.mxu0 0
  %243 = vmatmul.mubr.bf16.gmra.mxu0 %v139
  %v244 = vpop.f32.mrf.mxu0
  %v245 = vadd.f32 %v161, %v244
  %v246 = vpop.f32.mrf.mxu0
  %v247 = vpop.f32.mrf.mxu0
  %v248 = vadd.f32 %v161, %v247
  %v249 = vpop.f32.mrf.mxu0
  %250 = vmatprep.mubr.bf16.mxu0 0
  %251 = vmatmul.mubr.bf16.gmra.mxu0 %v140
  %v252 = vpop.f32.mrf.mxu0
  %v253 = vadd.f32 %v161, %v252
  %v254 = vpop.f32.mrf.mxu0
  %v255 = vpop.f32.mrf.mxu0
  %v256 = vadd.f32 %v161, %v255
  %v257 = vpop.f32.mrf.mxu0
  %258 = vdwg.mxu0
  %v259 = vmax.f32 %v245, 0.0
  %v260 = vmax.f32 %v248, 0.0
  %v261 = vmax.f32 %v253, 0.0
  %v262 = vmax.f32 %v256, 0.0
  %v263 = vpack.c.bf16 %v260, %v259
  %v264 = vpack.c.bf16 %v262, %v261
  %v265 = vld [vmem:[%s4] sm:$0xf]
  %v266 = vld [vmem:[%s4 + $0x4] sm:$0xf]
  %v267 = vld [vmem:[%s4 + $0x8] sm:$0xf]
  %v268 = vld [vmem:[%s4 + $0xc] sm:$0xf]
  %v269 = vld [vmem:[%s4 + $0x10] sm:$0xf]
  %v270 = vld [vmem:[%s4 + $0x14] sm:$0xf]
  %v271 = vld [vmem:[%s4 + $0x18] sm:$0xf]
  %v272 = vld [vmem:[%s4 + $0x1c] sm:$0xf]
  %v273 = vld [vmem:[%s4 + $0x20] sm:$0xf]
  %v274 = vld [vmem:[%s4 + $0x24] sm:$0xf]
  %v275 = vld [vmem:[%s4 + $0x28] sm:$0xf]
  %v276 = vld [vmem:[%s4 + $0x2c] sm:$0xf]
  %v277 = vld [vmem:[%s4 + $0x30] sm:$0xf]
  %v278 = vld [vmem:[%s4 + $0x34] sm:$0xf]
  %v279 = vld [vmem:[%s4 + $0x38] sm:$0xf]
  %v280 = vld [vmem:[%s4 + $0x3c] sm:$0xf]
  %v281 = vld [vmem:[%s2 + $0x1] sm:$0x1]
  %v282 = vlaneseq
  %v283 = vshrl.u32 %v282, 7
  %v284 = vsub.s32 0, %v283
  %v285 = vrot.slane %v281, %v284
  %v302 = vunpack.c.l.b16 %v265
  %v303 = vunpack.c.l.b16 %v266
  %v304 = vunpack.c.l.b16 %v267
  %v305 = vunpack.c.l.b16 %v268
  %v306 = vunpack.c.l.b16 %v269
  %v307 = vunpack.c.l.b16 %v270
  %v308 = vunpack.c.l.b16 %v271
  %v309 = vunpack.c.l.b16 %v272
  %v310 = vunpack.c.l.b16 %v273
  %v311 = vunpack.c.l.b16 %v274
  %v312 = vunpack.c.l.b16 %v275
  %v313 = vunpack.c.l.b16 %v276
  %v314 = vunpack.c.l.b16 %v277
  %v315 = vunpack.c.l.b16 %v278
  %v316 = vunpack.c.l.b16 %v279
  %v317 = vunpack.c.l.b16 %v280
  %v318 = vpack.c.b16 %v303, %v302
  %v319 = vpack.c.b16 %v305, %v304
  %v320 = vpack.c.b16 %v307, %v306
  %v321 = vpack.c.b16 %v309, %v308
  %v322 = vpack.c.b16 %v311, %v310
  %v323 = vpack.c.b16 %v313, %v312
  %v324 = vpack.c.b16 %v315, %v314
  %v325 = vpack.c.b16 %v317, %v316
  %334 = vmatprep.subr.bf16.mxu0 0
  %335 = vmatpush1.bf16.msra.mxu0 %v325
  %336 = vmatprep.subr.bf16.mxu0 0
  %337 = vmatpush1.bf16.msra.mxu0 %v324
  %338 = vmatprep.subr.bf16.mxu0 0
  %339 = vmatpush1.bf16.msra.mxu0 %v323
  %340 = vmatprep.subr.bf16.mxu0 0
  %341 = vmatpush1.bf16.msra.mxu0 %v322
  %342 = vmatprep.subr.bf16.mxu0 0
  %343 = vmatpush1.bf16.msra.mxu0 %v321
  %344 = vmatprep.subr.bf16.mxu0 0
  %345 = vmatpush1.bf16.msra.mxu0 %v320
  %346 = vmatprep.subr.bf16.mxu0 0
  %347 = vmatpush1.bf16.msra.mxu0 %v319
  %348 = vmatprep.subr.bf16.mxu0 0
  %349 = vmatpush1.bf16.msra.mxu0 %v318
  %350 = vmatprep.subr.bf16.mxu0 0
  %351 = vmatpush2.bf16.msra.mxu0 0
  %352 = vmatprep.subr.bf16.mxu0 0
  %353 = vmatpush2.bf16.msra.mxu0 0
  %354 = vmatprep.subr.bf16.mxu0 0
  %355 = vmatpush2.bf16.msra.mxu0 0
  %356 = vmatprep.subr.bf16.mxu0 0
  %357 = vmatpush2.bf16.msra.mxu0 0
  %358 = vmatprep.subr.bf16.mxu0 0
  %359 = vmatpush2.bf16.msra.mxu0 0
  %360 = vmatprep.subr.bf16.mxu0 0
  %361 = vmatpush2.bf16.msra.mxu0 0
  %362 = vmatprep.subr.bf16.mxu0 0
  %363 = vmatpush2.bf16.msra.mxu0 0
  %364 = vmatprep.subr.bf16.mxu0 0
  %365 = vmatpush2.bf16.msra.mxu0 0
  %366 = vmatprep.mubr.bf16.mxu0 0
  %367 = vmatmul.mubr.bf16.gmra.mxu0 %v263
  %v368 = vpop.f32.mrf.mxu0
  %v369 = vadd.f32 %v285, %v368
  %v370 = vpop.f32.mrf.mxu0
  %v371 = vpop.f32.mrf.mxu0
  %v372 = vadd.f32 %v285, %v371
  %v373 = vpop.f32.mrf.mxu0
  %374 = vmatprep.mubr.bf16.mxu0 0
  %375 = vmatmul.mubr.bf16.gmra.mxu0 %v264
  %v376 = vpop.f32.mrf.mxu0
  %v377 = vadd.f32 %v285, %v376
  %v378 = vpop.f32.mrf.mxu0
  %v379 = vpop.f32.mrf.mxu0
  %v380 = vadd.f32 %v285, %v379
  %v381 = vpop.f32.mrf.mxu0
  %382 = vdwg.mxu0
  %v383 = vmax.f32 %v369, 0.0
  %v384 = vmax.f32 %v372, 0.0
  %v385 = vmax.f32 %v377, 0.0
  %v386 = vmax.f32 %v380, 0.0
  %v387 = vmax.f32 %v383, %v384
  %v388 = vrot.slane %v387, 4
  %v389 = vmax.f32 %v387, %v388
  %v390 = vrot.slane %v389, 2
  %v391 = vmax.f32 %v389, %v390
  %v392 = vrot.slane %v391, 1
  %v393 = vmax.f32 %v391, %v392
  %v394 = vmax.f32 %v385, %v386
  %v395 = vrot.slane %v394, 4
  %v396 = vmax.f32 %v394, %v395
  %v397 = vrot.slane %v396, 2
  %v398 = vmax.f32 %v396, %v397
  %v399 = vrot.slane %v398, 1
  %v400 = vmax.f32 %v398, %v399
  %vm403 = vcmask 1041409
  %v404 = vsel %vm403, %v400, %v393
  %406 = vst [vmem:[%s5] sm:$0x3] %v404
  // Predicated region
  $region22: #{body.5} parent=0 // pred_check
    _
  $region23: #{body.5} parent=0 // pred_check_branch
    %408 = sbr.rel (0) target = $region25
  $region24: #{body.5} parent=0 // pred_region
    _
  $region25: #{body.5} parent=0 // pred_fallthru
    _
  // Predicated region
  $region26: #{body.5} parent=0 // pred_check
    _
  $region27: #{body.5} parent=0 // pred_check_branch
    %410 = sbr.rel (0) target = $region29
  $region28: #{body.5} parent=0 // pred_region
    _
  $region29: #{body.5} parent=0 // pred_fallthru
    _

</llo_original>
